<compile_context>
chip_gen: v7x
topology: tpu7x:2x2x1
jax: 0.10.0
libtpu: 0.0.40
codegen_flags: <defaults>
</compile_context>

<pallas_src>
import functools
import math

import jax
import jax.numpy as jnp
from jax.experimental import pallas as pl
from jax.experimental.pallas import tpu as pltpu


@functools.lru_cache(maxsize=1)
def _vmem_limit_bytes():
    """Generation-aware scoped-VMEM limit (~55% of physical, capped)."""
    cap = 64 * 1024 * 1024  # conservative fallback (v7x per-TC VMEM)
    try:
        info = pltpu.get_tpu_info()
        cap = int(getattr(info, "vmem_capacity_bytes", cap))
    except Exception:
        pass
    return max(32 * 1024 * 1024, min(int(cap * 0.55), 100 * 1024 * 1024))


def _pick_tile(dim, candidates=(512, 256, 128)):
    """Largest candidate tile evenly dividing `dim`, else the full dim."""
    for t in candidates:
        if dim >= t and dim % t == 0:
            return t
    return dim


# ----------------------------- Pallas kernels ------------------------------ #

def _embed_kernel(x_ref, w_ref, b_ref, pe_ref, o_ref):
    # x: (1, C, T) channels-first; w: (C, D); b: (1, D); pe: (T, D).
    # Contract over the channel axis in-kernel -> (T, D); no XLA transpose.
    x = x_ref[0]
    y = jax.lax.dot_general(x, w_ref[...], (((0,), (0,)), ((), ())),
                            preferred_element_type=jnp.float32)        # (T, D)
    y = y + b_ref[...].astype(jnp.float32) + pe_ref[...].astype(jnp.float32)
    o_ref[0] = y.astype(o_ref.dtype)


def _mha_block_kernel(xq_ref, xkv_ref, wq_ref, wk_ref, wv_ref,
                      bq_ref, bk_ref, bv_ref, wo_ref, bo_ref, g_ref, bn_ref,
                      o_ref, k_sc, v_sc, *, nhead, eps):
    # xq: (1, tq, D) query rows; xkv: (1, S, D) full sequence (resident per b).
    # wq/wk/wv: (nhead, D, dh); bq/bk/bv: (nhead, 1, dh); wo: (nhead, dh, D).
    # k_sc/v_sc: (nhead, S, dh) f32 VMEM scratch, filled once per batch elem.
    qi = pl.program_id(1)

    @pl.when(qi == 0)
    def _():
        xkv = xkv_ref[0]                                               # (S, D)
        for h in range(nhead):
            k_sc[h] = (jnp.dot(xkv, wk_ref[h],
                               preferred_element_type=jnp.float32)
                       + bk_ref[h].astype(jnp.float32))
            v_sc[h] = (jnp.dot(xkv, wv_ref[h],
                               preferred_element_type=jnp.float32)
                       + bv_ref[h].astype(jnp.float32))

    xq = xq_ref[0]                                                     # (tq, D)
    tq, d = xq.shape
    acc = jnp.zeros((tq, d), jnp.float32)
    for h in range(nhead):  # static unroll; only one (tq, D) accumulator live
        q = (jnp.dot(xq, wq_ref[h], preferred_element_type=jnp.float32)
             + bq_ref[h].astype(jnp.float32))       # (tq, dh), 1/sqrt(dh) folded
        k = k_sc[h]                                                    # (S, dh)
        v = v_sc[h]                                                    # (S, dh)
        s = jax.lax.dot_general(q, k, (((1,), (1,)), ((), ())),
                                preferred_element_type=jnp.float32)    # (tq, S)
        m = jnp.max(s, axis=-1, keepdims=True)
        p = jnp.exp(s - m)
        p = p / jnp.sum(p, axis=-1, keepdims=True)   # exact division (parity)
        pv = jnp.dot(p, v, preferred_element_type=jnp.float32)         # (tq, dh)
        acc = acc + jnp.dot(pv, wo_ref[h],
                            preferred_element_type=jnp.float32)        # (tq, D)

    # out_proj bias + residual add + LayerNorm (post-norm), all fused.
    z = xq.astype(jnp.float32) + acc + bo_ref[...].astype(jnp.float32)
    mu = jnp.mean(z, axis=-1, keepdims=True)
    var = jnp.mean((z - mu) ** 2, axis=-1, keepdims=True)
    out = (z - mu) * jax.lax.rsqrt(var + eps)
    out = out * g_ref[...].astype(jnp.float32) + bn_ref[...].astype(jnp.float32)
    o_ref[0] = out.astype(o_ref.dtype)


def _ffn_block_kernel(x_ref, w1_ref, b1_ref, w2_ref, b2_ref, g_ref, bn_ref,
                      o_ref, acc_ref, *, eps):
    # Grid: (M//tm, FF//tff).  x: (tm, D) resident across f; w1 chunk (D, tff);
    # w2 chunk (tff, D); acc: (tm, D) f32.  The (tm, FF) intermediate never
    # materializes — only one (tm, tff) chunk is live per step.
    f = pl.program_id(1)

    @pl.when(f == 0)
    def _():
        acc_ref[...] = jnp.zeros_like(acc_ref)

    x = x_ref[...]
    w1 = w1_ref[...]
    w2 = w2_ref[...]
    h = (jnp.dot(x, w1, preferred_element_type=jnp.float32)
         + b1_ref[...].astype(jnp.float32))
    h = jnp.maximum(h, 0.0)
    acc_ref[...] += jnp.dot(h.astype(w2.dtype), w2,
                            preferred_element_type=jnp.float32)

    @pl.when(f == pl.num_programs(1) - 1)
    def _():
        z = x.astype(jnp.float32) + acc_ref[...] + b2_ref[...].astype(jnp.float32)
        mu = jnp.mean(z, axis=-1, keepdims=True)
        var = jnp.mean((z - mu) ** 2, axis=-1, keepdims=True)
        out = (z - mu) * jax.lax.rsqrt(var + eps)
        out = (out * g_ref[...].astype(jnp.float32)
               + bn_ref[...].astype(jnp.float32))
        o_ref[...] = out.astype(o_ref.dtype)


def _pool_classifier_kernel(x_ref, w1_ref, b1_ref, w2_ref, b2_ref,
                            w3_ref, b3_ref, o_ref, acc_ref, *, seq_len):
    # Streams (B, ts, D) chunks over S; acc: (B, D) partial sum; classifier
    # GEMMs + sigmoid run only at the last chunk.
    s = pl.program_id(0)

    @pl.when(s == 0)
    def _():
        acc_ref[...] = jnp.zeros_like(acc_ref)

    acc_ref[...] += jnp.sum(x_ref[...].astype(jnp.float32), axis=1)

    @pl.when(s == pl.num_programs(0) - 1)
    def _():
        pooled = acc_ref[...] * (1.0 / seq_len)                        # (B, D)
        w1 = w1_ref[...]
        h = (jnp.dot(pooled.astype(w1.dtype), w1,
                     preferred_element_type=jnp.float32)
             + b1_ref[...].astype(jnp.float32))
        h = jnp.maximum(h, 0.0)
        w2 = w2_ref[...]
        h = (jnp.dot(h.astype(w2.dtype), w2,
                     preferred_element_type=jnp.float32)
             + b2_ref[...].astype(jnp.float32))
        h = jnp.maximum(h, 0.0)
        w3 = w3_ref[...]
        y = (jnp.dot(h.astype(w3.dtype), w3,
                     preferred_element_type=jnp.float32)
             + b3_ref[...].astype(jnp.float32))
        o_ref[...] = jax.nn.sigmoid(y).astype(o_ref.dtype)


# ----------------------------- Pallas wrappers ------------------------------ #

def pallas_embed(x, w, b, pe):
    """x: (B, C, T) channels-first; w: (C, D); b: (D,); pe: (T, D) -> (B, T, D)."""
    B, C, T = x.shape
    D = w.shape[1]
    return pl.pallas_call(
        _embed_kernel,
        out_shape=jax.ShapeDtypeStruct((B, T, D), x.dtype),
        grid=(B,),
        in_specs=[
            pl.BlockSpec((1, C, T), lambda bi: (bi, 0, 0)),
            pl.BlockSpec((C, D), lambda bi: (0, 0)),
            pl.BlockSpec((1, D), lambda bi: (0, 0)),
            pl.BlockSpec((T, D), lambda bi: (0, 0)),
        ],
        out_specs=pl.BlockSpec((1, T, D), lambda bi: (bi, 0, 0)),
        compiler_params=pltpu.CompilerParams(
            dimension_semantics=("parallel",),
            vmem_limit_bytes=_vmem_limit_bytes(),
        ),
    )(x, w, b.reshape(1, D), pe)


def pallas_mha_block(x, wq, wk, wv, bq, bk, bv, wo, bo, gamma, beta,
                     *, nhead, eps=1e-5):
    """Fused QKV proj + per-head attention + out_proj + residual + LayerNorm."""
    B, S, D = x.shape
    dh = D // nhead
    tq = _pick_tile(S)
    nq = S // tq
    kernel = functools.partial(_mha_block_kernel, nhead=nhead, eps=eps)
    return pl.pallas_call(
        kernel,
        out_shape=jax.ShapeDtypeStruct((B, S, D), x.dtype),
        grid=(B, nq),
        in_specs=[
            pl.BlockSpec((1, tq, D), lambda b, qi: (b, qi, 0)),      # query rows
            pl.BlockSpec((1, S, D), lambda b, qi: (b, 0, 0)),        # K/V source
            pl.BlockSpec((nhead, D, dh), lambda b, qi: (0, 0, 0)),   # wq
            pl.BlockSpec((nhead, D, dh), lambda b, qi: (0, 0, 0)),   # wk
            pl.BlockSpec((nhead, D, dh), lambda b, qi: (0, 0, 0)),   # wv
            pl.BlockSpec((nhead, 1, dh), lambda b, qi: (0, 0, 0)),   # bq
            pl.BlockSpec((nhead, 1, dh), lambda b, qi: (0, 0, 0)),   # bk
            pl.BlockSpec((nhead, 1, dh), lambda b, qi: (0, 0, 0)),   # bv
            pl.BlockSpec((nhead, dh, D), lambda b, qi: (0, 0, 0)),   # wo
            pl.BlockSpec((1, D), lambda b, qi: (0, 0)),              # bo
            pl.BlockSpec((1, D), lambda b, qi: (0, 0)),              # ln gamma
            pl.BlockSpec((1, D), lambda b, qi: (0, 0)),              # ln beta
        ],
        out_specs=pl.BlockSpec((1, tq, D), lambda b, qi: (b, qi, 0)),
        scratch_shapes=[
            pltpu.VMEM((nhead, S, dh), jnp.float32),                 # K per head
            pltpu.VMEM((nhead, S, dh), jnp.float32),                 # V per head
        ],
        compiler_params=pltpu.CompilerParams(
            dimension_semantics=("parallel", "arbitrary"),
            vmem_limit_bytes=_vmem_limit_bytes(),
        ),
    )(x, x, wq, wk, wv, bq, bk, bv, wo,
      bo.reshape(1, D), gamma.reshape(1, D), beta.reshape(1, D))


def pallas_ffn_block(x, w1, b1, w2, b2, gamma, beta, *, eps=1e-5):
    """x: (M, D) -> LN(x + lin2(relu(lin1(x)))); FF-chunked accumulation."""
    M, D = x.shape
    FF = w1.shape[1]
    tm = _pick_tile(M, (256, 128))
    tff = _pick_tile(FF)
    kernel = functools.partial(_ffn_block_kernel, eps=eps)
    return pl.pallas_call(
        kernel,
        out_shape=jax.ShapeDtypeStruct((M, D), x.dtype),
        grid=(M // tm, FF // tff),
        in_specs=[
            pl.BlockSpec((tm, D), lambda i, f: (i, 0)),
            pl.BlockSpec((D, tff), lambda i, f: (0, f)),
            pl.BlockSpec((1, tff), lambda i, f: (0, f)),
            pl.BlockSpec((tff, D), lambda i, f: (f, 0)),
            pl.BlockSpec((1, D), lambda i, f: (0, 0)),
            pl.BlockSpec((1, D), lambda i, f: (0, 0)),
            pl.BlockSpec((1, D), lambda i, f: (0, 0)),
        ],
        out_specs=pl.BlockSpec((tm, D), lambda i, f: (i, 0)),
        scratch_shapes=[pltpu.VMEM((tm, D), jnp.float32)],
        compiler_params=pltpu.CompilerParams(
            dimension_semantics=("parallel", "arbitrary"),
            vmem_limit_bytes=_vmem_limit_bytes(),
        ),
    )(x, w1, b1.reshape(1, FF), w2, b2.reshape(1, D),
      gamma.reshape(1, D), beta.reshape(1, D))


def pallas_pool_classifier(x, w1, b1, w2, b2, w3, b3):
    """x: (B, S, D) -> (B, 1). Streamed mean pool + 3 fused classifier linears."""
    B, S, D = x.shape
    FF = w1.shape[1]
    H2 = w2.shape[1]
    ts = _pick_tile(S)
    kernel = functools.partial(_pool_classifier_kernel, seq_len=S)
    return pl.pallas_call(
        kernel,
        out_shape=jax.ShapeDtypeStruct((B, 1), x.dtype),
        grid=(S // ts,),
        in_specs=[
            pl.BlockSpec((B, ts, D), lambda s: (0, s, 0)),
            pl.BlockSpec((D, FF), lambda s: (0, 0)),
            pl.BlockSpec((1, FF), lambda s: (0, 0)),
            pl.BlockSpec((FF, H2), lambda s: (0, 0)),
            pl.BlockSpec((1, H2), lambda s: (0, 0)),
            pl.BlockSpec((H2, 1), lambda s: (0, 0)),
            pl.BlockSpec((1, 1), lambda s: (0, 0)),
        ],
        out_specs=pl.BlockSpec((B, 1), lambda s: (0, 0)),
        scratch_shapes=[pltpu.VMEM((B, D), jnp.float32)],
        compiler_params=pltpu.CompilerParams(
            dimension_semantics=("arbitrary",),
            vmem_limit_bytes=_vmem_limit_bytes(),
        ),
    )(x, w1, b1.reshape(1, FF), w2, b2.reshape(1, H2), w3, b3.reshape(1, 1))


# ------------------------------ Model / params ------------------------------ #

def make_positional_encoding(max_len, d_model):
    position = jnp.arange(max_len, dtype=jnp.float32)[:, None]
    div_term = jnp.exp(
        jnp.arange(0, d_model, 2, dtype=jnp.float32)
        * (-math.log(10000.0) / d_model)
    )
    pe = jnp.zeros((max_len, d_model), dtype=jnp.float32)
    pe = pe.at[:, 0::2].set(jnp.sin(position * div_term))
    pe = pe.at[:, 1::2].set(jnp.cos(position * div_term))
    return pe  # (max_len, d_model)


def init_params(key, *, mel_channels, mfcc_channels, d_model, nhead,
                num_layers, dim_feedforward, max_len=5000, dtype=jnp.float32):
    # Weights are generated directly in pre-transposed (K, N) layout, and the
    # attention projections head-major ((nhead, D, dh) / (nhead, dh, D)) so the
    # kernels never need XLA-side transposes or lane-cutting head slices.
    # Set dtype=jnp.bfloat16 for bf16 MXU operands on v6e/v7x (keep f32 here
    # for exact PyTorch-eval parity).
    dh = d_model // nhead
    q_scale = 1.0 / math.sqrt(dh)

    def dense(k, n_in, n_out, scale=0.02):
        return (scale * jax.random.normal(k, (n_in, n_out),
                                          dtype=jnp.float32)).astype(dtype)

    keys = jax.random.split(key, 4 + num_layers)
    params = {
        "pe": make_positional_encoding(max_len, d_model).astype(dtype),
        "mel_w": dense(keys[0], mel_channels, d_model),
        "mel_b": jnp.zeros((d_model,), dtype),
        "mfcc_w": dense(keys[1], mfcc_channels, d_model),
        "mfcc_b": jnp.zeros((d_model,), dtype),
    }

    layers = []
    for li in range(num_layers):
        lk = jax.random.split(keys[4 + li], 6)
        wq = 0.02 * jax.random.normal(lk[0], (nhead, d_model, dh), jnp.float32)
        wk = 0.02 * jax.random.normal(lk[1], (nhead, d_model, dh), jnp.float32)
        wv = 0.02 * jax.random.normal(lk[2], (nhead, d_model, dh), jnp.float32)
        wo = 0.02 * jax.random.normal(lk[3], (nhead, dh, d_model), jnp.float32)
        # Fold the 1/sqrt(dh) attention scale into the Q projection (weight+bias).
        wq = wq * q_scale
        bq = jnp.zeros((nhead, 1, dh), jnp.float32) * q_scale
        layers.append({
            "wq": wq.astype(dtype), "wk": wk.astype(dtype), "wv": wv.astype(dtype),
            "bq": bq.astype(dtype),
            "bk": jnp.zeros((nhead, 1, dh), dtype),
            "bv": jnp.zeros((nhead, 1, dh), dtype),
            "wo": wo.astype(dtype),
            "bo": jnp.zeros((d_model,), dtype),
            "lin1_w": dense(lk[4], d_model, dim_feedforward),
            "lin1_b": jnp.zeros((dim_feedforward,), dtype),
            "lin2_w": dense(lk[5], dim_feedforward, d_model),
            "lin2_b": jnp.zeros((d_model,), dtype),
            "norm1_g": jnp.ones((d_model,), dtype),
            "norm1_b": jnp.zeros((d_model,), dtype),
            "norm2_g": jnp.ones((d_model,), dtype),
            "norm2_b": jnp.zeros((d_model,), dtype),
        })
    params["layers"] = layers

    ck = jax.random.split(keys[2], 3)
    params["cls1_w"] = dense(ck[0], d_model, dim_feedforward)
    params["cls1_b"] = jnp.zeros((dim_feedforward,), dtype)
    params["cls2_w"] = dense(ck[1], dim_feedforward, 256)  # hardcoded 256 as in module
    params["cls2_b"] = jnp.zeros((256,), dtype)
    params["cls3_w"] = dense(ck[2], 256, 1)
    params["cls3_b"] = jnp.zeros((1,), dtype)
    return params


def audio_transformer_forward(params, mel_spec, mfcc, *, nhead):
    """mel_spec: (B, 1, C_mel, T_mel); mfcc: (B, C_mfcc, T_mfcc) -> (B, 1)."""
    mel = mel_spec[:, 0]                          # (B, C_mel, T_mel)
    B = mel.shape[0]
    T_mel = mel.shape[2]
    T_mf = mfcc.shape[2]
    D = params["mel_w"].shape[1]                  # static: from weight shape

    # Embedding + positional encoding, fused (in-kernel channel contraction).
    mel_e = pallas_embed(mel, params["mel_w"], params["mel_b"],
                         params["pe"][:T_mel])
    mfc_e = pallas_embed(mfcc, params["mfcc_w"], params["mfcc_b"],
                         params["pe"][:T_mf])

    x = jnp.concatenate([mel_e, mfc_e], axis=1)   # (B, S, D)
    S = T_mel + T_mf

    for lp in params["layers"]:
        # Fused: QKV proj + per-head attention + out_proj + residual + LN.
        x1 = pallas_mha_block(x, lp["wq"], lp["wk"], lp["wv"],
                              lp["bq"], lp["bk"], lp["bv"],
                              lp["wo"], lp["bo"],
                              lp["norm1_g"], lp["norm1_b"], nhead=nhead)
        # Fused: lin1 + ReLU + lin2 (FF-chunked) + residual + LN.
        x = pallas_ffn_block(x1.reshape(B * S, D),
                             lp["lin1_w"], lp["lin1_b"],
                             lp["lin2_w"], lp["lin2_b"],
                             lp["norm2_g"], lp["norm2_b"]).reshape(B, S, D)

    # Streamed mean pool + classifier (dropouts are identity at inference).
    out = pallas_pool_classifier(x,
                                 params["cls1_w"], params["cls1_b"],
                                 params["cls2_w"], params["cls2_b"],
                                 params["cls3_w"], params["cls3_b"])
    return out                                    # (B, 1)


# ---------------------------------- main ----------------------------------- #

if __name__ == "__main__":
    # Small, forward-consistent hyperparameters.  d_model kept at 128 so every
    # output store is lane-dense (biggest single lever per review).
    B = 2
    MEL_CH, MFCC_CH = 16, 8
    T_MEL, T_MFCC = 8, 8
    D_MODEL, NHEAD, NUM_LAYERS, DIM_FF = 128, 4, 2, 256

    key = jax.random.PRNGKey(0)
    k_mel, k_mfcc, k_params = jax.random.split(key, 3)

    mel_spec = jax.random.normal(k_mel, (B, 1, MEL_CH, T_MEL), dtype=jnp.float32)
    mfcc = jax.random.normal(k_mfcc, (B, MFCC_CH, T_MFCC), dtype=jnp.float32)

    params = init_params(
        k_params,
        mel_channels=MEL_CH,
        mfcc_channels=MFCC_CH,
        d_model=D_MODEL,
        nhead=NHEAD,
        num_layers=NUM_LAYERS,
        dim_feedforward=DIM_FF,
        max_len=64,
    )

    fwd = jax.jit(functools.partial(audio_transformer_forward, nhead=NHEAD))
    out = fwd(params, mel_spec, mfcc)
    out = jax.block_until_ready(out)

    assert out.shape == (B, 1), out.shape
    assert bool(jnp.all((out >= 0.0) & (out <= 1.0)))
    print("KERNEL_OK")
</pallas_src>

<mosaic_0001>
module attributes {stable_mosaic.version = 11 : i64} {
  func.func @_embed_kernel(%arg0: i32, %arg1: memref<1x8x8xf32, #tpu.memory_space<vmem>>, %arg2: memref<8x128xf32, #tpu.memory_space<vmem>>, %arg3: memref<1x128xf32, #tpu.memory_space<vmem>>, %arg4: memref<8x128xf32, #tpu.memory_space<vmem>>, %arg5: memref<1x8x128xf32, #tpu.memory_space<vmem>>) attributes {dimension_semantics = [#tpu.dimension_semantics<parallel>], iteration_bounds = array<i64: 2>, scalar_prefetch = 0 : i64, scratch_operands = 0 : i64, tpu.core_type = #tpu.core_type<tc>, window_params = [{transform_indices = @transform_0, window_bounds = array<i64: 1, 8, 8>}, {pipeline_mode = #tpu.pipeline_mode<synchronous>, transform_indices = @transform_1, window_bounds = array<i64: 8, 128>}, {pipeline_mode = #tpu.pipeline_mode<synchronous>, transform_indices = @transform_2, window_bounds = array<i64: 1, 128>}, {pipeline_mode = #tpu.pipeline_mode<synchronous>, transform_indices = @transform_3, window_bounds = array<i64: 8, 128>}, {transform_indices = @transform_4, window_bounds = array<i64: 1, 8, 128>}]} {
    %c0 = arith.constant 0 : index
    %c0_0 = arith.constant 0 : index
    %c0_1 = arith.constant 0 : index
    %0 = vector.load %arg1[%c0, %c0_0, %c0_1] : memref<1x8x8xf32, #tpu.memory_space<vmem>>, vector<1x8x8xf32>
    %1 = vector.shape_cast %0 : vector<1x8x8xf32> to vector<8x8xf32>
    %c0_2 = arith.constant 0 : index
    %c0_3 = arith.constant 0 : index
    %2 = vector.load %arg2[%c0_2, %c0_3] : memref<8x128xf32, #tpu.memory_space<vmem>>, vector<8x128xf32>
    %cst = arith.constant dense<0.000000e+00> : vector<8x128xf32>
    %3 = tpu.matmul %1, %2, %cst {dimension_numbers = #tpu.dot_dimension_numbers<[0], [0], [1], [1], [0, 1, 1, 1], [], []>} : vector<8x8xf32>, vector<8x128xf32>, vector<8x128xf32> -> vector<8x128xf32>
    %c0_4 = arith.constant 0 : index
    %c0_5 = arith.constant 0 : index
    %4 = vector.load %arg3[%c0_4, %c0_5] : memref<1x128xf32, #tpu.memory_space<vmem>>, vector<1x128xf32>
    %5 = vector.broadcast %4 : vector<1x128xf32> to vector<8x128xf32>
    %6 = arith.addf %3, %5 : vector<8x128xf32>
    %c0_6 = arith.constant 0 : index
    %c0_7 = arith.constant 0 : index
    %7 = vector.load %arg4[%c0_6, %c0_7] : memref<8x128xf32, #tpu.memory_space<vmem>>, vector<8x128xf32>
    %8 = arith.addf %6, %7 : vector<8x128xf32>
    %c0_8 = arith.constant 0 : index
    %c0_9 = arith.constant 0 : index
    %c0_10 = arith.constant 0 : index
    %9 = vector.load %arg5[%c0_8, %c0_9, %c0_10] : memref<1x8x128xf32, #tpu.memory_space<vmem>>, vector<1x8x128xf32>
    %10 = vector.shape_cast %9 : vector<1x8x128xf32> to vector<8x128xf32>
    %11 = vector.shape_cast %8 : vector<8x128xf32> to vector<1x8x128xf32>
    tpu.vector_store %arg5[%c0_8, %c0_9, %c0_10], %11 {strides = array<i32>} : memref<1x8x128xf32, #tpu.memory_space<vmem>>, vector<1x8x128xf32>,
    return
  }
  func.func @transform_0(%arg0: i32) -> (i32, i32, i32) {
    %c0_i32 = arith.constant 0 : i32
    %c0_i32_0 = arith.constant 0 : i32
    %c0_i32_1 = arith.constant 0 : i32
    return %arg0, %c0_i32, %c0_i32_0 : i32, i32, i32
  }
  func.func @transform_1(%arg0: i32) -> (i32, i32) {
    %c0_i32 = arith.constant 0 : i32
    %c0_i32_0 = arith.constant 0 : i32
    %c0_i32_1 = arith.constant 0 : i32
    return %c0_i32, %c0_i32_0 : i32, i32
  }
  func.func @transform_2(%arg0: i32) -> (i32, i32) {
    %c0_i32 = arith.constant 0 : i32
    %c0_i32_0 = arith.constant 0 : i32
    %c0_i32_1 = arith.constant 0 : i32
    return %c0_i32, %c0_i32_0 : i32, i32
  }
  func.func @transform_3(%arg0: i32) -> (i32, i32) {
    %c0_i32 = arith.constant 0 : i32
    %c0_i32_0 = arith.constant 0 : i32
    %c0_i32_1 = arith.constant 0 : i32
    return %c0_i32, %c0_i32_0 : i32, i32
  }
  func.func @transform_4(%arg0: i32) -> (i32, i32, i32) {
    %c0_i32 = arith.constant 0 : i32
    %c0_i32_0 = arith.constant 0 : i32
    %c0_i32_1 = arith.constant 0 : i32
    return %arg0, %c0_i32, %c0_i32_0 : i32, i32, i32
  }
}

module attributes {stable_mosaic.version = 11 : i64} {
  func.func @_embed_kernel(%arg0: i32, %arg1: memref<1x16x8xf32, #tpu.memory_space<vmem>>, %arg2: memref<16x128xf32, #tpu.memory_space<vmem>>, %arg3: memref<1x128xf32, #tpu.memory_space<vmem>>, %arg4: memref<8x128xf32, #tpu.memory_space<vmem>>, %arg5: memref<1x8x128xf32, #tpu.memory_space<vmem>>) attributes {dimension_semantics = [#tpu.dimension_semantics<parallel>], iteration_bounds = array<i64: 2>, scalar_prefetch = 0 : i64, scratch_operands = 0 : i64, tpu.core_type = #tpu.core_type<tc>, window_params = [{transform_indices = @transform_0, window_bounds = array<i64: 1, 16, 8>}, {pipeline_mode = #tpu.pipeline_mode<synchronous>, transform_indices = @transform_1, window_bounds = array<i64: 16, 128>}, {pipeline_mode = #tpu.pipeline_mode<synchronous>, transform_indices = @transform_2, window_bounds = array<i64: 1, 128>}, {pipeline_mode = #tpu.pipeline_mode<synchronous>, transform_indices = @transform_3, window_bounds = array<i64: 8, 128>}, {transform_indices = @transform_4, window_bounds = array<i64: 1, 8, 128>}]} {
    %c0 = arith.constant 0 : index
    %c0_0 = arith.constant 0 : index
    %c0_1 = arith.constant 0 : index
    %0 = vector.load %arg1[%c0, %c0_0, %c0_1] : memref<1x16x8xf32, #tpu.memory_space<vmem>>, vector<1x16x8xf32>
    %1 = vector.shape_cast %0 : vector<1x16x8xf32> to vector<16x8xf32>
    %c0_2 = arith.constant 0 : index
    %c0_3 = arith.constant 0 : index
    %2 = vector.load %arg2[%c0_2, %c0_3] : memref<16x128xf32, #tpu.memory_space<vmem>>, vector<16x128xf32>
    %cst = arith.constant dense<0.000000e+00> : vector<8x128xf32>
    %3 = tpu.matmul %1, %2, %cst {dimension_numbers = #tpu.dot_dimension_numbers<[0], [0], [1], [1], [0, 1, 1, 1], [], []>} : vector<16x8xf32>, vector<16x128xf32>, vector<8x128xf32> -> vector<8x128xf32>
    %c0_4 = arith.constant 0 : index
    %c0_5 = arith.constant 0 : index
    %4 = vector.load %arg3[%c0_4, %c0_5] : memref<1x128xf32, #tpu.memory_space<vmem>>, vector<1x128xf32>
    %5 = vector.broadcast %4 : vector<1x128xf32> to vector<8x128xf32>
    %6 = arith.addf %3, %5 : vector<8x128xf32>
    %c0_6 = arith.constant 0 : index
    %c0_7 = arith.constant 0 : index
    %7 = vector.load %arg4[%c0_6, %c0_7] : memref<8x128xf32, #tpu.memory_space<vmem>>, vector<8x128xf32>
    %8 = arith.addf %6, %7 : vector<8x128xf32>
    %c0_8 = arith.constant 0 : index
    %c0_9 = arith.constant 0 : index
    %c0_10 = arith.constant 0 : index
    %9 = vector.load %arg5[%c0_8, %c0_9, %c0_10] : memref<1x8x128xf32, #tpu.memory_space<vmem>>, vector<1x8x128xf32>
    %10 = vector.shape_cast %9 : vector<1x8x128xf32> to vector<8x128xf32>
    %11 = vector.shape_cast %8 : vector<8x128xf32> to vector<1x8x128xf32>
    tpu.vector_store %arg5[%c0_8, %c0_9, %c0_10], %11 {strides = array<i32>} : memref<1x8x128xf32, #tpu.memory_space<vmem>>, vector<1x8x128xf32>,
    return
  }
  func.func @transform_0(%arg0: i32) -> (i32, i32, i32) {
    %c0_i32 = arith.constant 0 : i32
    %c0_i32_0 = arith.constant 0 : i32
    %c0_i32_1 = arith.constant 0 : i32
    return %arg0, %c0_i32, %c0_i32_0 : i32, i32, i32
  }
  func.func @transform_1(%arg0: i32) -> (i32, i32) {
    %c0_i32 = arith.constant 0 : i32
    %c0_i32_0 = arith.constant 0 : i32
    %c0_i32_1 = arith.constant 0 : i32
    return %c0_i32, %c0_i32_0 : i32, i32
  }
  func.func @transform_2(%arg0: i32) -> (i32, i32) {
    %c0_i32 = arith.constant 0 : i32
    %c0_i32_0 = arith.constant 0 : i32
    %c0_i32_1 = arith.constant 0 : i32
    return %c0_i32, %c0_i32_0 : i32, i32
  }
  func.func @transform_3(%arg0: i32) -> (i32, i32) {
    %c0_i32 = arith.constant 0 : i32
    %c0_i32_0 = arith.constant 0 : i32
    %c0_i32_1 = arith.constant 0 : i32
    return %c0_i32, %c0_i32_0 : i32, i32
  }
  func.func @transform_4(%arg0: i32) -> (i32, i32, i32) {
    %c0_i32 = arith.constant 0 : i32
    %c0_i32_0 = arith.constant 0 : i32
    %c0_i32_1 = arith.constant 0 : i32
    return %arg0, %c0_i32, %c0_i32_0 : i32, i32, i32
  }
}

module attributes {stable_mosaic.version = 11 : i64} {
  func.func @_mha_block_kernel(%arg0: i32, %arg1: i32, %arg2: memref<1x16x128xf32, #tpu.memory_space<vmem>>, %arg3: memref<1x16x128xf32, #tpu.memory_space<vmem>>, %arg4: memref<4x128x32xf32, #tpu.memory_space<vmem>>, %arg5: memref<4x128x32xf32, #tpu.memory_space<vmem>>, %arg6: memref<4x128x32xf32, #tpu.memory_space<vmem>>, %arg7: memref<4x1x32xf32, #tpu.memory_space<vmem>>, %arg8: memref<4x1x32xf32, #tpu.memory_space<vmem>>, %arg9: memref<4x1x32xf32, #tpu.memory_space<vmem>>, %arg10: memref<4x32x128xf32, #tpu.memory_space<vmem>>, %arg11: memref<1x128xf32, #tpu.memory_space<vmem>>, %arg12: memref<1x128xf32, #tpu.memory_space<vmem>>, %arg13: memref<1x128xf32, #tpu.memory_space<vmem>>, %arg14: memref<1x16x128xf32, #tpu.memory_space<vmem>>, %arg15: memref<4x16x32xf32, #tpu.memory_space<vmem>>, %arg16: memref<4x16x32xf32, #tpu.memory_space<vmem>>) attributes {dimension_semantics = [#tpu.dimension_semantics<parallel>, #tpu.dimension_semantics<arbitrary>], iteration_bounds = array<i64: 2, 1>, scalar_prefetch = 0 : i64, scratch_operands = 2 : i64, tpu.core_type = #tpu.core_type<tc>, window_params = [{transform_indices = @transform_0, window_bounds = array<i64: 1, 16, 128>}, {transform_indices = @transform_1, window_bounds = array<i64: 1, 16, 128>}, {pipeline_mode = #tpu.pipeline_mode<synchronous>, transform_indices = @transform_2, window_bounds = array<i64: 4, 128, 32>}, {pipeline_mode = #tpu.pipeline_mode<synchronous>, transform_indices = @transform_3, window_bounds = array<i64: 4, 128, 32>}, {pipeline_mode = #tpu.pipeline_mode<synchronous>, transform_indices = @transform_4, window_bounds = array<i64: 4, 128, 32>}, {pipeline_mode = #tpu.pipeline_mode<synchronous>, transform_indices = @transform_5, window_bounds = array<i64: 4, 1, 32>}, {pipeline_mode = #tpu.pipeline_mode<synchronous>, transform_indices = @transform_6, window_bounds = array<i64: 4, 1, 32>}, {pipeline_mode = #tpu.pipeline_mode<synchronous>, transform_indices = @transform_7, window_bounds = array<i64: 4, 1, 32>}, {pipeline_mode = #tpu.pipeline_mode<synchronous>, transform_indices = @transform_8, window_bounds = array<i64: 4, 32, 128>}, {pipeline_mode = #tpu.pipeline_mode<synchronous>, transform_indices = @transform_9, window_bounds = array<i64: 1, 128>}, {pipeline_mode = #tpu.pipeline_mode<synchronous>, transform_indices = @transform_10, window_bounds = array<i64: 1, 128>}, {pipeline_mode = #tpu.pipeline_mode<synchronous>, transform_indices = @transform_11, window_bounds = array<i64: 1, 128>}, {transform_indices = @transform_12, window_bounds = array<i64: 1, 16, 128>}]} {
    %c0_i32 = arith.constant 0 : i32
    %0 = arith.cmpi eq, %arg1, %c0_i32 : i32
    %1 = arith.extui %0 : i1 to i32
    %c0_i32_0 = arith.constant 0 : i32
    %2 = arith.cmpi ne, %1, %c0_i32_0 : i32
    scf.if %2 {
      %c0_98 = arith.constant 0 : index
      %c0_99 = arith.constant 0 : index
      %c0_100 = arith.constant 0 : index
      %141 = vector.load %arg3[%c0_98, %c0_99, %c0_100] : memref<1x16x128xf32, #tpu.memory_space<vmem>>, vector<1x16x128xf32>
      %142 = vector.shape_cast %141 : vector<1x16x128xf32> to vector<16x128xf32>
      %c0_101 = arith.constant 0 : index
      %c0_102 = arith.constant 0 : index
      %c0_103 = arith.constant 0 : index
      %143 = vector.load %arg5[%c0_101, %c0_102, %c0_103] : memref<4x128x32xf32, #tpu.memory_space<vmem>>, vector<1x128x32xf32>
      %144 = vector.shape_cast %143 : vector<1x128x32xf32> to vector<128x32xf32>
      %cst_104 = arith.constant dense<0.000000e+00> : vector<16x32xf32>
      %145 = tpu.matmul %142, %144, %cst_104 {dimension_numbers = #tpu.dot_dimension_numbers<[1], [0], [0], [1], [0, 0, 1, 1], [], []>} : vector<16x128xf32>, vector<128x32xf32>, vector<16x32xf32> -> vector<16x32xf32>
      %c0_105 = arith.constant 0 : index
      %c0_106 = arith.constant 0 : index
      %c0_107 = arith.constant 0 : index
      %146 = vector.load %arg8[%c0_105, %c0_106, %c0_107] : memref<4x1x32xf32, #tpu.memory_space<vmem>>, vector<1x1x32xf32>
      %147 = vector.shape_cast %146 : vector<1x1x32xf32> to vector<1x32xf32>
      %148 = vector.broadcast %147 : vector<1x32xf32> to vector<16x32xf32>
      %149 = arith.addf %145, %148 : vector<16x32xf32>
      %c0_108 = arith.constant 0 : index
      %c0_109 = arith.constant 0 : index
      %c0_110 = arith.constant 0 : index
      %150 = vector.load %arg15[%c0_108, %c0_109, %c0_110] : memref<4x16x32xf32, #tpu.memory_space<vmem>>, vector<1x16x32xf32>
      %151 = vector.shape_cast %150 : vector<1x16x32xf32> to vector<16x32xf32>
      %152 = vector.shape_cast %149 : vector<16x32xf32> to vector<1x16x32xf32>
      tpu.vector_store %arg15[%c0_108, %c0_109, %c0_110], %152 {strides = array<i32>} : memref<4x16x32xf32, #tpu.memory_space<vmem>>, vector<1x16x32xf32>,
      %c0_111 = arith.constant 0 : index
      %c0_112 = arith.constant 0 : index
      %c0_113 = arith.constant 0 : index
      %153 = vector.load %arg6[%c0_111, %c0_112, %c0_113] : memref<4x128x32xf32, #tpu.memory_space<vmem>>, vector<1x128x32xf32>
      %154 = vector.shape_cast %153 : vector<1x128x32xf32> to vector<128x32xf32>
      %cst_114 = arith.constant dense<0.000000e+00> : vector<16x32xf32>
      %155 = tpu.matmul %142, %154, %cst_114 {dimension_numbers = #tpu.dot_dimension_numbers<[1], [0], [0], [1], [0, 0, 1, 1], [], []>} : vector<16x128xf32>, vector<128x32xf32>, vector<16x32xf32> -> vector<16x32xf32>
      %c0_115 = arith.constant 0 : index
      %c0_116 = arith.constant 0 : index
      %c0_117 = arith.constant 0 : index
      %156 = vector.load %arg9[%c0_115, %c0_116, %c0_117] : memref<4x1x32xf32, #tpu.memory_space<vmem>>, vector<1x1x32xf32>
      %157 = vector.shape_cast %156 : vector<1x1x32xf32> to vector<1x32xf32>
      %158 = vector.broadcast %157 : vector<1x32xf32> to vector<16x32xf32>
      %159 = arith.addf %155, %158 : vector<16x32xf32>
      %c0_118 = arith.constant 0 : index
      %c0_119 = arith.constant 0 : index
      %c0_120 = arith.constant 0 : index
      %160 = vector.load %arg16[%c0_118, %c0_119, %c0_120] : memref<4x16x32xf32, #tpu.memory_space<vmem>>, vector<1x16x32xf32>
      %161 = vector.shape_cast %160 : vector<1x16x32xf32> to vector<16x32xf32>
      %162 = vector.shape_cast %159 : vector<16x32xf32> to vector<1x16x32xf32>
      tpu.vector_store %arg16[%c0_118, %c0_119, %c0_120], %162 {strides = array<i32>} : memref<4x16x32xf32, #tpu.memory_space<vmem>>, vector<1x16x32xf32>,
      %c1_121 = arith.constant 1 : index
      %c0_122 = arith.constant 0 : index
      %c0_123 = arith.constant 0 : index
      %163 = vector.load %arg5[%c1_121, %c0_122, %c0_123] : memref<4x128x32xf32, #tpu.memory_space<vmem>>, vector<1x128x32xf32>
      %164 = vector.shape_cast %163 : vector<1x128x32xf32> to vector<128x32xf32>
      %cst_124 = arith.constant dense<0.000000e+00> : vector<16x32xf32>
      %165 = tpu.matmul %142, %164, %cst_124 {dimension_numbers = #tpu.dot_dimension_numbers<[1], [0], [0], [1], [0, 0, 1, 1], [], []>} : vector<16x128xf32>, vector<128x32xf32>, vector<16x32xf32> -> vector<16x32xf32>
      %c1_125 = arith.constant 1 : index
      %c0_126 = arith.constant 0 : index
      %c0_127 = arith.constant 0 : index
      %166 = vector.load %arg8[%c1_125, %c0_126, %c0_127] : memref<4x1x32xf32, #tpu.memory_space<vmem>>, vector<1x1x32xf32>
      %167 = vector.shape_cast %166 : vector<1x1x32xf32> to vector<1x32xf32>
      %168 = vector.broadcast %167 : vector<1x32xf32> to vector<16x32xf32>
      %169 = arith.addf %165, %168 : vector<16x32xf32>
      %c1_128 = arith.constant 1 : index
      %c0_129 = arith.constant 0 : index
      %c0_130 = arith.constant 0 : index
      %170 = vector.load %arg15[%c1_128, %c0_129, %c0_130] : memref<4x16x32xf32, #tpu.memory_space<vmem>>, vector<1x16x32xf32>
      %171 = vector.shape_cast %170 : vector<1x16x32xf32> to vector<16x32xf32>
      %172 = vector.shape_cast %169 : vector<16x32xf32> to vector<1x16x32xf32>
      tpu.vector_store %arg15[%c1_128, %c0_129, %c0_130], %172 {strides = array<i32>} : memref<4x16x32xf32, #tpu.memory_space<vmem>>, vector<1x16x32xf32>,
      %c1_131 = arith.constant 1 : index
      %c0_132 = arith.constant 0 : index
      %c0_133 = arith.constant 0 : index
      %173 = vector.load %arg6[%c1_131, %c0_132, %c0_133] : memref<4x128x32xf32, #tpu.memory_space<vmem>>, vector<1x128x32xf32>
      %174 = vector.shape_cast %173 : vector<1x128x32xf32> to vector<128x32xf32>
      %cst_134 = arith.constant dense<0.000000e+00> : vector<16x32xf32>
      %175 = tpu.matmul %142, %174, %cst_134 {dimension_numbers = #tpu.dot_dimension_numbers<[1], [0], [0], [1], [0, 0, 1, 1], [], []>} : vector<16x128xf32>, vector<128x32xf32>, vector<16x32xf32> -> vector<16x32xf32>
      %c1_135 = arith.constant 1 : index
      %c0_136 = arith.constant 0 : index
      %c0_137 = arith.constant 0 : index
      %176 = vector.load %arg9[%c1_135, %c0_136, %c0_137] : memref<4x1x32xf32, #tpu.memory_space<vmem>>, vector<1x1x32xf32>
      %177 = vector.shape_cast %176 : vector<1x1x32xf32> to vector<1x32xf32>
      %178 = vector.broadcast %177 : vector<1x32xf32> to vector<16x32xf32>
      %179 = arith.addf %175, %178 : vector<16x32xf32>
      %c1_138 = arith.constant 1 : index
      %c0_139 = arith.constant 0 : index
      %c0_140 = arith.constant 0 : index
      %180 = vector.load %arg16[%c1_138, %c0_139, %c0_140] : memref<4x16x32xf32, #tpu.memory_space<vmem>>, vector<1x16x32xf32>
      %181 = vector.shape_cast %180 : vector<1x16x32xf32> to vector<16x32xf32>
      %182 = vector.shape_cast %179 : vector<16x32xf32> to vector<1x16x32xf32>
      tpu.vector_store %arg16[%c1_138, %c0_139, %c0_140], %182 {strides = array<i32>} : memref<4x16x32xf32, #tpu.memory_space<vmem>>, vector<1x16x32xf32>,
      %c2_141 = arith.constant 2 : index
      %c0_142 = arith.constant 0 : index
      %c0_143 = arith.constant 0 : index
      %183 = vector.load %arg5[%c2_141, %c0_142, %c0_143] : memref<4x128x32xf32, #tpu.memory_space<vmem>>, vector<1x128x32xf32>
      %184 = vector.shape_cast %183 : vector<1x128x32xf32> to vector<128x32xf32>
      %cst_144 = arith.constant dense<0.000000e+00> : vector<16x32xf32>
      %185 = tpu.matmul %142, %184, %cst_144 {dimension_numbers = #tpu.dot_dimension_numbers<[1], [0], [0], [1], [0, 0, 1, 1], [], []>} : vector<16x128xf32>, vector<128x32xf32>, vector<16x32xf32> -> vector<16x32xf32>
      %c2_145 = arith.constant 2 : index
      %c0_146 = arith.constant 0 : index
      %c0_147 = arith.constant 0 : index
      %186 = vector.load %arg8[%c2_145, %c0_146, %c0_147] : memref<4x1x32xf32, #tpu.memory_space<vmem>>, vector<1x1x32xf32>
      %187 = vector.shape_cast %186 : vector<1x1x32xf32> to vector<1x32xf32>
      %188 = vector.broadcast %187 : vector<1x32xf32> to vector<16x32xf32>
      %189 = arith.addf %185, %188 : vector<16x32xf32>
      %c2_148 = arith.constant 2 : index
      %c0_149 = arith.constant 0 : index
      %c0_150 = arith.constant 0 : index
      %190 = vector.load %arg15[%c2_148, %c0_149, %c0_150] : memref<4x16x32xf32, #tpu.memory_space<vmem>>, vector<1x16x32xf32>
      %191 = vector.shape_cast %190 : vector<1x16x32xf32> to vector<16x32xf32>
      %192 = vector.shape_cast %189 : vector<16x32xf32> to vector<1x16x32xf32>
      tpu.vector_store %arg15[%c2_148, %c0_149, %c0_150], %192 {strides = array<i32>} : memref<4x16x32xf32, #tpu.memory_space<vmem>>, vector<1x16x32xf32>,
      %c2_151 = arith.constant 2 : index
      %c0_152 = arith.constant 0 : index
      %c0_153 = arith.constant 0 : index
      %193 = vector.load %arg6[%c2_151, %c0_152, %c0_153] : memref<4x128x32xf32, #tpu.memory_space<vmem>>, vector<1x128x32xf32>
      %194 = vector.shape_cast %193 : vector<1x128x32xf32> to vector<128x32xf32>
      %cst_154 = arith.constant dense<0.000000e+00> : vector<16x32xf32>
      %195 = tpu.matmul %142, %194, %cst_154 {dimension_numbers = #tpu.dot_dimension_numbers<[1], [0], [0], [1], [0, 0, 1, 1], [], []>} : vector<16x128xf32>, vector<128x32xf32>, vector<16x32xf32> -> vector<16x32xf32>
      %c2_155 = arith.constant 2 : index
      %c0_156 = arith.constant 0 : index
      %c0_157 = arith.constant 0 : index
      %196 = vector.load %arg9[%c2_155, %c0_156, %c0_157] : memref<4x1x32xf32, #tpu.memory_space<vmem>>, vector<1x1x32xf32>
      %197 = vector.shape_cast %196 : vector<1x1x32xf32> to vector<1x32xf32>
      %198 = vector.broadcast %197 : vector<1x32xf32> to vector<16x32xf32>
      %199 = arith.addf %195, %198 : vector<16x32xf32>
      %c2_158 = arith.constant 2 : index
      %c0_159 = arith.constant 0 : index
      %c0_160 = arith.constant 0 : index
      %200 = vector.load %arg16[%c2_158, %c0_159, %c0_160] : memref<4x16x32xf32, #tpu.memory_space<vmem>>, vector<1x16x32xf32>
      %201 = vector.shape_cast %200 : vector<1x16x32xf32> to vector<16x32xf32>
      %202 = vector.shape_cast %199 : vector<16x32xf32> to vector<1x16x32xf32>
      tpu.vector_store %arg16[%c2_158, %c0_159, %c0_160], %202 {strides = array<i32>} : memref<4x16x32xf32, #tpu.memory_space<vmem>>, vector<1x16x32xf32>,
      %c3_161 = arith.constant 3 : index
      %c0_162 = arith.constant 0 : index
      %c0_163 = arith.constant 0 : index
      %203 = vector.load %arg5[%c3_161, %c0_162, %c0_163] : memref<4x128x32xf32, #tpu.memory_space<vmem>>, vector<1x128x32xf32>
      %204 = vector.shape_cast %203 : vector<1x128x32xf32> to vector<128x32xf32>
      %cst_164 = arith.constant dense<0.000000e+00> : vector<16x32xf32>
      %205 = tpu.matmul %142, %204, %cst_164 {dimension_numbers = #tpu.dot_dimension_numbers<[1], [0], [0], [1], [0, 0, 1, 1], [], []>} : vector<16x128xf32>, vector<128x32xf32>, vector<16x32xf32> -> vector<16x32xf32>
      %c3_165 = arith.constant 3 : index
      %c0_166 = arith.constant 0 : index
      %c0_167 = arith.constant 0 : index
      %206 = vector.load %arg8[%c3_165, %c0_166, %c0_167] : memref<4x1x32xf32, #tpu.memory_space<vmem>>, vector<1x1x32xf32>
      %207 = vector.shape_cast %206 : vector<1x1x32xf32> to vector<1x32xf32>
      %208 = vector.broadcast %207 : vector<1x32xf32> to vector<16x32xf32>
      %209 = arith.addf %205, %208 : vector<16x32xf32>
      %c3_168 = arith.constant 3 : index
      %c0_169 = arith.constant 0 : index
      %c0_170 = arith.constant 0 : index
      %210 = vector.load %arg15[%c3_168, %c0_169, %c0_170] : memref<4x16x32xf32, #tpu.memory_space<vmem>>, vector<1x16x32xf32>
      %211 = vector.shape_cast %210 : vector<1x16x32xf32> to vector<16x32xf32>
      %212 = vector.shape_cast %209 : vector<16x32xf32> to vector<1x16x32xf32>
      tpu.vector_store %arg15[%c3_168, %c0_169, %c0_170], %212 {strides = array<i32>} : memref<4x16x32xf32, #tpu.memory_space<vmem>>, vector<1x16x32xf32>,
      %c3_171 = arith.constant 3 : index
      %c0_172 = arith.constant 0 : index
      %c0_173 = arith.constant 0 : index
      %213 = vector.load %arg6[%c3_171, %c0_172, %c0_173] : memref<4x128x32xf32, #tpu.memory_space<vmem>>, vector<1x128x32xf32>
      %214 = vector.shape_cast %213 : vector<1x128x32xf32> to vector<128x32xf32>
      %cst_174 = arith.constant dense<0.000000e+00> : vector<16x32xf32>
      %215 = tpu.matmul %142, %214, %cst_174 {dimension_numbers = #tpu.dot_dimension_numbers<[1], [0], [0], [1], [0, 0, 1, 1], [], []>} : vector<16x128xf32>, vector<128x32xf32>, vector<16x32xf32> -> vector<16x32xf32>
      %c3_175 = arith.constant 3 : index
      %c0_176 = arith.constant 0 : index
      %c0_177 = arith.constant 0 : index
      %216 = vector.load %arg9[%c3_175, %c0_176, %c0_177] : memref<4x1x32xf32, #tpu.memory_space<vmem>>, vector<1x1x32xf32>
      %217 = vector.shape_cast %216 : vector<1x1x32xf32> to vector<1x32xf32>
      %218 = vector.broadcast %217 : vector<1x32xf32> to vector<16x32xf32>
      %219 = arith.addf %215, %218 : vector<16x32xf32>
      %c3_178 = arith.constant 3 : index
      %c0_179 = arith.constant 0 : index
      %c0_180 = arith.constant 0 : index
      %220 = vector.load %arg16[%c3_178, %c0_179, %c0_180] : memref<4x16x32xf32, #tpu.memory_space<vmem>>, vector<1x16x32xf32>
      %221 = vector.shape_cast %220 : vector<1x16x32xf32> to vector<16x32xf32>
      %222 = vector.shape_cast %219 : vector<16x32xf32> to vector<1x16x32xf32>
      tpu.vector_store %arg16[%c3_178, %c0_179, %c0_180], %222 {strides = array<i32>} : memref<4x16x32xf32, #tpu.memory_space<vmem>>, vector<1x16x32xf32>,
    } else {
    }
    %c0 = arith.constant 0 : index
    %c0_1 = arith.constant 0 : index
    %c0_2 = arith.constant 0 : index
    %3 = vector.load %arg2[%c0, %c0_1, %c0_2] : memref<1x16x128xf32, #tpu.memory_space<vmem>>, vector<1x16x128xf32>
    %4 = vector.shape_cast %3 : vector<1x16x128xf32> to vector<16x128xf32>
    %cst = arith.constant 0.000000e+00 : f32
    %5 = vector.broadcast %cst : f32 to vector<16x128xf32>
    %c0_3 = arith.constant 0 : index
    %c0_4 = arith.constant 0 : index
    %c0_5 = arith.constant 0 : index
    %6 = vector.load %arg4[%c0_3, %c0_4, %c0_5] : memref<4x128x32xf32, #tpu.memory_space<vmem>>, vector<1x128x32xf32>
    %7 = vector.shape_cast %6 : vector<1x128x32xf32> to vector<128x32xf32>
    %cst_6 = arith.constant dense<0.000000e+00> : vector<16x32xf32>
    %8 = tpu.matmul %4, %7, %cst_6 {dimension_numbers = #tpu.dot_dimension_numbers<[1], [0], [0], [1], [0, 0, 1, 1], [], []>} : vector<16x128xf32>, vector<128x32xf32>, vector<16x32xf32> -> vector<16x32xf32>
    %c0_7 = arith.constant 0 : index
    %c0_8 = arith.constant 0 : index
    %c0_9 = arith.constant 0 : index
    %9 = vector.load %arg7[%c0_7, %c0_8, %c0_9] : memref<4x1x32xf32, #tpu.memory_space<vmem>>, vector<1x1x32xf32>
    %10 = vector.shape_cast %9 : vector<1x1x32xf32> to vector<1x32xf32>
    %11 = vector.broadcast %10 : vector<1x32xf32> to vector<16x32xf32>
    %12 = arith.addf %8, %11 : vector<16x32xf32>
    %c0_10 = arith.constant 0 : index
    %c0_11 = arith.constant 0 : index
    %c0_12 = arith.constant 0 : index
    %13 = vector.load %arg15[%c0_10, %c0_11, %c0_12] : memref<4x16x32xf32, #tpu.memory_space<vmem>>, vector<1x16x32xf32>
    %14 = vector.shape_cast %13 : vector<1x16x32xf32> to vector<16x32xf32>
    %c0_13 = arith.constant 0 : index
    %c0_14 = arith.constant 0 : index
    %c0_15 = arith.constant 0 : index
    %15 = vector.load %arg16[%c0_13, %c0_14, %c0_15] : memref<4x16x32xf32, #tpu.memory_space<vmem>>, vector<1x16x32xf32>
    %16 = vector.shape_cast %15 : vector<1x16x32xf32> to vector<16x32xf32>
    %cst_16 = arith.constant dense<0.000000e+00> : vector<16x16xf32>
    %17 = tpu.matmul %12, %14, %cst_16 {dimension_numbers = #tpu.dot_dimension_numbers<[1], [1], [0], [0], [0, 0, 1, 0], [], []>} : vector<16x32xf32>, vector<16x32xf32>, vector<16x16xf32> -> vector<16x16xf32>
    %cst_17 = arith.constant dense<0xFF800000> : vector<16xf32>
    %18 = vector.multi_reduction <maximumf>, %17, %cst_17 [1] : vector<16x16xf32> to vector<16xf32>
    %19 = vector.shape_cast %18 : vector<16xf32> to vector<16x1xf32>
    %20 = vector.broadcast %19 : vector<16x1xf32> to vector<16x16xf32>
    %21 = arith.subf %17, %20 : vector<16x16xf32>
    %22 = math.exp %21 : vector<16x16xf32>
    %cst_18 = arith.constant dense<0.000000e+00> : vector<16xf32>
    %23 = vector.multi_reduction <add>, %22, %cst_18 [1] : vector<16x16xf32> to vector<16xf32>
    %24 = vector.shape_cast %23 : vector<16xf32> to vector<16x1xf32>
    %25 = vector.broadcast %24 : vector<16x1xf32> to vector<16x16xf32>
    %26 = arith.divf %22, %25 : vector<16x16xf32>
    %cst_19 = arith.constant dense<0.000000e+00> : vector<16x32xf32>
    %27 = tpu.matmul %26, %16, %cst_19 {dimension_numbers = #tpu.dot_dimension_numbers<[1], [0], [0], [1], [0, 0, 1, 1], [], []>} : vector<16x16xf32>, vector<16x32xf32>, vector<16x32xf32> -> vector<16x32xf32>
    %c0_20 = arith.constant 0 : index
    %c0_21 = arith.constant 0 : index
    %c0_22 = arith.constant 0 : index
    %28 = vector.load %arg10[%c0_20, %c0_21, %c0_22] : memref<4x32x128xf32, #tpu.memory_space<vmem>>, vector<1x32x128xf32>
    %29 = vector.shape_cast %28 : vector<1x32x128xf32> to vector<32x128xf32>
    %cst_23 = arith.constant dense<0.000000e+00> : vector<16x128xf32>
    %30 = tpu.matmul %27, %29, %cst_23 {dimension_numbers = #tpu.dot_dimension_numbers<[1], [0], [0], [1], [0, 0, 1, 1], [], []>} : vector<16x32xf32>, vector<32x128xf32>, vector<16x128xf32> -> vector<16x128xf32>
    %31 = arith.addf %5, %30 : vector<16x128xf32>
    %c1 = arith.constant 1 : index
    %c0_24 = arith.constant 0 : index
    %c0_25 = arith.constant 0 : index
    %32 = vector.load %arg4[%c1, %c0_24, %c0_25] : memref<4x128x32xf32, #tpu.memory_space<vmem>>, vector<1x128x32xf32>
    %33 = vector.shape_cast %32 : vector<1x128x32xf32> to vector<128x32xf32>
    %cst_26 = arith.constant dense<0.000000e+00> : vector<16x32xf32>
    %34 = tpu.matmul %4, %33, %cst_26 {dimension_numbers = #tpu.dot_dimension_numbers<[1], [0], [0], [1], [0, 0, 1, 1], [], []>} : vector<16x128xf32>, vector<128x32xf32>, vector<16x32xf32> -> vector<16x32xf32>
    %c1_27 = arith.constant 1 : index
    %c0_28 = arith.constant 0 : index
    %c0_29 = arith.constant 0 : index
    %35 = vector.load %arg7[%c1_27, %c0_28, %c0_29] : memref<4x1x32xf32, #tpu.memory_space<vmem>>, vector<1x1x32xf32>
    %36 = vector.shape_cast %35 : vector<1x1x32xf32> to vector<1x32xf32>
    %37 = vector.broadcast %36 : vector<1x32xf32> to vector<16x32xf32>
    %38 = arith.addf %34, %37 : vector<16x32xf32>
    %c1_30 = arith.constant 1 : index
    %c0_31 = arith.constant 0 : index
    %c0_32 = arith.constant 0 : index
    %39 = vector.load %arg15[%c1_30, %c0_31, %c0_32] : memref<4x16x32xf32, #tpu.memory_space<vmem>>, vector<1x16x32xf32>
    %40 = vector.shape_cast %39 : vector<1x16x32xf32> to vector<16x32xf32>
    %c1_33 = arith.constant 1 : index
    %c0_34 = arith.constant 0 : index
    %c0_35 = arith.constant 0 : index
    %41 = vector.load %arg16[%c1_33, %c0_34, %c0_35] : memref<4x16x32xf32, #tpu.memory_space<vmem>>, vector<1x16x32xf32>
    %42 = vector.shape_cast %41 : vector<1x16x32xf32> to vector<16x32xf32>
    %cst_36 = arith.constant dense<0.000000e+00> : vector<16x16xf32>
    %43 = tpu.matmul %38, %40, %cst_36 {dimension_numbers = #tpu.dot_dimension_numbers<[1], [1], [0], [0], [0, 0, 1, 0], [], []>} : vector<16x32xf32>, vector<16x32xf32>, vector<16x16xf32> -> vector<16x16xf32>
    %cst_37 = arith.constant dense<0xFF800000> : vector<16xf32>
    %44 = vector.multi_reduction <maximumf>, %43, %cst_37 [1] : vector<16x16xf32> to vector<16xf32>
    %45 = vector.shape_cast %44 : vector<16xf32> to vector<16x1xf32>
    %46 = vector.broadcast %45 : vector<16x1xf32> to vector<16x16xf32>
    %47 = arith.subf %43, %46 : vector<16x16xf32>
    %48 = math.exp %47 : vector<16x16xf32>
    %cst_38 = arith.constant dense<0.000000e+00> : vector<16xf32>
    %49 = vector.multi_reduction <add>, %48, %cst_38 [1] : vector<16x16xf32> to vector<16xf32>
    %50 = vector.shape_cast %49 : vector<16xf32> to vector<16x1xf32>
    %51 = vector.broadcast %50 : vector<16x1xf32> to vector<16x16xf32>
    %52 = arith.divf %48, %51 : vector<16x16xf32>
    %cst_39 = arith.constant dense<0.000000e+00> : vector<16x32xf32>
    %53 = tpu.matmul %52, %42, %cst_39 {dimension_numbers = #tpu.dot_dimension_numbers<[1], [0], [0], [1], [0, 0, 1, 1], [], []>} : vector<16x16xf32>, vector<16x32xf32>, vector<16x32xf32> -> vector<16x32xf32>
    %c1_40 = arith.constant 1 : index
    %c0_41 = arith.constant 0 : index
    %c0_42 = arith.constant 0 : index
    %54 = vector.load %arg10[%c1_40, %c0_41, %c0_42] : memref<4x32x128xf32, #tpu.memory_space<vmem>>, vector<1x32x128xf32>
    %55 = vector.shape_cast %54 : vector<1x32x128xf32> to vector<32x128xf32>
    %cst_43 = arith.constant dense<0.000000e+00> : vector<16x128xf32>
    %56 = tpu.matmul %53, %55, %cst_43 {dimension_numbers = #tpu.dot_dimension_numbers<[1], [0], [0], [1], [0, 0, 1, 1], [], []>} : vector<16x32xf32>, vector<32x128xf32>, vector<16x128xf32> -> vector<16x128xf32>
    %57 = arith.addf %31, %56 : vector<16x128xf32>
    %c2 = arith.constant 2 : index
    %c0_44 = arith.constant 0 : index
    %c0_45 = arith.constant 0 : index
    %58 = vector.load %arg4[%c2, %c0_44, %c0_45] : memref<4x128x32xf32, #tpu.memory_space<vmem>>, vector<1x128x32xf32>
    %59 = vector.shape_cast %58 : vector<1x128x32xf32> to vector<128x32xf32>
    %cst_46 = arith.constant dense<0.000000e+00> : vector<16x32xf32>
    %60 = tpu.matmul %4, %59, %cst_46 {dimension_numbers = #tpu.dot_dimension_numbers<[1], [0], [0], [1], [0, 0, 1, 1], [], []>} : vector<16x128xf32>, vector<128x32xf32>, vector<16x32xf32> -> vector<16x32xf32>
    %c2_47 = arith.constant 2 : index
    %c0_48 = arith.constant 0 : index
    %c0_49 = arith.constant 0 : index
    %61 = vector.load %arg7[%c2_47, %c0_48, %c0_49] : memref<4x1x32xf32, #tpu.memory_space<vmem>>, vector<1x1x32xf32>
    %62 = vector.shape_cast %61 : vector<1x1x32xf32> to vector<1x32xf32>
    %63 = vector.broadcast %62 : vector<1x32xf32> to vector<16x32xf32>
    %64 = arith.addf %60, %63 : vector<16x32xf32>
    %c2_50 = arith.constant 2 : index
    %c0_51 = arith.constant 0 : index
    %c0_52 = arith.constant 0 : index
    %65 = vector.load %arg15[%c2_50, %c0_51, %c0_52] : memref<4x16x32xf32, #tpu.memory_space<vmem>>, vector<1x16x32xf32>
    %66 = vector.shape_cast %65 : vector<1x16x32xf32> to vector<16x32xf32>
    %c2_53 = arith.constant 2 : index
    %c0_54 = arith.constant 0 : index
    %c0_55 = arith.constant 0 : index
    %67 = vector.load %arg16[%c2_53, %c0_54, %c0_55] : memref<4x16x32xf32, #tpu.memory_space<vmem>>, vector<1x16x32xf32>
    %68 = vector.shape_cast %67 : vector<1x16x32xf32> to vector<16x32xf32>
    %cst_56 = arith.constant dense<0.000000e+00> : vector<16x16xf32>
    %69 = tpu.matmul %64, %66, %cst_56 {dimension_numbers = #tpu.dot_dimension_numbers<[1], [1], [0], [0], [0, 0, 1, 0], [], []>} : vector<16x32xf32>, vector<16x32xf32>, vector<16x16xf32> -> vector<16x16xf32>
    %cst_57 = arith.constant dense<0xFF800000> : vector<16xf32>
    %70 = vector.multi_reduction <maximumf>, %69, %cst_57 [1] : vector<16x16xf32> to vector<16xf32>
    %71 = vector.shape_cast %70 : vector<16xf32> to vector<16x1xf32>
    %72 = vector.broadcast %71 : vector<16x1xf32> to vector<16x16xf32>
    %73 = arith.subf %69, %72 : vector<16x16xf32>
    %74 = math.exp %73 : vector<16x16xf32>
    %cst_58 = arith.constant dense<0.000000e+00> : vector<16xf32>
    %75 = vector.multi_reduction <add>, %74, %cst_58 [1] : vector<16x16xf32> to vector<16xf32>
    %76 = vector.shape_cast %75 : vector<16xf32> to vector<16x1xf32>
    %77 = vector.broadcast %76 : vector<16x1xf32> to vector<16x16xf32>
    %78 = arith.divf %74, %77 : vector<16x16xf32>
    %cst_59 = arith.constant dense<0.000000e+00> : vector<16x32xf32>
    %79 = tpu.matmul %78, %68, %cst_59 {dimension_numbers = #tpu.dot_dimension_numbers<[1], [0], [0], [1], [0, 0, 1, 1], [], []>} : vector<16x16xf32>, vector<16x32xf32>, vector<16x32xf32> -> vector<16x32xf32>
    %c2_60 = arith.constant 2 : index
    %c0_61 = arith.constant 0 : index
    %c0_62 = arith.constant 0 : index
    %80 = vector.load %arg10[%c2_60, %c0_61, %c0_62] : memref<4x32x128xf32, #tpu.memory_space<vmem>>, vector<1x32x128xf32>
    %81 = vector.shape_cast %80 : vector<1x32x128xf32> to vector<32x128xf32>
    %cst_63 = arith.constant dense<0.000000e+00> : vector<16x128xf32>
    %82 = tpu.matmul %79, %81, %cst_63 {dimension_numbers = #tpu.dot_dimension_numbers<[1], [0], [0], [1], [0, 0, 1, 1], [], []>} : vector<16x32xf32>, vector<32x128xf32>, vector<16x128xf32> -> vector<16x128xf32>
    %83 = arith.addf %57, %82 : vector<16x128xf32>
    %c3 = arith.constant 3 : index
    %c0_64 = arith.constant 0 : index
    %c0_65 = arith.constant 0 : index
    %84 = vector.load %arg4[%c3, %c0_64, %c0_65] : memref<4x128x32xf32, #tpu.memory_space<vmem>>, vector<1x128x32xf32>
    %85 = vector.shape_cast %84 : vector<1x128x32xf32> to vector<128x32xf32>
    %cst_66 = arith.constant dense<0.000000e+00> : vector<16x32xf32>
    %86 = tpu.matmul %4, %85, %cst_66 {dimension_numbers = #tpu.dot_dimension_numbers<[1], [0], [0], [1], [0, 0, 1, 1], [], []>} : vector<16x128xf32>, vector<128x32xf32>, vector<16x32xf32> -> vector<16x32xf32>
    %c3_67 = arith.constant 3 : index
    %c0_68 = arith.constant 0 : index
    %c0_69 = arith.constant 0 : index
    %87 = vector.load %arg7[%c3_67, %c0_68, %c0_69] : memref<4x1x32xf32, #tpu.memory_space<vmem>>, vector<1x1x32xf32>
    %88 = vector.shape_cast %87 : vector<1x1x32xf32> to vector<1x32xf32>
    %89 = vector.broadcast %88 : vector<1x32xf32> to vector<16x32xf32>
    %90 = arith.addf %86, %89 : vector<16x32xf32>
    %c3_70 = arith.constant 3 : index
    %c0_71 = arith.constant 0 : index
    %c0_72 = arith.constant 0 : index
    %91 = vector.load %arg15[%c3_70, %c0_71, %c0_72] : memref<4x16x32xf32, #tpu.memory_space<vmem>>, vector<1x16x32xf32>
    %92 = vector.shape_cast %91 : vector<1x16x32xf32> to vector<16x32xf32>
    %c3_73 = arith.constant 3 : index
    %c0_74 = arith.constant 0 : index
    %c0_75 = arith.constant 0 : index
    %93 = vector.load %arg16[%c3_73, %c0_74, %c0_75] : memref<4x16x32xf32, #tpu.memory_space<vmem>>, vector<1x16x32xf32>
    %94 = vector.shape_cast %93 : vector<1x16x32xf32> to vector<16x32xf32>
    %cst_76 = arith.constant dense<0.000000e+00> : vector<16x16xf32>
    %95 = tpu.matmul %90, %92, %cst_76 {dimension_numbers = #tpu.dot_dimension_numbers<[1], [1], [0], [0], [0, 0, 1, 0], [], []>} : vector<16x32xf32>, vector<16x32xf32>, vector<16x16xf32> -> vector<16x16xf32>
    %cst_77 = arith.constant dense<0xFF800000> : vector<16xf32>
    %96 = vector.multi_reduction <maximumf>, %95, %cst_77 [1] : vector<16x16xf32> to vector<16xf32>
    %97 = vector.shape_cast %96 : vector<16xf32> to vector<16x1xf32>
    %98 = vector.broadcast %97 : vector<16x1xf32> to vector<16x16xf32>
    %99 = arith.subf %95, %98 : vector<16x16xf32>
    %100 = math.exp %99 : vector<16x16xf32>
    %cst_78 = arith.constant dense<0.000000e+00> : vector<16xf32>
    %101 = vector.multi_reduction <add>, %100, %cst_78 [1] : vector<16x16xf32> to vector<16xf32>
    %102 = vector.shape_cast %101 : vector<16xf32> to vector<16x1xf32>
    %103 = vector.broadcast %102 : vector<16x1xf32> to vector<16x16xf32>
    %104 = arith.divf %100, %103 : vector<16x16xf32>
    %cst_79 = arith.constant dense<0.000000e+00> : vector<16x32xf32>
    %105 = tpu.matmul %104, %94, %cst_79 {dimension_numbers = #tpu.dot_dimension_numbers<[1], [0], [0], [1], [0, 0, 1, 1], [], []>} : vector<16x16xf32>, vector<16x32xf32>, vector<16x32xf32> -> vector<16x32xf32>
    %c3_80 = arith.constant 3 : index
    %c0_81 = arith.constant 0 : index
    %c0_82 = arith.constant 0 : index
    %106 = vector.load %arg10[%c3_80, %c0_81, %c0_82] : memref<4x32x128xf32, #tpu.memory_space<vmem>>, vector<1x32x128xf32>
    %107 = vector.shape_cast %106 : vector<1x32x128xf32> to vector<32x128xf32>
    %cst_83 = arith.constant dense<0.000000e+00> : vector<16x128xf32>
    %108 = tpu.matmul %105, %107, %cst_83 {dimension_numbers = #tpu.dot_dimension_numbers<[1], [0], [0], [1], [0, 0, 1, 1], [], []>} : vector<16x32xf32>, vector<32x128xf32>, vector<16x128xf32> -> vector<16x128xf32>
    %109 = arith.addf %83, %108 : vector<16x128xf32>
    %110 = arith.addf %4, %109 : vector<16x128xf32>
    %c0_84 = arith.constant 0 : index
    %c0_85 = arith.constant 0 : index
    %111 = vector.load %arg11[%c0_84, %c0_85] : memref<1x128xf32, #tpu.memory_space<vmem>>, vector<1x128xf32>
    %112 = vector.broadcast %111 : vector<1x128xf32> to vector<16x128xf32>
    %113 = arith.addf %110, %112 : vector<16x128xf32>
    %cst_86 = arith.constant dense<0.000000e+00> : vector<16xf32>
    %114 = vector.multi_reduction <add>, %113, %cst_86 [1] : vector<16x128xf32> to vector<16xf32>
    %115 = vector.shape_cast %114 : vector<16xf32> to vector<16x1xf32>
    %cst_87 = arith.constant 1.280000e+02 : f32
    %116 = vector.broadcast %cst_87 : f32 to vector<16x1xf32>
    %117 = arith.divf %115, %116 : vector<16x1xf32>
    %118 = vector.broadcast %117 : vector<16x1xf32> to vector<16x128xf32>
    %119 = arith.subf %113, %118 : vector<16x128xf32>
    %120 = arith.mulf %119, %119 : vector<16x128xf32>
    %cst_88 = arith.constant dense<0.000000e+00> : vector<16xf32>
    %121 = vector.multi_reduction <add>, %120, %cst_88 [1] : vector<16x128xf32> to vector<16xf32>
    %122 = vector.shape_cast %121 : vector<16xf32> to vector<16x1xf32>
    %cst_89 = arith.constant 1.280000e+02 : f32
    %123 = vector.broadcast %cst_89 : f32 to vector<16x1xf32>
    %124 = arith.divf %122, %123 : vector<16x1xf32>
    %125 = vector.broadcast %117 : vector<16x1xf32> to vector<16x128xf32>
    %126 = arith.subf %113, %125 : vector<16x128xf32>
    %cst_90 = arith.constant 9.99999974E-6 : f32
    %127 = vector.broadcast %cst_90 : f32 to vector<16x1xf32>
    %128 = arith.addf %124, %127 : vector<16x1xf32>
    %129 = math.rsqrt %128 : vector<16x1xf32>
    %130 = vector.broadcast %129 : vector<16x1xf32> to vector<16x128xf32>
    %131 = arith.mulf %126, %130 : vector<16x128xf32>
    %c0_91 = arith.constant 0 : index
    %c0_92 = arith.constant 0 : index
    %132 = vector.load %arg12[%c0_91, %c0_92] : memref<1x128xf32, #tpu.memory_space<vmem>>, vector<1x128xf32>
    %133 = vector.broadcast %132 : vector<1x128xf32> to vector<16x128xf32>
    %134 = arith.mulf %131, %133 : vector<16x128xf32>
    %c0_93 = arith.constant 0 : index
    %c0_94 = arith.constant 0 : index
    %135 = vector.load %arg13[%c0_93, %c0_94] : memref<1x128xf32, #tpu.memory_space<vmem>>, vector<1x128xf32>
    %136 = vector.broadcast %135 : vector<1x128xf32> to vector<16x128xf32>
    %137 = arith.addf %134, %136 : vector<16x128xf32>
    %c0_95 = arith.constant 0 : index
    %c0_96 = arith.constant 0 : index
    %c0_97 = arith.constant 0 : index
    %138 = vector.load %arg14[%c0_95, %c0_96, %c0_97] : memref<1x16x128xf32, #tpu.memory_space<vmem>>, vector<1x16x128xf32>
    %139 = vector.shape_cast %138 : vector<1x16x128xf32> to vector<16x128xf32>
    %140 = vector.shape_cast %137 : vector<16x128xf32> to vector<1x16x128xf32>
    tpu.vector_store %arg14[%c0_95, %c0_96, %c0_97], %140 {strides = array<i32>} : memref<1x16x128xf32, #tpu.memory_space<vmem>>, vector<1x16x128xf32>,
    return
  }
  func.func @transform_0(%arg0: i32, %arg1: i32) -> (i32, i32, i32) {
    %c0_i32 = arith.constant 0 : i32
    %c0_i32_0 = arith.constant 0 : i32
    return %arg0, %arg1, %c0_i32 : i32, i32, i32
  }
  func.func @transform_1(%arg0: i32, %arg1: i32) -> (i32, i32, i32) {
    %c0_i32 = arith.constant 0 : i32
    %c0_i32_0 = arith.constant 0 : i32
    %c0_i32_1 = arith.constant 0 : i32
    return %arg0, %c0_i32, %c0_i32_0 : i32, i32, i32
  }
  func.func @transform_2(%arg0: i32, %arg1: i32) -> (i32, i32, i32) {
    %c0_i32 = arith.constant 0 : i32
    %c0_i32_0 = arith.constant 0 : i32
    %c0_i32_1 = arith.constant 0 : i32
    %c0_i32_2 = arith.constant 0 : i32
    return %c0_i32, %c0_i32_0, %c0_i32_1 : i32, i32, i32
  }
  func.func @transform_3(%arg0: i32, %arg1: i32) -> (i32, i32, i32) {
    %c0_i32 = arith.constant 0 : i32
    %c0_i32_0 = arith.constant 0 : i32
    %c0_i32_1 = arith.constant 0 : i32
    %c0_i32_2 = arith.constant 0 : i32
    return %c0_i32, %c0_i32_0, %c0_i32_1 : i32, i32, i32
  }
  func.func @transform_4(%arg0: i32, %arg1: i32) -> (i32, i32, i32) {
    %c0_i32 = arith.constant 0 : i32
    %c0_i32_0 = arith.constant 0 : i32
    %c0_i32_1 = arith.constant 0 : i32
    %c0_i32_2 = arith.constant 0 : i32
    return %c0_i32, %c0_i32_0, %c0_i32_1 : i32, i32, i32
  }
  func.func @transform_5(%arg0: i32, %arg1: i32) -> (i32, i32, i32) {
    %c0_i32 = arith.constant 0 : i32
    %c0_i32_0 = arith.constant 0 : i32
    %c0_i32_1 = arith.constant 0 : i32
    %c0_i32_2 = arith.constant 0 : i32
    return %c0_i32, %c0_i32_0, %c0_i32_1 : i32, i32, i32
  }
  func.func @transform_6(%arg0: i32, %arg1: i32) -> (i32, i32, i32) {
    %c0_i32 = arith.constant 0 : i32
    %c0_i32_0 = arith.constant 0 : i32
    %c0_i32_1 = arith.constant 0 : i32
    %c0_i32_2 = arith.constant 0 : i32
    return %c0_i32, %c0_i32_0, %c0_i32_1 : i32, i32, i32
  }
  func.func @transform_7(%arg0: i32, %arg1: i32) -> (i32, i32, i32) {
    %c0_i32 = arith.constant 0 : i32
    %c0_i32_0 = arith.constant 0 : i32
    %c0_i32_1 = arith.constant 0 : i32
    %c0_i32_2 = arith.constant 0 : i32
    return %c0_i32, %c0_i32_0, %c0_i32_1 : i32, i32, i32
  }
  func.func @transform_8(%arg0: i32, %arg1: i32) -> (i32, i32, i32) {
    %c0_i32 = arith.constant 0 : i32
    %c0_i32_0 = arith.constant 0 : i32
    %c0_i32_1 = arith.constant 0 : i32
    %c0_i32_2 = arith.constant 0 : i32
    return %c0_i32, %c0_i32_0, %c0_i32_1 : i32, i32, i32
  }
  func.func @transform_9(%arg0: i32, %arg1: i32) -> (i32, i32) {
    %c0_i32 = arith.constant 0 : i32
    %c0_i32_0 = arith.constant 0 : i32
    %c0_i32_1 = arith.constant 0 : i32
    return %c0_i32, %c0_i32_0 : i32, i32
  }
  func.func @transform_10(%arg0: i32, %arg1: i32) -> (i32, i32) {
    %c0_i32 = arith.constant 0 : i32
    %c0_i32_0 = arith.constant 0 : i32
    %c0_i32_1 = arith.constant 0 : i32
    return %c0_i32, %c0_i32_0 : i32, i32
  }
  func.func @transform_11(%arg0: i32, %arg1: i32) -> (i32, i32) {
    %c0_i32 = arith.constant 0 : i32
    %c0_i32_0 = arith.constant 0 : i32
    %c0_i32_1 = arith.constant 0 : i32
    return %c0_i32, %c0_i32_0 : i32, i32
  }
  func.func @transform_12(%arg0: i32, %arg1: i32) -> (i32, i32, i32) {
    %c0_i32 = arith.constant 0 : i32
    %c0_i32_0 = arith.constant 0 : i32
    return %arg0, %arg1, %c0_i32 : i32, i32, i32
  }
}

module attributes {stable_mosaic.version = 11 : i64} {
  func.func @_ffn_block_kernel(%arg0: i32, %arg1: i32, %arg2: memref<32x128xf32, #tpu.memory_space<vmem>>, %arg3: memref<128x256xf32, #tpu.memory_space<vmem>>, %arg4: memref<1x256xf32, #tpu.memory_space<vmem>>, %arg5: memref<256x128xf32, #tpu.memory_space<vmem>>, %arg6: memref<1x128xf32, #tpu.memory_space<vmem>>, %arg7: memref<1x128xf32, #tpu.memory_space<vmem>>, %arg8: memref<1x128xf32, #tpu.memory_space<vmem>>, %arg9: memref<32x128xf32, #tpu.memory_space<vmem>>, %arg10: memref<32x128xf32, #tpu.memory_space<vmem>>) attributes {dimension_semantics = [#tpu.dimension_semantics<parallel>, #tpu.dimension_semantics<arbitrary>], iteration_bounds = array<i64: 1, 1>, scalar_prefetch = 0 : i64, scratch_operands = 1 : i64, tpu.core_type = #tpu.core_type<tc>, window_params = [{transform_indices = @transform_0, window_bounds = array<i64: 32, 128>}, {transform_indices = @transform_1, window_bounds = array<i64: 128, 256>}, {transform_indices = @transform_2, window_bounds = array<i64: 1, 256>}, {transform_indices = @transform_3, window_bounds = array<i64: 256, 128>}, {pipeline_mode = #tpu.pipeline_mode<synchronous>, transform_indices = @transform_4, window_bounds = array<i64: 1, 128>}, {pipeline_mode = #tpu.pipeline_mode<synchronous>, transform_indices = @transform_5, window_bounds = array<i64: 1, 128>}, {pipeline_mode = #tpu.pipeline_mode<synchronous>, transform_indices = @transform_6, window_bounds = array<i64: 1, 128>}, {transform_indices = @transform_7, window_bounds = array<i64: 32, 128>}]} {
    %c0_i32 = arith.constant 0 : i32
    %0 = arith.cmpi eq, %arg1, %c0_i32 : i32
    %1 = arith.extui %0 : i1 to i32
    %c0_i32_0 = arith.constant 0 : i32
    %2 = arith.cmpi ne, %1, %c0_i32_0 : i32
    scf.if %2 {
      %cst_16 = arith.constant 0.000000e+00 : f32
      %19 = vector.broadcast %cst_16 : f32 to vector<32x128xf32>
      %c0_17 = arith.constant 0 : index
      %c0_18 = arith.constant 0 : index
      %20 = vector.load %arg10[%c0_17, %c0_18] : memref<32x128xf32, #tpu.memory_space<vmem>>, vector<32x128xf32>
      tpu.vector_store %arg10[%c0_17, %c0_18], %19 {strides = array<i32>} : memref<32x128xf32, #tpu.memory_space<vmem>>, vector<32x128xf32>,
    } else {
    }
    %c0 = arith.constant 0 : index
    %c0_1 = arith.constant 0 : index
    %3 = vector.load %arg2[%c0, %c0_1] : memref<32x128xf32, #tpu.memory_space<vmem>>, vector<32x128xf32>
    %c0_2 = arith.constant 0 : index
    %c0_3 = arith.constant 0 : index
    %4 = vector.load %arg3[%c0_2, %c0_3] : memref<128x256xf32, #tpu.memory_space<vmem>>, vector<128x256xf32>
    %c0_4 = arith.constant 0 : index
    %c0_5 = arith.constant 0 : index
    %5 = vector.load %arg5[%c0_4, %c0_5] : memref<256x128xf32, #tpu.memory_space<vmem>>, vector<256x128xf32>
    %cst = arith.constant dense<0.000000e+00> : vector<32x256xf32>
    %6 = tpu.matmul %3, %4, %cst {dimension_numbers = #tpu.dot_dimension_numbers<[1], [0], [0], [1], [0, 0, 1, 1], [], []>} : vector<32x128xf32>, vector<128x256xf32>, vector<32x256xf32> -> vector<32x256xf32>
    %c0_6 = arith.constant 0 : index
    %c0_7 = arith.constant 0 : index
    %7 = vector.load %arg4[%c0_6, %c0_7] : memref<1x256xf32, #tpu.memory_space<vmem>>, vector<1x256xf32>
    %8 = vector.broadcast %7 : vector<1x256xf32> to vector<32x256xf32>
    %9 = arith.addf %6, %8 : vector<32x256xf32>
    %cst_8 = arith.constant 0.000000e+00 : f32
    %10 = vector.broadcast %cst_8 : f32 to vector<32x256xf32>
    %11 = arith.maximumf %9, %10 : vector<32x256xf32>
    %c0_9 = arith.constant 0 : index
    %c0_10 = arith.constant 0 : index
    %12 = vector.load %arg10[%c0_9, %c0_10] : memref<32x128xf32, #tpu.memory_space<vmem>>, vector<32x128xf32>
    %cst_11 = arith.constant dense<0.000000e+00> : vector<32x128xf32>
    %13 = tpu.matmul %11, %5, %cst_11 {dimension_numbers = #tpu.dot_dimension_numbers<[1], [0], [0], [1], [0, 0, 1, 1], [], []>} : vector<32x256xf32>, vector<256x128xf32>, vector<32x128xf32> -> vector<32x128xf32>
    %14 = arith.addf %12, %13 : vector<32x128xf32>
    %c0_12 = arith.constant 0 : index
    %c0_13 = arith.constant 0 : index
    %15 = vector.load %arg10[%c0_12, %c0_13] : memref<32x128xf32, #tpu.memory_space<vmem>>, vector<32x128xf32>
    tpu.vector_store %arg10[%c0_12, %c0_13], %14 {strides = array<i32>} : memref<32x128xf32, #tpu.memory_space<vmem>>, vector<32x128xf32>,
    %c0_i32_14 = arith.constant 0 : i32
    %16 = arith.cmpi eq, %arg1, %c0_i32_14 : i32
    %17 = arith.extui %16 : i1 to i32
    %c0_i32_15 = arith.constant 0 : i32
    %18 = arith.cmpi ne, %17, %c0_i32_15 : i32
    scf.if %18 {
      %c0_16 = arith.constant 0 : index
      %c0_17 = arith.constant 0 : index
      %19 = vector.load %arg10[%c0_16, %c0_17] : memref<32x128xf32, #tpu.memory_space<vmem>>, vector<32x128xf32>
      %20 = arith.addf %3, %19 : vector<32x128xf32>
      %c0_18 = arith.constant 0 : index
      %c0_19 = arith.constant 0 : index
      %21 = vector.load %arg6[%c0_18, %c0_19] : memref<1x128xf32, #tpu.memory_space<vmem>>, vector<1x128xf32>
      %22 = vector.broadcast %21 : vector<1x128xf32> to vector<32x128xf32>
      %23 = arith.addf %20, %22 : vector<32x128xf32>
      %cst_20 = arith.constant dense<0.000000e+00> : vector<32xf32>
      %24 = vector.multi_reduction <add>, %23, %cst_20 [1] : vector<32x128xf32> to vector<32xf32>
      %25 = vector.shape_cast %24 : vector<32xf32> to vector<32x1xf32>
      %cst_21 = arith.constant 1.280000e+02 : f32
      %26 = vector.broadcast %cst_21 : f32 to vector<32x1xf32>
      %27 = arith.divf %25, %26 : vector<32x1xf32>
      %28 = vector.broadcast %27 : vector<32x1xf32> to vector<32x128xf32>
      %29 = arith.subf %23, %28 : vector<32x128xf32>
      %30 = arith.mulf %29, %29 : vector<32x128xf32>
      %cst_22 = arith.constant dense<0.000000e+00> : vector<32xf32>
      %31 = vector.multi_reduction <add>, %30, %cst_22 [1] : vector<32x128xf32> to vector<32xf32>
      %32 = vector.shape_cast %31 : vector<32xf32> to vector<32x1xf32>
      %cst_23 = arith.constant 1.280000e+02 : f32
      %33 = vector.broadcast %cst_23 : f32 to vector<32x1xf32>
      %34 = arith.divf %32, %33 : vector<32x1xf32>
      %35 = vector.broadcast %27 : vector<32x1xf32> to vector<32x128xf32>
      %36 = arith.subf %23, %35 : vector<32x128xf32>
      %cst_24 = arith.constant 9.99999974E-6 : f32
      %37 = vector.broadcast %cst_24 : f32 to vector<32x1xf32>
      %38 = arith.addf %34, %37 : vector<32x1xf32>
      %39 = math.rsqrt %38 : vector<32x1xf32>
      %40 = vector.broadcast %39 : vector<32x1xf32> to vector<32x128xf32>
      %41 = arith.mulf %36, %40 : vector<32x128xf32>
      %c0_25 = arith.constant 0 : index
      %c0_26 = arith.constant 0 : index
      %42 = vector.load %arg7[%c0_25, %c0_26] : memref<1x128xf32, #tpu.memory_space<vmem>>, vector<1x128xf32>
      %43 = vector.broadcast %42 : vector<1x128xf32> to vector<32x128xf32>
      %44 = arith.mulf %41, %43 : vector<32x128xf32>
      %c0_27 = arith.constant 0 : index
      %c0_28 = arith.constant 0 : index
      %45 = vector.load %arg8[%c0_27, %c0_28] : memref<1x128xf32, #tpu.memory_space<vmem>>, vector<1x128xf32>
      %46 = vector.broadcast %45 : vector<1x128xf32> to vector<32x128xf32>
      %47 = arith.addf %44, %46 : vector<32x128xf32>
      %c0_29 = arith.constant 0 : index
      %c0_30 = arith.constant 0 : index
      %48 = vector.load %arg9[%c0_29, %c0_30] : memref<32x128xf32, #tpu.memory_space<vmem>>, vector<32x128xf32>
      tpu.vector_store %arg9[%c0_29, %c0_30], %47 {strides = array<i32>} : memref<32x128xf32, #tpu.memory_space<vmem>>, vector<32x128xf32>,
    } else {
    }
    return
  }
  func.func @transform_0(%arg0: i32, %arg1: i32) -> (i32, i32) {
    %c0_i32 = arith.constant 0 : i32
    %c0_i32_0 = arith.constant 0 : i32
    return %arg0, %c0_i32 : i32, i32
  }
  func.func @transform_1(%arg0: i32, %arg1: i32) -> (i32, i32) {
    %c0_i32 = arith.constant 0 : i32
    %c0_i32_0 = arith.constant 0 : i32
    return %c0_i32, %arg1 : i32, i32
  }
  func.func @transform_2(%arg0: i32, %arg1: i32) -> (i32, i32) {
    %c0_i32 = arith.constant 0 : i32
    %c0_i32_0 = arith.constant 0 : i32
    return %c0_i32, %arg1 : i32, i32
  }
  func.func @transform_3(%arg0: i32, %arg1: i32) -> (i32, i32) {
    %c0_i32 = arith.constant 0 : i32
    %c0_i32_0 = arith.constant 0 : i32
    return %arg1, %c0_i32 : i32, i32
  }
  func.func @transform_4(%arg0: i32, %arg1: i32) -> (i32, i32) {
    %c0_i32 = arith.constant 0 : i32
    %c0_i32_0 = arith.constant 0 : i32
    %c0_i32_1 = arith.constant 0 : i32
    return %c0_i32, %c0_i32_0 : i32, i32
  }
  func.func @transform_5(%arg0: i32, %arg1: i32) -> (i32, i32) {
    %c0_i32 = arith.constant 0 : i32
    %c0_i32_0 = arith.constant 0 : i32
    %c0_i32_1 = arith.constant 0 : i32
    return %c0_i32, %c0_i32_0 : i32, i32
  }
  func.func @transform_6(%arg0: i32, %arg1: i32) -> (i32, i32) {
    %c0_i32 = arith.constant 0 : i32
    %c0_i32_0 = arith.constant 0 : i32
    %c0_i32_1 = arith.constant 0 : i32
    return %c0_i32, %c0_i32_0 : i32, i32
  }
  func.func @transform_7(%arg0: i32, %arg1: i32) -> (i32, i32) {
    %c0_i32 = arith.constant 0 : i32
    %c0_i32_0 = arith.constant 0 : i32
    return %arg0, %c0_i32 : i32, i32
  }
}

module attributes {stable_mosaic.version = 11 : i64} {
  func.func @_pool_classifier_kernel(%arg0: i32, %arg1: memref<2x16x128xf32, #tpu.memory_space<vmem>>, %arg2: memref<128x256xf32, #tpu.memory_space<vmem>>, %arg3: memref<1x256xf32, #tpu.memory_space<vmem>>, %arg4: memref<256x256xf32, #tpu.memory_space<vmem>>, %arg5: memref<1x256xf32, #tpu.memory_space<vmem>>, %arg6: memref<256x1xf32, #tpu.memory_space<vmem>>, %arg7: memref<1x1xf32, #tpu.memory_space<vmem>>, %arg8: memref<2x1xf32, #tpu.memory_space<vmem>>, %arg9: memref<2x128xf32, #tpu.memory_space<vmem>>) attributes {dimension_semantics = [#tpu.dimension_semantics<arbitrary>], iteration_bounds = array<i64: 1>, scalar_prefetch = 0 : i64, scratch_operands = 1 : i64, tpu.core_type = #tpu.core_type<tc>, window_params = [{transform_indices = @transform_0, window_bounds = array<i64: 2, 16, 128>}, {pipeline_mode = #tpu.pipeline_mode<synchronous>, transform_indices = @transform_1, window_bounds = array<i64: 128, 256>}, {pipeline_mode = #tpu.pipeline_mode<synchronous>, transform_indices = @transform_2, window_bounds = array<i64: 1, 256>}, {pipeline_mode = #tpu.pipeline_mode<synchronous>, transform_indices = @transform_3, window_bounds = array<i64: 256, 256>}, {pipeline_mode = #tpu.pipeline_mode<synchronous>, transform_indices = @transform_4, window_bounds = array<i64: 1, 256>}, {pipeline_mode = #tpu.pipeline_mode<synchronous>, transform_indices = @transform_5, window_bounds = array<i64: 256, 1>}, {pipeline_mode = #tpu.pipeline_mode<synchronous>, transform_indices = @transform_6, window_bounds = array<i64: 1, 1>}, {pipeline_mode = #tpu.pipeline_mode<synchronous>, transform_indices = @transform_7, window_bounds = array<i64: 2, 1>}]} {
    %c0_i32 = arith.constant 0 : i32
    %0 = arith.cmpi eq, %arg0, %c0_i32 : i32
    %1 = arith.extui %0 : i1 to i32
    %c0_i32_0 = arith.constant 0 : i32
    %2 = arith.cmpi ne, %1, %c0_i32_0 : i32
    scf.if %2 {
      %cst_9 = arith.constant 0.000000e+00 : f32
      %11 = vector.broadcast %cst_9 : f32 to vector<2x128xf32>
      %c0_10 = arith.constant 0 : index
      %c0_11 = arith.constant 0 : index
      %12 = vector.load %arg9[%c0_10, %c0_11] : memref<2x128xf32, #tpu.memory_space<vmem>>, vector<2x128xf32>
      tpu.vector_store %arg9[%c0_10, %c0_11], %11 {strides = array<i32>} : memref<2x128xf32, #tpu.memory_space<vmem>>, vector<2x128xf32>,
    } else {
    }
    %c0 = arith.constant 0 : index
    %c0_1 = arith.constant 0 : index
    %3 = vector.load %arg9[%c0, %c0_1] : memref<2x128xf32, #tpu.memory_space<vmem>>, vector<2x128xf32>
    %c0_2 = arith.constant 0 : index
    %c0_3 = arith.constant 0 : index
    %c0_4 = arith.constant 0 : index
    %4 = vector.load %arg1[%c0_2, %c0_3, %c0_4] : memref<2x16x128xf32, #tpu.memory_space<vmem>>, vector<2x16x128xf32>
    %cst = arith.constant dense<0.000000e+00> : vector<2x128xf32>
    %5 = vector.multi_reduction <add>, %4, %cst [1] : vector<2x16x128xf32> to vector<2x128xf32>
    %6 = arith.addf %3, %5 : vector<2x128xf32>
    %c0_5 = arith.constant 0 : index
    %c0_6 = arith.constant 0 : index
    %7 = vector.load %arg9[%c0_5, %c0_6] : memref<2x128xf32, #tpu.memory_space<vmem>>, vector<2x128xf32>
    tpu.vector_store %arg9[%c0_5, %c0_6], %6 {strides = array<i32>} : memref<2x128xf32, #tpu.memory_space<vmem>>, vector<2x128xf32>,
    %c0_i32_7 = arith.constant 0 : i32
    %8 = arith.cmpi eq, %arg0, %c0_i32_7 : i32
    %9 = arith.extui %8 : i1 to i32
    %c0_i32_8 = arith.constant 0 : i32
    %10 = arith.cmpi ne, %9, %c0_i32_8 : i32
    scf.if %10 {
      %c0_9 = arith.constant 0 : index
      %c0_10 = arith.constant 0 : index
      %11 = vector.load %arg9[%c0_9, %c0_10] : memref<2x128xf32, #tpu.memory_space<vmem>>, vector<2x128xf32>
      %cst_11 = arith.constant 6.250000e-02 : f32
      %12 = vector.broadcast %cst_11 : f32 to vector<2x128xf32>
      %13 = arith.mulf %11, %12 : vector<2x128xf32>
      %c0_12 = arith.constant 0 : index
      %c0_13 = arith.constant 0 : index
      %14 = vector.load %arg2[%c0_12, %c0_13] : memref<128x256xf32, #tpu.memory_space<vmem>>, vector<128x256xf32>
      %cst_14 = arith.constant dense<0.000000e+00> : vector<2x256xf32>
      %15 = tpu.matmul %13, %14, %cst_14 {dimension_numbers = #tpu.dot_dimension_numbers<[1], [0], [0], [1], [0, 0, 1, 1], [], []>} : vector<2x128xf32>, vector<128x256xf32>, vector<2x256xf32> -> vector<2x256xf32>
      %c0_15 = arith.constant 0 : index
      %c0_16 = arith.constant 0 : index
      %16 = vector.load %arg3[%c0_15, %c0_16] : memref<1x256xf32, #tpu.memory_space<vmem>>, vector<1x256xf32>
      %17 = vector.broadcast %16 : vector<1x256xf32> to vector<2x256xf32>
      %18 = arith.addf %15, %17 : vector<2x256xf32>
      %cst_17 = arith.constant 0.000000e+00 : f32
      %19 = vector.broadcast %cst_17 : f32 to vector<2x256xf32>
      %20 = arith.maximumf %18, %19 : vector<2x256xf32>
      %c0_18 = arith.constant 0 : index
      %c0_19 = arith.constant 0 : index
      %21 = vector.load %arg4[%c0_18, %c0_19] : memref<256x256xf32, #tpu.memory_space<vmem>>, vector<256x256xf32>
      %cst_20 = arith.constant dense<0.000000e+00> : vector<2x256xf32>
      %22 = tpu.matmul %20, %21, %cst_20 {dimension_numbers = #tpu.dot_dimension_numbers<[1], [0], [0], [1], [0, 0, 1, 1], [], []>} : vector<2x256xf32>, vector<256x256xf32>, vector<2x256xf32> -> vector<2x256xf32>
      %c0_21 = arith.constant 0 : index
      %c0_22 = arith.constant 0 : index
      %23 = vector.load %arg5[%c0_21, %c0_22] : memref<1x256xf32, #tpu.memory_space<vmem>>, vector<1x256xf32>
      %24 = vector.broadcast %23 : vector<1x256xf32> to vector<2x256xf32>
      %25 = arith.addf %22, %24 : vector<2x256xf32>
      %cst_23 = arith.constant 0.000000e+00 : f32
      %26 = vector.broadcast %cst_23 : f32 to vector<2x256xf32>
      %27 = arith.maximumf %25, %26 : vector<2x256xf32>
      %c0_24 = arith.constant 0 : index
      %c0_25 = arith.constant 0 : index
      %28 = vector.load %arg6[%c0_24, %c0_25] : memref<256x1xf32, #tpu.memory_space<vmem>>, vector<256x1xf32>
      %cst_26 = arith.constant dense<0.000000e+00> : vector<2x1xf32>
      %29 = tpu.matmul %27, %28, %cst_26 {dimension_numbers = #tpu.dot_dimension_numbers<[1], [0], [0], [1], [0, 0, 1, 1], [], []>} : vector<2x256xf32>, vector<256x1xf32>, vector<2x1xf32> -> vector<2x1xf32>
      %c0_27 = arith.constant 0 : index
      %c0_28 = arith.constant 0 : index
      %30 = vector.load %arg7[%c0_27, %c0_28] : memref<1x1xf32, #tpu.memory_space<vmem>>, vector<1x1xf32>
      %31 = vector.broadcast %30 : vector<1x1xf32> to vector<2x1xf32>
      %32 = arith.addf %29, %31 : vector<2x1xf32>
      %33 = arith.negf %32 : vector<2x1xf32>
      %34 = math.exp %33 : vector<2x1xf32>
      %cst_29 = arith.constant 1.000000e+00 : f32
      %35 = vector.broadcast %cst_29 : f32 to vector<2x1xf32>
      %36 = arith.addf %35, %34 : vector<2x1xf32>
      %37 = arith.divf %35, %36 : vector<2x1xf32>
      %c0_30 = arith.constant 0 : index
      %c0_31 = arith.constant 0 : index
      %38 = vector.load %arg8[%c0_30, %c0_31] : memref<2x1xf32, #tpu.memory_space<vmem>>, vector<2x1xf32>
      tpu.vector_store %arg8[%c0_30, %c0_31], %37 {strides = array<i32>} : memref<2x1xf32, #tpu.memory_space<vmem>>, vector<2x1xf32>,
    } else {
    }
    return
  }
  func.func @transform_0(%arg0: i32) -> (i32, i32, i32) {
    %c0_i32 = arith.constant 0 : i32
    %c0_i32_0 = arith.constant 0 : i32
    %c0_i32_1 = arith.constant 0 : i32
    return %c0_i32, %arg0, %c0_i32_0 : i32, i32, i32
  }
  func.func @transform_1(%arg0: i32) -> (i32, i32) {
    %c0_i32 = arith.constant 0 : i32
    %c0_i32_0 = arith.constant 0 : i32
    %c0_i32_1 = arith.constant 0 : i32
    return %c0_i32, %c0_i32_0 : i32, i32
  }
  func.func @transform_2(%arg0: i32) -> (i32, i32) {
    %c0_i32 = arith.constant 0 : i32
    %c0_i32_0 = arith.constant 0 : i32
    %c0_i32_1 = arith.constant 0 : i32
    return %c0_i32, %c0_i32_0 : i32, i32
  }
  func.func @transform_3(%arg0: i32) -> (i32, i32) {
    %c0_i32 = arith.constant 0 : i32
    %c0_i32_0 = arith.constant 0 : i32
    %c0_i32_1 = arith.constant 0 : i32
    return %c0_i32, %c0_i32_0 : i32, i32
  }
  func.func @transform_4(%arg0: i32) -> (i32, i32) {
    %c0_i32 = arith.constant 0 : i32
    %c0_i32_0 = arith.constant 0 : i32
    %c0_i32_1 = arith.constant 0 : i32
    return %c0_i32, %c0_i32_0 : i32, i32
  }
  func.func @transform_5(%arg0: i32) -> (i32, i32) {
    %c0_i32 = arith.constant 0 : i32
    %c0_i32_0 = arith.constant 0 : i32
    %c0_i32_1 = arith.constant 0 : i32
    return %c0_i32, %c0_i32_0 : i32, i32
  }
  func.func @transform_6(%arg0: i32) -> (i32, i32) {
    %c0_i32 = arith.constant 0 : i32
    %c0_i32_0 = arith.constant 0 : i32
    %c0_i32_1 = arith.constant 0 : i32
    return %c0_i32, %c0_i32_0 : i32, i32
  }
  func.func @transform_7(%arg0: i32) -> (i32, i32) {
    %c0_i32 = arith.constant 0 : i32
    %c0_i32_0 = arith.constant 0 : i32
    %c0_i32_1 = arith.constant 0 : i32
    return %c0_i32, %c0_i32_0 : i32, i32
  }
}

</mosaic_0001>

<llo_original>
// kernel: audio_transformer_forward.7
$region0: #{audio_transformer_forward.7}
  #allocation0 [shape = 'u32[]', space=smem, size = 0x4, offset = 0x4, fixed_abs, tag = 'smem constant byte address 0x4 - core index']
  #allocation1 [shape = 'u32[144,128]{1,0:T(1,128)}', space=vmem, size = 0x12000, scoped, tag = 'internal scratch']
  %s0 = inlined_call_operand.vmem [shape: f32[2,16,8], index: 0, kind: input, shape index: {}]
  %s1 = inlined_call_operand.vmem [shape: f32[16,128], index: 1, kind: input, shape index: {}]
  %s2 = inlined_call_operand.vmem [shape: f32[1,128], index: 2, kind: input, shape index: {}]
  %s3 = inlined_call_operand.vmem [shape: f32[8,128], index: 3, kind: input, shape index: {}]
  %s4 = inlined_call_operand.vmem [shape: f32[2,8,128], index: 4, kind: output, shape index: {}]
  %s5 = sld [smem:[#allocation0]]
  $region49: #{audio_transformer_forward.7} parent=0
    _
  %s7 = ssub.s32 1, %s5
  %s8 = scalar_select 0, %s7, %s5
  loop: start=0, step=1, limit=4
  $region2: #{audio_transformer_forward.7} parent=0 // loop_pre_header
    _
  $region3: #{audio_transformer_forward.7} parent=0 // loop_header
    %s10 = sphi 0, %s14
    %p11 = scmp.ge.s32.totalorder %s10, 4
    %s20 = sphi 0, %s22
    %s23 = sphi 0, %s20
    %s24 = sphi 0, %s23
    %s40 = sphi 0, %s24
    %s44 = sphi 0, %s44
    %s46 = sphi 0, %s44
    %s47 = sphi 0, %s46
    %s61 = sphi 0, %s47
    %s65 = sphi 0, %s65
    %s67 = sphi 0, %s65
    %s68 = sphi 0, %s67
    %s82 = sphi 0, %s68
    %s86 = sphi 0, %s86
    %s88 = sphi 0, %s86
    %s89 = sphi 0, %s88
    %s103 = sphi 0, %s89
    %s109 = sphi 0, %s111
    %s112 = sphi 0, %s109
    %s113 = sphi 0, %s112
    %s129 = sphi 0, %s113
  $region4: #{audio_transformer_forward.7} parent=0 // loop_header_branch
    %13 = sbr.rel (%p11) target = $region8
  $region5: #{audio_transformer_forward.7} parent=0 // loop_body
    %s15 = ssub.s32 %s10, 1
    %s16 = ssub.s32 %s10, 2
    %s17 = sadd.s32 %s10, 1
    %s18 = ssub.s32 %s10, %s17
    %p19 = scmp.eq.s32.totalorder %s18, 0
    %s21 = sadd.s32 %s20, 1
    %s22 = scalar_select %p19, %s20, %s21
    %p25 = pneg %p19
    %p26 = scmp.eq.s32.totalorder %s10, 1
    %p27 = por %p25, %p26
    %p28 = scmp.ne.s32.totalorder %s20, %s23
    %p29 = scmp.eq.s32.totalorder %s10, 0
    %p30 = por %p28, %p29
    %p31 = scmp.ne.s32.totalorder %s20, %s23
    %p32 = scmp.eq.s32.totalorder %s15, 1
    %p33 = por %p31, %p32
    %p34 = scmp.ne.s32.totalorder %s23, %s24
    %p35 = scmp.eq.s32.totalorder %s15, 0
    %p36 = por %p34, %p35
    %p37 = scmp.ne.s32.totalorder %s23, %s24
    %p38 = scmp.eq.s32.totalorder %s16, 1
    %p39 = por %p37, %p38
    %p41 = scmp.ne.s32.totalorder %s24, %s40
    %p42 = scmp.eq.s32.totalorder %s16, 0
    %p43 = por %p41, %p42
    %s45 = sadd.s32 %s44, 1
    %p48 = scmp.eq.s32.totalorder %s10, 1
    %p49 = scmp.ne.s32.totalorder %s44, %s46
    %p50 = scmp.eq.s32.totalorder %s10, 0
    %p51 = por %p49, %p50
    %p52 = scmp.ne.s32.totalorder %s44, %s46
    %p53 = scmp.eq.s32.totalorder %s15, 1
    %p54 = por %p52, %p53
    %p55 = scmp.ne.s32.totalorder %s46, %s47
    %p56 = scmp.eq.s32.totalorder %s15, 0
    %p57 = por %p55, %p56
    %p58 = scmp.ne.s32.totalorder %s46, %s47
    %p59 = scmp.eq.s32.totalorder %s16, 1
    %p60 = por %p58, %p59
    %p62 = scmp.ne.s32.totalorder %s47, %s61
    %p63 = scmp.eq.s32.totalorder %s16, 0
    %p64 = por %p62, %p63
    %s66 = sadd.s32 %s65, 1
    %p69 = scmp.eq.s32.totalorder %s10, 1
    %p70 = scmp.ne.s32.totalorder %s65, %s67
    %p71 = scmp.eq.s32.totalorder %s10, 0
    %p72 = por %p70, %p71
    %p73 = scmp.ne.s32.totalorder %s65, %s67
    %p74 = scmp.eq.s32.totalorder %s15, 1
    %p75 = por %p73, %p74
    %p76 = scmp.ne.s32.totalorder %s67, %s68
    %p77 = scmp.eq.s32.totalorder %s15, 0
    %p78 = por %p76, %p77
    %p79 = scmp.ne.s32.totalorder %s67, %s68
    %p80 = scmp.eq.s32.totalorder %s16, 1
    %p81 = por %p79, %p80
    %p83 = scmp.ne.s32.totalorder %s68, %s82
    %p84 = scmp.eq.s32.totalorder %s16, 0
    %p85 = por %p83, %p84
    %s87 = sadd.s32 %s86, 1
    %p90 = scmp.eq.s32.totalorder %s10, 1
    %p91 = scmp.ne.s32.totalorder %s86, %s88
    %p92 = scmp.eq.s32.totalorder %s10, 0
    %p93 = por %p91, %p92
    %p94 = scmp.ne.s32.totalorder %s86, %s88
    %p95 = scmp.eq.s32.totalorder %s15, 1
    %p96 = por %p94, %p95
    %p97 = scmp.ne.s32.totalorder %s88, %s89
    %p98 = scmp.eq.s32.totalorder %s15, 0
    %p99 = por %p97, %p98
    %p100 = scmp.ne.s32.totalorder %s88, %s89
    %p101 = scmp.eq.s32.totalorder %s16, 1
    %p102 = por %p100, %p101
    %p104 = scmp.ne.s32.totalorder %s89, %s103
    %p105 = scmp.eq.s32.totalorder %s16, 0
    %p106 = por %p104, %p105
    %s107 = ssub.s32 %s10, %s17
    %p108 = scmp.eq.s32.totalorder %s107, 0
    %s110 = sadd.s32 %s109, 1
    %s111 = scalar_select %p108, %s109, %s110
    %p114 = pneg %p108
    %p115 = scmp.eq.s32.totalorder %s10, 1
    %p116 = por %p114, %p115
    %p117 = scmp.ne.s32.totalorder %s109, %s112
    %p118 = scmp.eq.s32.totalorder %s10, 0
    %p119 = por %p117, %p118
    %p120 = scmp.ne.s32.totalorder %s109, %s112
    %p121 = scmp.eq.s32.totalorder %s15, 1
    %p122 = por %p120, %p121
    %p123 = scmp.ne.s32.totalorder %s112, %s113
    %p124 = scmp.eq.s32.totalorder %s15, 0
    %p125 = por %p123, %p124
    %p126 = scmp.ne.s32.totalorder %s112, %s113
    %p127 = scmp.eq.s32.totalorder %s16, 1
    %p128 = por %p126, %p127
    %p130 = scmp.ne.s32.totalorder %s113, %s129
    %p131 = scmp.eq.s32.totalorder %s16, 0
    %p132 = por %p130, %p131
    %p133 = scmp.le.s32.totalorder 1, %s10
    %p134 = scmp.lt.s32.totalorder %s10, 3
    %p135 = pnand %p133, %p134
    %p136 = pneg %p135
    // Predicated region
    $region9: #{audio_transformer_forward.7} parent=5 // pred_check
      _
    $region10: #{audio_transformer_forward.7} parent=5 // pred_check_branch
      %138 = sbr.rel (%p135) target = $region12
    $region11: #{audio_transformer_forward.7} parent=5 // pred_region
      %s139 = ssub.s32 %s10, 1
      // Predicated region
      $region13: #{audio_transformer_forward.7} parent=11 // pred_check
        %p140 = pneg %p57
      $region14: #{audio_transformer_forward.7} parent=11 // pred_check_branch
        %142 = sbr.rel (%p140) target = $region16
      $region15: #{audio_transformer_forward.7} parent=11 // pred_region
        _
      $region16: #{audio_transformer_forward.7} parent=11 // pred_fallthru
        _
      // Predicated region
      $region17: #{audio_transformer_forward.7} parent=11 // pred_check
        %p143 = pneg %p78
      $region18: #{audio_transformer_forward.7} parent=11 // pred_check_branch
        %145 = sbr.rel (%p143) target = $region20
      $region19: #{audio_transformer_forward.7} parent=11 // pred_region
        _
      $region20: #{audio_transformer_forward.7} parent=11 // pred_fallthru
        _
      // Predicated region
      $region21: #{audio_transformer_forward.7} parent=11 // pred_check
        %p146 = pneg %p99
      $region22: #{audio_transformer_forward.7} parent=11 // pred_check_branch
        %148 = sbr.rel (%p146) target = $region24
      $region23: #{audio_transformer_forward.7} parent=11 // pred_region
        _
      $region24: #{audio_transformer_forward.7} parent=11 // pred_fallthru
        _
    $region12: #{audio_transformer_forward.7} parent=5 // pred_fallthru
      _
    %p149 = scmp.lt.s32.totalorder %s10, 2
    // Predicated region
    $region25: #{audio_transformer_forward.7} parent=5 // pred_check
      %p150 = pneg %p149
    $region26: #{audio_transformer_forward.7} parent=5 // pred_check_branch
      %152 = sbr.rel (%p150) target = $region28
    $region27: #{audio_transformer_forward.7} parent=5 // pred_region
      // Predicated region
      $region29: #{audio_transformer_forward.7} parent=27 // pred_check
        %p153 = pneg %p30
      $region30: #{audio_transformer_forward.7} parent=27 // pred_check_branch
        %155 = sbr.rel (%p153) target = $region32
      $region31: #{audio_transformer_forward.7} parent=27 // pred_region
        %p156 = scmp.lt.s32.totalorder %s10, 1
        %s157 = scalar_select %p156, %s10, 1
        %s158 = smul.addr %s157, 2
        %s159 = smul.addr %s158, 8
        %s160 = scalar_lea.vmem %s0, %s159
      $region32: #{audio_transformer_forward.7} parent=27 // pred_fallthru
        _
    $region28: #{audio_transformer_forward.7} parent=5 // pred_fallthru
      _
    %p161 = scmp.le.s32.totalorder 1, %s10
    %p162 = scmp.lt.s32.totalorder %s10, 3
    %p163 = pnand %p161, %p162
    %p164 = pneg %p163
    // Predicated region
    $region33: #{audio_transformer_forward.7} parent=5 // pred_check
      _
    $region34: #{audio_transformer_forward.7} parent=5 // pred_check_branch
      %166 = sbr.rel (%p163) target = $region36
    $region35: #{audio_transformer_forward.7} parent=5 // pred_region
      %s167 = ssub.s32 %s10, 1
      %p168 = scmp.lt.s32.totalorder %s15, 1
      %s169 = scalar_select %p168, %s15, 1
      %s170 = smul.addr %s169, 2
      %s171 = smul.addr %s170, 8
      %s172 = scalar_lea.vmem %s0, %s171
      %p173 = pneg %p36
      %p174 = pneg %p33
      %p175 = pneg %p57
      %p176 = pneg %p54
      %p177 = pneg %p78
      %p178 = pneg %p75
      %p179 = pneg %p99
      %p180 = pneg %p96
      %p181 = pneg %p125
      %p182 = pneg %p122
      %p183 = scmp.lt.s32.totalorder %s15, 1
      %s184 = scalar_select %p183, %s15, 1
      %s185 = smul.addr %s184, 8
      %s186 = scalar_lea.vmem %s4, %s185
      %p187 = scmp.lt.s32.totalorder %s15, 1
      %s188 = scalar_select %p187, %s15, 1
      %s189 = smul.addr %s188, 2
      %s190 = smul.addr %s189, 8
      %s191 = scalar_lea.vmem %s0, %s190
      %p192 = scmp.lt.s32.totalorder %s15, 1
      %s193 = scalar_select %p192, %s15, 1
      %s194 = smul.addr %s193, 8
      %s195 = scalar_lea.vmem %s4, %s194
      %v196 = vld [vmem:[%s191] sm:$0xff]
      %v197 = vld [vmem:[%s191 + $0x8] sm:$0xff]
      %v198 = vld [vmem:[%s1] sm:$0xff]
      %v199 = vld [vmem:[%s1 + $0x8] sm:$0xff]
      %v200 = vld [vmem:[%s2] sm:$0x1]
      %v202 = vlaneseq
      %v203 = vshrl.u32 %v202, 7
      %v204 = vsub.s32 0, %v203
      %v205 = vrot.slane %v200, %v204
      %207 = vxpose.xlu0.b32.start [1/16] %v196, 128
      %208 = vxpose.xlu0.b32.cont [2/16] %v197, 128
      %209 = vxpose.xlu0.b32.cont [3/16] 0.0, 128
      %210 = vxpose.xlu0.b32.cont [4/16] 0.0, 128
      %211 = vxpose.xlu0.b32.cont [5/16] 0.0, 128
      %212 = vxpose.xlu0.b32.cont [6/16] 0.0, 128
      %213 = vxpose.xlu0.b32.cont [7/16] 0.0, 128
      %214 = vxpose.xlu0.b32.cont [8/16] 0.0, 128
      %215 = vxpose.xlu0.b32.cont [9/16] 0.0, 128
      %216 = vxpose.xlu0.b32.cont [10/16] 0.0, 128
      %217 = vxpose.xlu0.b32.cont [11/16] 0.0, 128
      %218 = vxpose.xlu0.b32.cont [12/16] 0.0, 128
      %219 = vxpose.xlu0.b32.cont [13/16] 0.0, 128
      %220 = vxpose.xlu0.b32.cont [14/16] 0.0, 128
      %221 = vxpose.xlu0.b32.cont [15/16] 0.0, 128
      %222 = vxpose.xlu0.b32.end [16/16] 0.0, 128
      %v223 = vpop.trf.xlu0
      %v224 = vpop.trf.xlu0
      %v225 = vpop.trf.xlu0
      %v226 = vpop.trf.xlu0
      %v227 = vpop.trf.xlu0
      %v228 = vpop.trf.xlu0
      %v229 = vpop.trf.xlu0
      %v230 = vpop.trf.xlu0
      %v231 = vpop.trf.xlu0
      %v232 = vpop.trf.xlu0
      %v233 = vpop.trf.xlu0
      %v234 = vpop.trf.xlu0
      %v235 = vpop.trf.xlu0
      %v236 = vpop.trf.xlu0
      %v237 = vpop.trf.xlu0
      %v238 = vpop.trf.xlu0
      %vm239 = vcmask 130048
      %v241 = vsel %vm239, %v223, 0
      %243 = vmatprep.subr.mxu0 0.0
      %244 = vmatpush1.msra.mxu0 %v198
      %245 = vmatprep.subr.mxu0 0.0
      %246 = vmatpush1.msra.mxu0 %v199
      %247 = vmatprep.subr.mxu0 0.0
      %248 = vmatpush1.msra.mxu0 0.0
      %249 = vmatprep.subr.mxu0 0.0
      %250 = vmatpush1.msra.mxu0 0.0
      %251 = vmatprep.subr.mxu0 0.0
      %252 = vmatpush1.msra.mxu0 0.0
      %253 = vmatprep.subr.mxu0 0.0
      %254 = vmatpush1.msra.mxu0 0.0
      %255 = vmatprep.subr.mxu0 0.0
      %256 = vmatpush1.msra.mxu0 0.0
      %257 = vmatprep.subr.mxu0 0.0
      %258 = vmatpush1.msra.mxu0 0.0
      %259 = vmatprep.subr.mxu0 0.0
      %260 = vmatpush1.msra.mxu0 0.0
      %261 = vmatprep.subr.mxu0 0.0
      %262 = vmatpush1.msra.mxu0 0.0
      %263 = vmatprep.subr.mxu0 0.0
      %264 = vmatpush1.msra.mxu0 0.0
      %265 = vmatprep.subr.mxu0 0.0
      %266 = vmatpush1.msra.mxu0 0.0
      %267 = vmatprep.subr.mxu0 0.0
      %268 = vmatpush1.msra.mxu0 0.0
      %269 = vmatprep.subr.mxu0 0.0
      %270 = vmatpush1.msra.mxu0 0.0
      %271 = vmatprep.subr.mxu0 0.0
      %272 = vmatpush1.msra.mxu0 0.0
      %273 = vmatprep.subr.mxu0 0.0
      %274 = vmatpush1.msra.mxu0 0.0
      %275 = vmatprep.subr.mxu0 0.0
      %276 = vmatpush1.msra.mxu0 0.0
      %277 = vmatprep.subr.mxu0 0.0
      %278 = vmatpush1.msra.mxu0 0.0
      %279 = vmatprep.subr.mxu0 0.0
      %280 = vmatpush1.msra.mxu0 0.0
      %281 = vmatprep.subr.mxu0 0.0
      %282 = vmatpush1.msra.mxu0 0.0
      %283 = vmatprep.subr.mxu0 0.0
      %284 = vmatpush1.msra.mxu0 0.0
      %285 = vmatprep.subr.mxu0 0.0
      %286 = vmatpush1.msra.mxu0 0.0
      %287 = vmatprep.subr.mxu0 0.0
      %288 = vmatpush1.msra.mxu0 0.0
      %289 = vmatprep.subr.mxu0 0.0
      %290 = vmatpush1.msra.mxu0 0.0
      %291 = vmatprep.subr.mxu0 0.0
      %292 = vmatpush1.msra.mxu0 0.0
      %293 = vmatprep.subr.mxu0 0.0
      %294 = vmatpush1.msra.mxu0 0.0
      %295 = vmatprep.subr.mxu0 0.0
      %296 = vmatpush1.msra.mxu0 0.0
      %297 = vmatprep.subr.mxu0 0.0
      %298 = vmatpush1.msra.mxu0 0.0
      %299 = vmatprep.subr.mxu0 0.0
      %300 = vmatpush1.msra.mxu0 0.0
      %301 = vmatprep.subr.mxu0 0.0
      %302 = vmatpush1.msra.mxu0 0.0
      %303 = vmatprep.subr.mxu0 0.0
      %304 = vmatpush1.msra.mxu0 0.0
      %305 = vmatprep.subr.mxu0 0.0
      %306 = vmatpush1.msra.mxu0 0.0
      %307 = vmatprep.mubr.f32.mxu0 0.0
      %308 = vmatmul.mubr.f32.gmra.mrb[0].mxu0 %v241
      %v309 = vpop.f32.mrb[0].mxu0
      %v310 = vadd.f32 %v205, %v309
      %v311 = vpop.f32.mrb[0].mxu0
      %312 = vdwg.mxu0
      %v313 = vld [vmem:[%s3] sm:$0xff]
      %v314 = vadd.f32 %v310, %v313
      %315 = vst [vmem:[%s195] sm:$0xff] %v314
      %p316 = scmp.lt.s32.totalorder %s15, 1
      %s317 = scalar_select %p316, %s15, 1
      %s318 = smul.addr %s317, 8
      %s319 = scalar_lea.vmem %s4, %s318
      // Predicated region
      $region37: #{audio_transformer_forward.7} parent=35 // pred_check
        %p320 = pneg %p122
      $region38: #{audio_transformer_forward.7} parent=35 // pred_check_branch
        %322 = sbr.rel (%p320) target = $region40
      $region39: #{audio_transformer_forward.7} parent=35 // pred_region
        _
      $region40: #{audio_transformer_forward.7} parent=35 // pred_fallthru
        _
    $region36: #{audio_transformer_forward.7} parent=5 // pred_fallthru
      _
    %p323 = scmp.le.s32.totalorder 2, %s10
    // Predicated region
    $region41: #{audio_transformer_forward.7} parent=5 // pred_check
      %p324 = pneg %p323
    $region42: #{audio_transformer_forward.7} parent=5 // pred_check_branch
      %326 = sbr.rel (%p324) target = $region44
    $region43: #{audio_transformer_forward.7} parent=5 // pred_region
      %s327 = ssub.s32 %s10, 2
      // Predicated region
      $region45: #{audio_transformer_forward.7} parent=43 // pred_check
        %p328 = pneg %p128
      $region46: #{audio_transformer_forward.7} parent=43 // pred_check_branch
        %330 = sbr.rel (%p328) target = $region48
      $region47: #{audio_transformer_forward.7} parent=43 // pred_region
        %p331 = scmp.lt.s32.totalorder %s16, 1
        %s332 = scalar_select %p331, %s16, 1
        %s333 = smul.addr %s332, 8
        %s334 = scalar_lea.vmem %s4, %s333
      $region48: #{audio_transformer_forward.7} parent=43 // pred_fallthru
        _
    $region44: #{audio_transformer_forward.7} parent=5 // pred_fallthru
      _
  $region6: #{audio_transformer_forward.7} parent=0 // loop_footer
    %s14 = sadd.s32 1, %s10
  $region7: #{audio_transformer_forward.7} parent=0 // loop_footer_branch
    %9 = sbr.rel target = $region3
  $region8: #{audio_transformer_forward.7} parent=0 // loop_exit
    _

// kernel: audio_transformer_forward.8
$region0: #{audio_transformer_forward.8}
  #allocation0 [shape = 'u32[]', space=smem, size = 0x4, offset = 0x4, fixed_abs, tag = 'smem constant byte address 0x4 - core index']
  #allocation1 [shape = 'u32[144,128]{1,0:T(1,128)}', space=vmem, size = 0x12000, scoped, tag = 'internal scratch']
  %s0 = inlined_call_operand.vmem [shape: f32[2,8,8], index: 0, kind: input, shape index: {}]
  %s1 = inlined_call_operand.vmem [shape: f32[8,128], index: 1, kind: input, shape index: {}]
  %s2 = inlined_call_operand.vmem [shape: f32[1,128], index: 2, kind: input, shape index: {}]
  %s3 = inlined_call_operand.vmem [shape: f32[8,128], index: 3, kind: input, shape index: {}]
  %s4 = inlined_call_operand.vmem [shape: f32[2,8,128], index: 4, kind: output, shape index: {}]
  %s5 = sld [smem:[#allocation0]]
  $region49: #{audio_transformer_forward.8} parent=0
    _
  %s7 = ssub.s32 1, %s5
  %s8 = scalar_select 0, %s7, %s5
  loop: start=0, step=1, limit=4
  $region2: #{audio_transformer_forward.8} parent=0 // loop_pre_header
    _
  $region3: #{audio_transformer_forward.8} parent=0 // loop_header
    %s10 = sphi 0, %s14
    %p11 = scmp.ge.s32.totalorder %s10, 4
    %s20 = sphi 0, %s22
    %s23 = sphi 0, %s20
    %s24 = sphi 0, %s23
    %s40 = sphi 0, %s24
    %s44 = sphi 0, %s44
    %s46 = sphi 0, %s44
    %s47 = sphi 0, %s46
    %s61 = sphi 0, %s47
    %s65 = sphi 0, %s65
    %s67 = sphi 0, %s65
    %s68 = sphi 0, %s67
    %s82 = sphi 0, %s68
    %s86 = sphi 0, %s86
    %s88 = sphi 0, %s86
    %s89 = sphi 0, %s88
    %s103 = sphi 0, %s89
    %s109 = sphi 0, %s111
    %s112 = sphi 0, %s109
    %s113 = sphi 0, %s112
    %s129 = sphi 0, %s113
  $region4: #{audio_transformer_forward.8} parent=0 // loop_header_branch
    %13 = sbr.rel (%p11) target = $region8
  $region5: #{audio_transformer_forward.8} parent=0 // loop_body
    %s15 = ssub.s32 %s10, 1
    %s16 = ssub.s32 %s10, 2
    %s17 = sadd.s32 %s10, 1
    %s18 = ssub.s32 %s10, %s17
    %p19 = scmp.eq.s32.totalorder %s18, 0
    %s21 = sadd.s32 %s20, 1
    %s22 = scalar_select %p19, %s20, %s21
    %p25 = pneg %p19
    %p26 = scmp.eq.s32.totalorder %s10, 1
    %p27 = por %p25, %p26
    %p28 = scmp.ne.s32.totalorder %s20, %s23
    %p29 = scmp.eq.s32.totalorder %s10, 0
    %p30 = por %p28, %p29
    %p31 = scmp.ne.s32.totalorder %s20, %s23
    %p32 = scmp.eq.s32.totalorder %s15, 1
    %p33 = por %p31, %p32
    %p34 = scmp.ne.s32.totalorder %s23, %s24
    %p35 = scmp.eq.s32.totalorder %s15, 0
    %p36 = por %p34, %p35
    %p37 = scmp.ne.s32.totalorder %s23, %s24
    %p38 = scmp.eq.s32.totalorder %s16, 1
    %p39 = por %p37, %p38
    %p41 = scmp.ne.s32.totalorder %s24, %s40
    %p42 = scmp.eq.s32.totalorder %s16, 0
    %p43 = por %p41, %p42
    %s45 = sadd.s32 %s44, 1
    %p48 = scmp.eq.s32.totalorder %s10, 1
    %p49 = scmp.ne.s32.totalorder %s44, %s46
    %p50 = scmp.eq.s32.totalorder %s10, 0
    %p51 = por %p49, %p50
    %p52 = scmp.ne.s32.totalorder %s44, %s46
    %p53 = scmp.eq.s32.totalorder %s15, 1
    %p54 = por %p52, %p53
    %p55 = scmp.ne.s32.totalorder %s46, %s47
    %p56 = scmp.eq.s32.totalorder %s15, 0
    %p57 = por %p55, %p56
    %p58 = scmp.ne.s32.totalorder %s46, %s47
    %p59 = scmp.eq.s32.totalorder %s16, 1
    %p60 = por %p58, %p59
    %p62 = scmp.ne.s32.totalorder %s47, %s61
    %p63 = scmp.eq.s32.totalorder %s16, 0
    %p64 = por %p62, %p63
    %s66 = sadd.s32 %s65, 1
    %p69 = scmp.eq.s32.totalorder %s10, 1
    %p70 = scmp.ne.s32.totalorder %s65, %s67
    %p71 = scmp.eq.s32.totalorder %s10, 0
    %p72 = por %p70, %p71
    %p73 = scmp.ne.s32.totalorder %s65, %s67
    %p74 = scmp.eq.s32.totalorder %s15, 1
    %p75 = por %p73, %p74
    %p76 = scmp.ne.s32.totalorder %s67, %s68
    %p77 = scmp.eq.s32.totalorder %s15, 0
    %p78 = por %p76, %p77
    %p79 = scmp.ne.s32.totalorder %s67, %s68
    %p80 = scmp.eq.s32.totalorder %s16, 1
    %p81 = por %p79, %p80
    %p83 = scmp.ne.s32.totalorder %s68, %s82
    %p84 = scmp.eq.s32.totalorder %s16, 0
    %p85 = por %p83, %p84
    %s87 = sadd.s32 %s86, 1
    %p90 = scmp.eq.s32.totalorder %s10, 1
    %p91 = scmp.ne.s32.totalorder %s86, %s88
    %p92 = scmp.eq.s32.totalorder %s10, 0
    %p93 = por %p91, %p92
    %p94 = scmp.ne.s32.totalorder %s86, %s88
    %p95 = scmp.eq.s32.totalorder %s15, 1
    %p96 = por %p94, %p95
    %p97 = scmp.ne.s32.totalorder %s88, %s89
    %p98 = scmp.eq.s32.totalorder %s15, 0
    %p99 = por %p97, %p98
    %p100 = scmp.ne.s32.totalorder %s88, %s89
    %p101 = scmp.eq.s32.totalorder %s16, 1
    %p102 = por %p100, %p101
    %p104 = scmp.ne.s32.totalorder %s89, %s103
    %p105 = scmp.eq.s32.totalorder %s16, 0
    %p106 = por %p104, %p105
    %s107 = ssub.s32 %s10, %s17
    %p108 = scmp.eq.s32.totalorder %s107, 0
    %s110 = sadd.s32 %s109, 1
    %s111 = scalar_select %p108, %s109, %s110
    %p114 = pneg %p108
    %p115 = scmp.eq.s32.totalorder %s10, 1
    %p116 = por %p114, %p115
    %p117 = scmp.ne.s32.totalorder %s109, %s112
    %p118 = scmp.eq.s32.totalorder %s10, 0
    %p119 = por %p117, %p118
    %p120 = scmp.ne.s32.totalorder %s109, %s112
    %p121 = scmp.eq.s32.totalorder %s15, 1
    %p122 = por %p120, %p121
    %p123 = scmp.ne.s32.totalorder %s112, %s113
    %p124 = scmp.eq.s32.totalorder %s15, 0
    %p125 = por %p123, %p124
    %p126 = scmp.ne.s32.totalorder %s112, %s113
    %p127 = scmp.eq.s32.totalorder %s16, 1
    %p128 = por %p126, %p127
    %p130 = scmp.ne.s32.totalorder %s113, %s129
    %p131 = scmp.eq.s32.totalorder %s16, 0
    %p132 = por %p130, %p131
    %p133 = scmp.le.s32.totalorder 1, %s10
    %p134 = scmp.lt.s32.totalorder %s10, 3
    %p135 = pnand %p133, %p134
    %p136 = pneg %p135
    // Predicated region
    $region9: #{audio_transformer_forward.8} parent=5 // pred_check
      _
    $region10: #{audio_transformer_forward.8} parent=5 // pred_check_branch
      %138 = sbr.rel (%p135) target = $region12
    $region11: #{audio_transformer_forward.8} parent=5 // pred_region
      %s139 = ssub.s32 %s10, 1
      // Predicated region
      $region13: #{audio_transformer_forward.8} parent=11 // pred_check
        %p140 = pneg %p57
      $region14: #{audio_transformer_forward.8} parent=11 // pred_check_branch
        %142 = sbr.rel (%p140) target = $region16
      $region15: #{audio_transformer_forward.8} parent=11 // pred_region
        _
      $region16: #{audio_transformer_forward.8} parent=11 // pred_fallthru
        _
      // Predicated region
      $region17: #{audio_transformer_forward.8} parent=11 // pred_check
        %p143 = pneg %p78
      $region18: #{audio_transformer_forward.8} parent=11 // pred_check_branch
        %145 = sbr.rel (%p143) target = $region20
      $region19: #{audio_transformer_forward.8} parent=11 // pred_region
        _
      $region20: #{audio_transformer_forward.8} parent=11 // pred_fallthru
        _
      // Predicated region
      $region21: #{audio_transformer_forward.8} parent=11 // pred_check
        %p146 = pneg %p99
      $region22: #{audio_transformer_forward.8} parent=11 // pred_check_branch
        %148 = sbr.rel (%p146) target = $region24
      $region23: #{audio_transformer_forward.8} parent=11 // pred_region
        _
      $region24: #{audio_transformer_forward.8} parent=11 // pred_fallthru
        _
    $region12: #{audio_transformer_forward.8} parent=5 // pred_fallthru
      _
    %p149 = scmp.lt.s32.totalorder %s10, 2
    // Predicated region
    $region25: #{audio_transformer_forward.8} parent=5 // pred_check
      %p150 = pneg %p149
    $region26: #{audio_transformer_forward.8} parent=5 // pred_check_branch
      %152 = sbr.rel (%p150) target = $region28
    $region27: #{audio_transformer_forward.8} parent=5 // pred_region
      // Predicated region
      $region29: #{audio_transformer_forward.8} parent=27 // pred_check
        %p153 = pneg %p30
      $region30: #{audio_transformer_forward.8} parent=27 // pred_check_branch
        %155 = sbr.rel (%p153) target = $region32
      $region31: #{audio_transformer_forward.8} parent=27 // pred_region
        %p156 = scmp.lt.s32.totalorder %s10, 1
        %s157 = scalar_select %p156, %s10, 1
        %s158 = smul.addr %s157, 8
        %s159 = scalar_lea.vmem %s0, %s158
      $region32: #{audio_transformer_forward.8} parent=27 // pred_fallthru
        _
    $region28: #{audio_transformer_forward.8} parent=5 // pred_fallthru
      _
    %p160 = scmp.le.s32.totalorder 1, %s10
    %p161 = scmp.lt.s32.totalorder %s10, 3
    %p162 = pnand %p160, %p161
    %p163 = pneg %p162
    // Predicated region
    $region33: #{audio_transformer_forward.8} parent=5 // pred_check
      _
    $region34: #{audio_transformer_forward.8} parent=5 // pred_check_branch
      %165 = sbr.rel (%p162) target = $region36
    $region35: #{audio_transformer_forward.8} parent=5 // pred_region
      %s166 = ssub.s32 %s10, 1
      %p167 = scmp.lt.s32.totalorder %s15, 1
      %s168 = scalar_select %p167, %s15, 1
      %s169 = smul.addr %s168, 8
      %s170 = scalar_lea.vmem %s0, %s169
      %p171 = pneg %p36
      %p172 = pneg %p33
      %p173 = pneg %p57
      %p174 = pneg %p54
      %p175 = pneg %p78
      %p176 = pneg %p75
      %p177 = pneg %p99
      %p178 = pneg %p96
      %p179 = pneg %p125
      %p180 = pneg %p122
      %p181 = scmp.lt.s32.totalorder %s15, 1
      %s182 = scalar_select %p181, %s15, 1
      %s183 = smul.addr %s182, 8
      %s184 = scalar_lea.vmem %s4, %s183
      %p185 = scmp.lt.s32.totalorder %s15, 1
      %s186 = scalar_select %p185, %s15, 1
      %s187 = smul.addr %s186, 8
      %s188 = scalar_lea.vmem %s0, %s187
      %p189 = scmp.lt.s32.totalorder %s15, 1
      %s190 = scalar_select %p189, %s15, 1
      %s191 = smul.addr %s190, 8
      %s192 = scalar_lea.vmem %s4, %s191
      %v193 = vld [vmem:[%s188] sm:$0xff]
      %v194 = vld [vmem:[%s1] sm:$0xff]
      %v195 = vld [vmem:[%s2] sm:$0x1]
      %v197 = vlaneseq
      %v198 = vshrl.u32 %v197, 7
      %v199 = vsub.s32 0, %v198
      %v200 = vrot.slane %v195, %v199
      %202 = vxpose.xlu0.b32.start [1/16] %v193, 128
      %203 = vxpose.xlu0.b32.cont [2/16] 0.0, 128
      %204 = vxpose.xlu0.b32.cont [3/16] 0.0, 128
      %205 = vxpose.xlu0.b32.cont [4/16] 0.0, 128
      %206 = vxpose.xlu0.b32.cont [5/16] 0.0, 128
      %207 = vxpose.xlu0.b32.cont [6/16] 0.0, 128
      %208 = vxpose.xlu0.b32.cont [7/16] 0.0, 128
      %209 = vxpose.xlu0.b32.cont [8/16] 0.0, 128
      %210 = vxpose.xlu0.b32.cont [9/16] 0.0, 128
      %211 = vxpose.xlu0.b32.cont [10/16] 0.0, 128
      %212 = vxpose.xlu0.b32.cont [11/16] 0.0, 128
      %213 = vxpose.xlu0.b32.cont [12/16] 0.0, 128
      %214 = vxpose.xlu0.b32.cont [13/16] 0.0, 128
      %215 = vxpose.xlu0.b32.cont [14/16] 0.0, 128
      %216 = vxpose.xlu0.b32.cont [15/16] 0.0, 128
      %217 = vxpose.xlu0.b32.end [16/16] 0.0, 128
      %v218 = vpop.trf.xlu0
      %v219 = vpop.trf.xlu0
      %v220 = vpop.trf.xlu0
      %v221 = vpop.trf.xlu0
      %v222 = vpop.trf.xlu0
      %v223 = vpop.trf.xlu0
      %v224 = vpop.trf.xlu0
      %v225 = vpop.trf.xlu0
      %v226 = vpop.trf.xlu0
      %v227 = vpop.trf.xlu0
      %v228 = vpop.trf.xlu0
      %v229 = vpop.trf.xlu0
      %v230 = vpop.trf.xlu0
      %v231 = vpop.trf.xlu0
      %v232 = vpop.trf.xlu0
      %v233 = vpop.trf.xlu0
      %vm234 = vcmask 64512
      %v236 = vsel %vm234, %v218, 0
      %238 = vmatprep.subr.mxu0 0.0
      %239 = vmatpush1.msra.mxu0 %v194
      %240 = vmatprep.subr.mxu0 0.0
      %241 = vmatpush1.msra.mxu0 0.0
      %242 = vmatprep.subr.mxu0 0.0
      %243 = vmatpush1.msra.mxu0 0.0
      %244 = vmatprep.subr.mxu0 0.0
      %245 = vmatpush1.msra.mxu0 0.0
      %246 = vmatprep.subr.mxu0 0.0
      %247 = vmatpush1.msra.mxu0 0.0
      %248 = vmatprep.subr.mxu0 0.0
      %249 = vmatpush1.msra.mxu0 0.0
      %250 = vmatprep.subr.mxu0 0.0
      %251 = vmatpush1.msra.mxu0 0.0
      %252 = vmatprep.subr.mxu0 0.0
      %253 = vmatpush1.msra.mxu0 0.0
      %254 = vmatprep.subr.mxu0 0.0
      %255 = vmatpush1.msra.mxu0 0.0
      %256 = vmatprep.subr.mxu0 0.0
      %257 = vmatpush1.msra.mxu0 0.0
      %258 = vmatprep.subr.mxu0 0.0
      %259 = vmatpush1.msra.mxu0 0.0
      %260 = vmatprep.subr.mxu0 0.0
      %261 = vmatpush1.msra.mxu0 0.0
      %262 = vmatprep.subr.mxu0 0.0
      %263 = vmatpush1.msra.mxu0 0.0
      %264 = vmatprep.subr.mxu0 0.0
      %265 = vmatpush1.msra.mxu0 0.0
      %266 = vmatprep.subr.mxu0 0.0
      %267 = vmatpush1.msra.mxu0 0.0
      %268 = vmatprep.subr.mxu0 0.0
      %269 = vmatpush1.msra.mxu0 0.0
      %270 = vmatprep.subr.mxu0 0.0
      %271 = vmatpush1.msra.mxu0 0.0
      %272 = vmatprep.subr.mxu0 0.0
      %273 = vmatpush1.msra.mxu0 0.0
      %274 = vmatprep.subr.mxu0 0.0
      %275 = vmatpush1.msra.mxu0 0.0
      %276 = vmatprep.subr.mxu0 0.0
      %277 = vmatpush1.msra.mxu0 0.0
      %278 = vmatprep.subr.mxu0 0.0
      %279 = vmatpush1.msra.mxu0 0.0
      %280 = vmatprep.subr.mxu0 0.0
      %281 = vmatpush1.msra.mxu0 0.0
      %282 = vmatprep.subr.mxu0 0.0
      %283 = vmatpush1.msra.mxu0 0.0
      %284 = vmatprep.subr.mxu0 0.0
      %285 = vmatpush1.msra.mxu0 0.0
      %286 = vmatprep.subr.mxu0 0.0
      %287 = vmatpush1.msra.mxu0 0.0
      %288 = vmatprep.subr.mxu0 0.0
      %289 = vmatpush1.msra.mxu0 0.0
      %290 = vmatprep.subr.mxu0 0.0
      %291 = vmatpush1.msra.mxu0 0.0
      %292 = vmatprep.subr.mxu0 0.0
      %293 = vmatpush1.msra.mxu0 0.0
      %294 = vmatprep.subr.mxu0 0.0
      %295 = vmatpush1.msra.mxu0 0.0
      %296 = vmatprep.subr.mxu0 0.0
      %297 = vmatpush1.msra.mxu0 0.0
      %298 = vmatprep.subr.mxu0 0.0
      %299 = vmatpush1.msra.mxu0 0.0
      %300 = vmatprep.subr.mxu0 0.0
      %301 = vmatpush1.msra.mxu0 0.0
      %302 = vmatprep.mubr.f32.mxu0 0.0
      %303 = vmatmul.mubr.f32.gmra.mrb[0].mxu0 %v236
      %v304 = vpop.f32.mrb[0].mxu0
      %v305 = vadd.f32 %v200, %v304
      %v306 = vpop.f32.mrb[0].mxu0
      %307 = vdwg.mxu0
      %v308 = vld [vmem:[%s3] sm:$0xff]
      %v309 = vadd.f32 %v305, %v308
      %310 = vst [vmem:[%s192] sm:$0xff] %v309
      %p311 = scmp.lt.s32.totalorder %s15, 1
      %s312 = scalar_select %p311, %s15, 1
      %s313 = smul.addr %s312, 8
      %s314 = scalar_lea.vmem %s4, %s313
      // Predicated region
      $region37: #{audio_transformer_forward.8} parent=35 // pred_check
        %p315 = pneg %p122
      $region38: #{audio_transformer_forward.8} parent=35 // pred_check_branch
        %317 = sbr.rel (%p315) target = $region40
      $region39: #{audio_transformer_forward.8} parent=35 // pred_region
        _
      $region40: #{audio_transformer_forward.8} parent=35 // pred_fallthru
        _
    $region36: #{audio_transformer_forward.8} parent=5 // pred_fallthru
      _
    %p318 = scmp.le.s32.totalorder 2, %s10
    // Predicated region
    $region41: #{audio_transformer_forward.8} parent=5 // pred_check
      %p319 = pneg %p318
    $region42: #{audio_transformer_forward.8} parent=5 // pred_check_branch
      %321 = sbr.rel (%p319) target = $region44
    $region43: #{audio_transformer_forward.8} parent=5 // pred_region
      %s322 = ssub.s32 %s10, 2
      // Predicated region
      $region45: #{audio_transformer_forward.8} parent=43 // pred_check
        %p323 = pneg %p128
      $region46: #{audio_transformer_forward.8} parent=43 // pred_check_branch
        %325 = sbr.rel (%p323) target = $region48
      $region47: #{audio_transformer_forward.8} parent=43 // pred_region
        %p326 = scmp.lt.s32.totalorder %s16, 1
        %s327 = scalar_select %p326, %s16, 1
        %s328 = smul.addr %s327, 8
        %s329 = scalar_lea.vmem %s4, %s328
      $region48: #{audio_transformer_forward.8} parent=43 // pred_fallthru
        _
    $region44: #{audio_transformer_forward.8} parent=5 // pred_fallthru
      _
  $region6: #{audio_transformer_forward.8} parent=0 // loop_footer
    %s14 = sadd.s32 1, %s10
  $region7: #{audio_transformer_forward.8} parent=0 // loop_footer_branch
    %9 = sbr.rel target = $region3
  $region8: #{audio_transformer_forward.8} parent=0 // loop_exit
    _

// kernel: audio_transformer_forward.10
$region0: #{audio_transformer_forward.10}
  #allocation0 [shape = 'u32[]', space=smem, size = 0x4, offset = 0x4, fixed_abs, tag = 'smem constant byte address 0x4 - core index']
  #allocation1 [shape = 'u32[144,128]{1,0:T(1,128)}', space=vmem, size = 0x12000, scoped, tag = 'internal scratch']
  #allocation2 [shape = 'f32[32,128]{1,0:T(8,128)}', space=vmem, size = 0x4000, scoped, tag = 'scratch operand']
  %s0 = inlined_call_operand.vmem [shape: f32[32,128], index: 0, kind: input, shape index: {}]
  %s1 = inlined_call_operand.vmem [shape: f32[128,256], index: 1, kind: input, shape index: {}]
  %s2 = inlined_call_operand.vmem [shape: f32[1,256], index: 2, kind: input, shape index: {}]
  %s3 = inlined_call_operand.vmem [shape: f32[256,128], index: 3, kind: input, shape index: {}]
  %s4 = inlined_call_operand.vmem [shape: f32[1,128], index: 4, kind: input, shape index: {}]
  %s5 = inlined_call_operand.vmem [shape: f32[1,128], index: 5, kind: input, shape index: {}]
  %s6 = inlined_call_operand.vmem [shape: f32[1,128], index: 6, kind: input, shape index: {}]
  %s7 = inlined_call_operand.vmem [shape: f32[32,128], index: 7, kind: output, shape index: {}]
  %s8 = sld [smem:[#allocation0]]
  $region46: #{audio_transformer_forward.10} parent=0
    _
  %s10 = ssub.s32 1, %s8
  %s11 = scalar_select 0, %s10, %s8
  // Predicated region
  $region2: #{audio_transformer_forward.10} parent=0 // pred_check
    _
  $region3: #{audio_transformer_forward.10} parent=0 // pred_check_branch
    %13 = sbr.rel (0) target = $region5
  $region4: #{audio_transformer_forward.10} parent=0 // pred_region
    _
  $region5: #{audio_transformer_forward.10} parent=0 // pred_fallthru
    _
  // Predicated region
  $region6: #{audio_transformer_forward.10} parent=0 // pred_check
    _
  $region7: #{audio_transformer_forward.10} parent=0 // pred_check_branch
    %15 = sbr.rel (0) target = $region9
  $region8: #{audio_transformer_forward.10} parent=0 // pred_region
    _
  $region9: #{audio_transformer_forward.10} parent=0 // pred_fallthru
    _
  // Predicated region
  $region10: #{audio_transformer_forward.10} parent=0 // pred_check
    _
  $region11: #{audio_transformer_forward.10} parent=0 // pred_check_branch
    %17 = sbr.rel (0) target = $region13
  $region12: #{audio_transformer_forward.10} parent=0 // pred_region
    _
  $region13: #{audio_transformer_forward.10} parent=0 // pred_fallthru
    _
  // Predicated region
  $region14: #{audio_transformer_forward.10} parent=0 // pred_check
    _
  $region15: #{audio_transformer_forward.10} parent=0 // pred_check_branch
    %19 = sbr.rel (0) target = $region17
  $region16: #{audio_transformer_forward.10} parent=0 // pred_region
    _
  $region17: #{audio_transformer_forward.10} parent=0 // pred_fallthru
    _
  // Predicated region
  $region18: #{audio_transformer_forward.10} parent=0 // pred_check
    _
  $region19: #{audio_transformer_forward.10} parent=0 // pred_check_branch
    %21 = sbr.rel (0) target = $region21
  $region20: #{audio_transformer_forward.10} parent=0 // pred_region
    _
  $region21: #{audio_transformer_forward.10} parent=0 // pred_fallthru
    _
  // Predicated region
  $region22: #{audio_transformer_forward.10} parent=0 // pred_check
    _
  $region23: #{audio_transformer_forward.10} parent=0 // pred_check_branch
    %23 = sbr.rel (0) target = $region25
  $region24: #{audio_transformer_forward.10} parent=0 // pred_region
    _
  $region25: #{audio_transformer_forward.10} parent=0 // pred_fallthru
    _
  // Predicated region
  $region26: #{audio_transformer_forward.10} parent=0 // pred_check
    _
  $region27: #{audio_transformer_forward.10} parent=0 // pred_check_branch
    %25 = sbr.rel (0) target = $region29
  $region28: #{audio_transformer_forward.10} parent=0 // pred_region
    _
  $region29: #{audio_transformer_forward.10} parent=0 // pred_fallthru
    _
  %p26 = scmp.eq.s32.totalorder 0, 0
  // Predicated region
  $region30: #{audio_transformer_forward.10} parent=0 // pred_check
    %p27 = pneg %p26
  $region31: #{audio_transformer_forward.10} parent=0 // pred_check_branch
    %29 = sbr.rel (%p27) target = $region33
  $region32: #{audio_transformer_forward.10} parent=0 // pred_region
    %30 = vst [vmem:[#allocation2] sm:$0xff] 0.0
    %31 = vst [vmem:[#allocation2 + $0x8] sm:$0xff] 0.0
    %32 = vst [vmem:[#allocation2 + $0x10] sm:$0xff] 0.0
    %33 = vst [vmem:[#allocation2 + $0x18] sm:$0xff] 0.0
  $region33: #{audio_transformer_forward.10} parent=0 // pred_fallthru
    _
  %v34 = vld [vmem:[%s0] sm:$0xff]
  %v35 = vld [vmem:[%s0 + $0x8] sm:$0xff]
  %v36 = vld [vmem:[%s0 + $0x10] sm:$0xff]
  %v37 = vld [vmem:[%s0 + $0x18] sm:$0xff]
  %v38 = vld [vmem:[%s1] sm:$0xff]
  %v39 = vld [vmem:[%s1 + $0x8] sm:$0xff]
  %v40 = vld [vmem:[%s1 + $0x10] sm:$0xff]
  %v41 = vld [vmem:[%s1 + $0x18] sm:$0xff]
  %v42 = vld [vmem:[%s1 + $0x20] sm:$0xff]
  %v43 = vld [vmem:[%s1 + $0x28] sm:$0xff]
  %v44 = vld [vmem:[%s1 + $0x30] sm:$0xff]
  %v45 = vld [vmem:[%s1 + $0x38] sm:$0xff]
  %v46 = vld [vmem:[%s1 + $0x40] sm:$0xff]
  %v47 = vld [vmem:[%s1 + $0x48] sm:$0xff]
  %v48 = vld [vmem:[%s1 + $0x50] sm:$0xff]
  %v49 = vld [vmem:[%s1 + $0x58] sm:$0xff]
  %v50 = vld [vmem:[%s1 + $0x60] sm:$0xff]
  %v51 = vld [vmem:[%s1 + $0x68] sm:$0xff]
  %v52 = vld [vmem:[%s1 + $0x70] sm:$0xff]
  %v53 = vld [vmem:[%s1 + $0x78] sm:$0xff]
  %v54 = vld [vmem:[%s1 + $0x80] sm:$0xff]
  %v55 = vld [vmem:[%s1 + $0x88] sm:$0xff]
  %v56 = vld [vmem:[%s1 + $0x90] sm:$0xff]
  %v57 = vld [vmem:[%s1 + $0x98] sm:$0xff]
  %v58 = vld [vmem:[%s1 + $0xa0] sm:$0xff]
  %v59 = vld [vmem:[%s1 + $0xa8] sm:$0xff]
  %v60 = vld [vmem:[%s1 + $0xb0] sm:$0xff]
  %v61 = vld [vmem:[%s1 + $0xb8] sm:$0xff]
  %v62 = vld [vmem:[%s1 + $0xc0] sm:$0xff]
  %v63 = vld [vmem:[%s1 + $0xc8] sm:$0xff]
  %v64 = vld [vmem:[%s1 + $0xd0] sm:$0xff]
  %v65 = vld [vmem:[%s1 + $0xd8] sm:$0xff]
  %v66 = vld [vmem:[%s1 + $0xe0] sm:$0xff]
  %v67 = vld [vmem:[%s1 + $0xe8] sm:$0xff]
  %v68 = vld [vmem:[%s1 + $0xf0] sm:$0xff]
  %v69 = vld [vmem:[%s1 + $0xf8] sm:$0xff]
  %v70 = vld [vmem:[%s3] sm:$0xff]
  %v71 = vld [vmem:[%s3 + $0x8] sm:$0xff]
  %v72 = vld [vmem:[%s3 + $0x10] sm:$0xff]
  %v73 = vld [vmem:[%s3 + $0x18] sm:$0xff]
  %v74 = vld [vmem:[%s3 + $0x20] sm:$0xff]
  %v75 = vld [vmem:[%s3 + $0x28] sm:$0xff]
  %v76 = vld [vmem:[%s3 + $0x30] sm:$0xff]
  %v77 = vld [vmem:[%s3 + $0x38] sm:$0xff]
  %v78 = vld [vmem:[%s3 + $0x40] sm:$0xff]
  %v79 = vld [vmem:[%s3 + $0x48] sm:$0xff]
  %v80 = vld [vmem:[%s3 + $0x50] sm:$0xff]
  %v81 = vld [vmem:[%s3 + $0x58] sm:$0xff]
  %v82 = vld [vmem:[%s3 + $0x60] sm:$0xff]
  %v83 = vld [vmem:[%s3 + $0x68] sm:$0xff]
  %v84 = vld [vmem:[%s3 + $0x70] sm:$0xff]
  %v85 = vld [vmem:[%s3 + $0x78] sm:$0xff]
  %v86 = vld [vmem:[%s3 + $0x80] sm:$0xff]
  %v87 = vld [vmem:[%s3 + $0x88] sm:$0xff]
  %v88 = vld [vmem:[%s3 + $0x90] sm:$0xff]
  %v89 = vld [vmem:[%s3 + $0x98] sm:$0xff]
  %v90 = vld [vmem:[%s3 + $0xa0] sm:$0xff]
  %v91 = vld [vmem:[%s3 + $0xa8] sm:$0xff]
  %v92 = vld [vmem:[%s3 + $0xb0] sm:$0xff]
  %v93 = vld [vmem:[%s3 + $0xb8] sm:$0xff]
  %v94 = vld [vmem:[%s3 + $0xc0] sm:$0xff]
  %v95 = vld [vmem:[%s3 + $0xc8] sm:$0xff]
  %v96 = vld [vmem:[%s3 + $0xd0] sm:$0xff]
  %v97 = vld [vmem:[%s3 + $0xd8] sm:$0xff]
  %v98 = vld [vmem:[%s3 + $0xe0] sm:$0xff]
  %v99 = vld [vmem:[%s3 + $0xe8] sm:$0xff]
  %v100 = vld [vmem:[%s3 + $0xf0] sm:$0xff]
  %v101 = vld [vmem:[%s3 + $0xf8] sm:$0xff]
  %v102 = vld [vmem:[%s2] sm:$0x3]
  %v104 = vlaneseq
  %v105 = vshrl.u32 %v104, 7
  %v106 = vsub.s32 0, %v105
  %v107 = vrot.slane %v102, %v106
  %v108 = vlaneseq
  %v109 = vshrl.u32 %v108, 7
  %v110 = vsub.s32 1, %v109
  %v111 = vrot.slane %v102, %v110
  %114 = vmatprep.subr.mxu0 %v39
  %115 = vmatpush1.msra.mxu0 %v38
  %116 = vmatprep.subr.mxu0 %v41
  %117 = vmatpush1.msra.mxu0 %v40
  %118 = vmatprep.subr.mxu0 %v43
  %119 = vmatpush1.msra.mxu0 %v42
  %120 = vmatprep.subr.mxu0 %v45
  %121 = vmatpush1.msra.mxu0 %v44
  %122 = vmatprep.subr.mxu0 %v47
  %123 = vmatpush1.msra.mxu0 %v46
  %124 = vmatprep.subr.mxu0 %v49
  %125 = vmatpush1.msra.mxu0 %v48
  %126 = vmatprep.subr.mxu0 %v51
  %127 = vmatpush1.msra.mxu0 %v50
  %128 = vmatprep.subr.mxu0 %v53
  %129 = vmatpush1.msra.mxu0 %v52
  %130 = vmatprep.subr.mxu0 %v55
  %131 = vmatpush1.msra.mxu0 %v54
  %132 = vmatprep.subr.mxu0 %v57
  %133 = vmatpush1.msra.mxu0 %v56
  %134 = vmatprep.subr.mxu0 %v59
  %135 = vmatpush1.msra.mxu0 %v58
  %136 = vmatprep.subr.mxu0 %v61
  %137 = vmatpush1.msra.mxu0 %v60
  %138 = vmatprep.subr.mxu0 %v63
  %139 = vmatpush1.msra.mxu0 %v62
  %140 = vmatprep.subr.mxu0 %v65
  %141 = vmatpush1.msra.mxu0 %v64
  %142 = vmatprep.subr.mxu0 %v67
  %143 = vmatpush1.msra.mxu0 %v66
  %144 = vmatprep.subr.mxu0 %v69
  %145 = vmatpush1.msra.mxu0 %v68
  %146 = vmatprep.subr.mxu0 0.0
  %147 = vmatpush1.msra.mxu0 0.0
  %148 = vmatprep.subr.mxu0 0.0
  %149 = vmatpush1.msra.mxu0 0.0
  %150 = vmatprep.subr.mxu0 0.0
  %151 = vmatpush1.msra.mxu0 0.0
  %152 = vmatprep.subr.mxu0 0.0
  %153 = vmatpush1.msra.mxu0 0.0
  %154 = vmatprep.subr.mxu0 0.0
  %155 = vmatpush1.msra.mxu0 0.0
  %156 = vmatprep.subr.mxu0 0.0
  %157 = vmatpush1.msra.mxu0 0.0
  %158 = vmatprep.subr.mxu0 0.0
  %159 = vmatpush1.msra.mxu0 0.0
  %160 = vmatprep.subr.mxu0 0.0
  %161 = vmatpush1.msra.mxu0 0.0
  %162 = vmatprep.subr.mxu0 0.0
  %163 = vmatpush1.msra.mxu0 0.0
  %164 = vmatprep.subr.mxu0 0.0
  %165 = vmatpush1.msra.mxu0 0.0
  %166 = vmatprep.subr.mxu0 0.0
  %167 = vmatpush1.msra.mxu0 0.0
  %168 = vmatprep.subr.mxu0 0.0
  %169 = vmatpush1.msra.mxu0 0.0
  %170 = vmatprep.subr.mxu0 0.0
  %171 = vmatpush1.msra.mxu0 0.0
  %172 = vmatprep.subr.mxu0 0.0
  %173 = vmatpush1.msra.mxu0 0.0
  %174 = vmatprep.subr.mxu0 0.0
  %175 = vmatpush1.msra.mxu0 0.0
  %176 = vmatprep.subr.mxu0 0.0
  %177 = vmatpush1.msra.mxu0 0.0
  %178 = vmatprep.mubr.f32.mxu0 0.0
  %179 = vmatmul.mubr.f32.gmra.mrb[0].mxu0 %v34
  %v180 = vpop.f32.mrb[0].mxu0
  %v181 = vadd.f32 %v107, %v180
  %v182 = vpop.f32.mrb[0].mxu0
  %v183 = vadd.f32 %v111, %v182
  %184 = vmatprep.mubr.f32.mxu0 0.0
  %185 = vmatmul.mubr.f32.gmra.mrb[0].mxu0 %v35
  %v186 = vpop.f32.mrb[0].mxu0
  %v187 = vadd.f32 %v107, %v186
  %v188 = vpop.f32.mrb[0].mxu0
  %v189 = vadd.f32 %v111, %v188
  %190 = vmatprep.mubr.f32.mxu0 0.0
  %191 = vmatmul.mubr.f32.gmra.mrb[0].mxu0 %v36
  %v192 = vpop.f32.mrb[0].mxu0
  %v193 = vadd.f32 %v107, %v192
  %v194 = vpop.f32.mrb[0].mxu0
  %v195 = vadd.f32 %v111, %v194
  %196 = vmatprep.mubr.f32.mxu0 0.0
  %197 = vmatmul.mubr.f32.gmra.mrb[0].mxu0 %v37
  %v198 = vpop.f32.mrb[0].mxu0
  %v199 = vadd.f32 %v107, %v198
  %v200 = vpop.f32.mrb[0].mxu0
  %v201 = vadd.f32 %v111, %v200
  %202 = vdwg.mxu0
  %v203 = vmax.f32 %v181, 0.0
  %v204 = vmax.f32 %v183, 0.0
  %v205 = vmax.f32 %v187, 0.0
  %v206 = vmax.f32 %v189, 0.0
  %v207 = vmax.f32 %v193, 0.0
  %v208 = vmax.f32 %v195, 0.0
  %v209 = vmax.f32 %v199, 0.0
  %v210 = vmax.f32 %v201, 0.0
  %v211 = vld [vmem:[#allocation2] sm:$0xff]
  %v212 = vld [vmem:[#allocation2 + $0x8] sm:$0xff]
  %v213 = vld [vmem:[#allocation2 + $0x10] sm:$0xff]
  %v214 = vld [vmem:[#allocation2 + $0x18] sm:$0xff]
  %215 = vmatprep.subr.mxu0 0.0
  %216 = vmatpush1.msra.mxu0 %v70
  %217 = vmatprep.subr.mxu0 0.0
  %218 = vmatpush1.msra.mxu0 %v71
  %219 = vmatprep.subr.mxu0 0.0
  %220 = vmatpush1.msra.mxu0 %v72
  %221 = vmatprep.subr.mxu0 0.0
  %222 = vmatpush1.msra.mxu0 %v73
  %223 = vmatprep.subr.mxu0 0.0
  %224 = vmatpush1.msra.mxu0 %v74
  %225 = vmatprep.subr.mxu0 0.0
  %226 = vmatpush1.msra.mxu0 %v75
  %227 = vmatprep.subr.mxu0 0.0
  %228 = vmatpush1.msra.mxu0 %v76
  %229 = vmatprep.subr.mxu0 0.0
  %230 = vmatpush1.msra.mxu0 %v77
  %231 = vmatprep.subr.mxu0 0.0
  %232 = vmatpush1.msra.mxu0 %v78
  %233 = vmatprep.subr.mxu0 0.0
  %234 = vmatpush1.msra.mxu0 %v79
  %235 = vmatprep.subr.mxu0 0.0
  %236 = vmatpush1.msra.mxu0 %v80
  %237 = vmatprep.subr.mxu0 0.0
  %238 = vmatpush1.msra.mxu0 %v81
  %239 = vmatprep.subr.mxu0 0.0
  %240 = vmatpush1.msra.mxu0 %v82
  %241 = vmatprep.subr.mxu0 0.0
  %242 = vmatpush1.msra.mxu0 %v83
  %243 = vmatprep.subr.mxu0 0.0
  %244 = vmatpush1.msra.mxu0 %v84
  %245 = vmatprep.subr.mxu0 0.0
  %246 = vmatpush1.msra.mxu0 %v85
  %247 = vmatprep.subr.mxu0 0.0
  %248 = vmatpush1.msra.mxu0 %v86
  %249 = vmatprep.subr.mxu0 0.0
  %250 = vmatpush1.msra.mxu0 %v87
  %251 = vmatprep.subr.mxu0 0.0
  %252 = vmatpush1.msra.mxu0 %v88
  %253 = vmatprep.subr.mxu0 0.0
  %254 = vmatpush1.msra.mxu0 %v89
  %255 = vmatprep.subr.mxu0 0.0
  %256 = vmatpush1.msra.mxu0 %v90
  %257 = vmatprep.subr.mxu0 0.0
  %258 = vmatpush1.msra.mxu0 %v91
  %259 = vmatprep.subr.mxu0 0.0
  %260 = vmatpush1.msra.mxu0 %v92
  %261 = vmatprep.subr.mxu0 0.0
  %262 = vmatpush1.msra.mxu0 %v93
  %263 = vmatprep.subr.mxu0 0.0
  %264 = vmatpush1.msra.mxu0 %v94
  %265 = vmatprep.subr.mxu0 0.0
  %266 = vmatpush1.msra.mxu0 %v95
  %267 = vmatprep.subr.mxu0 0.0
  %268 = vmatpush1.msra.mxu0 %v96
  %269 = vmatprep.subr.mxu0 0.0
  %270 = vmatpush1.msra.mxu0 %v97
  %271 = vmatprep.subr.mxu0 0.0
  %272 = vmatpush1.msra.mxu0 %v98
  %273 = vmatprep.subr.mxu0 0.0
  %274 = vmatpush1.msra.mxu0 %v99
  %275 = vmatprep.subr.mxu0 0.0
  %276 = vmatpush1.msra.mxu0 %v100
  %277 = vmatprep.subr.mxu0 0.0
  %278 = vmatpush1.msra.mxu0 %v101
  %279 = vmatprep.mubr.f32.mxu0 %v204
  %280 = vmatmul.mubr.f32.gmra.mrb[0].mxu0 %v203
  %v281 = vpop.f32.mrb[0].mxu0
  %v282 = vadd.f32 0.0, %v281
  %v283 = vpop.f32.mrb[0].mxu0
  %284 = vmatprep.mubr.f32.mxu0 %v206
  %285 = vmatmul.mubr.f32.gmra.mrb[0].mxu0 %v205
  %v286 = vpop.f32.mrb[0].mxu0
  %v287 = vadd.f32 0.0, %v286
  %v288 = vpop.f32.mrb[0].mxu0
  %289 = vmatprep.mubr.f32.mxu0 %v208
  %290 = vmatmul.mubr.f32.gmra.mrb[0].mxu0 %v207
  %v291 = vpop.f32.mrb[0].mxu0
  %v292 = vadd.f32 0.0, %v291
  %v293 = vpop.f32.mrb[0].mxu0
  %294 = vmatprep.mubr.f32.mxu0 %v210
  %295 = vmatmul.mubr.f32.gmra.mrb[0].mxu0 %v209
  %v296 = vpop.f32.mrb[0].mxu0
  %v297 = vadd.f32 0.0, %v296
  %v298 = vpop.f32.mrb[0].mxu0
  %299 = vdwg.mxu0
  %v300 = vadd.f32 %v211, %v282
  %v301 = vadd.f32 %v212, %v287
  %v302 = vadd.f32 %v213, %v292
  %v303 = vadd.f32 %v214, %v297
  %304 = vst [vmem:[#allocation2] sm:$0xff] %v300
  %305 = vst [vmem:[#allocation2 + $0x8] sm:$0xff] %v301
  %306 = vst [vmem:[#allocation2 + $0x10] sm:$0xff] %v302
  %307 = vst [vmem:[#allocation2 + $0x18] sm:$0xff] %v303
  // Predicated region
  $region34: #{audio_transformer_forward.10} parent=0 // pred_check
    %p308 = pneg %p26
  $region35: #{audio_transformer_forward.10} parent=0 // pred_check_branch
    %310 = sbr.rel (%p308) target = $region37
  $region36: #{audio_transformer_forward.10} parent=0 // pred_region
    %v311 = vld [vmem:[#allocation2] sm:$0xff]
    %v312 = vld [vmem:[#allocation2 + $0x8] sm:$0xff]
    %v313 = vld [vmem:[#allocation2 + $0x10] sm:$0xff]
    %v314 = vld [vmem:[#allocation2 + $0x18] sm:$0xff]
    %v315 = vadd.f32 %v34, %v311
    %v316 = vadd.f32 %v35, %v312
    %v317 = vadd.f32 %v36, %v313
    %v318 = vadd.f32 %v37, %v314
    %v319 = vld [vmem:[%s4] sm:$0x1]
    %v321 = vlaneseq
    %v322 = vshrl.u32 %v321, 7
    %v323 = vsub.s32 0, %v322
    %v324 = vrot.slane %v319, %v323
    %v326 = vadd.f32 %v315, %v324
    %v327 = vadd.f32 %v316, %v324
    %v328 = vadd.f32 %v317, %v324
    %v329 = vadd.f32 %v318, %v324
    %330 = vadd.xlane.f32.xlu0 %v326
    %v331 = vpop.xlane.xlu0 %330
    %332 = vadd.xlane.f32.xlu0 %v327
    %v333 = vpop.xlane.xlu0 %332
    %334 = vadd.xlane.f32.xlu0 %v328
    %v335 = vpop.xlane.xlu0 %334
    %336 = vadd.xlane.f32.xlu0 %v329
    %v337 = vpop.xlane.xlu0 %336
    %v338 = vrcp.pop 128.0
    %v339 = vmul.f32 %v331, %v338
    %v340 = vmul.f32 %v333, %v338
    %v341 = vmul.f32 %v335, %v338
    %v342 = vmul.f32 %v337, %v338
    %v343 = vsub.f32 %v326, %v339
    %v344 = vsub.f32 %v327, %v340
    %v345 = vsub.f32 %v328, %v341
    %v346 = vsub.f32 %v329, %v342
    %v347 = vmul.f32 %v343, %v343
    %v348 = vmul.f32 %v344, %v344
    %v349 = vmul.f32 %v345, %v345
    %v350 = vmul.f32 %v346, %v346
    %351 = vadd.xlane.f32.xlu0 %v347
    %v352 = vpop.xlane.xlu0 %351
    %353 = vadd.xlane.f32.xlu0 %v348
    %v354 = vpop.xlane.xlu0 %353
    %355 = vadd.xlane.f32.xlu0 %v349
    %v356 = vpop.xlane.xlu0 %355
    %357 = vadd.xlane.f32.xlu0 %v350
    %v358 = vpop.xlane.xlu0 %357
    %v359 = vmul.f32 %v352, %v338
    %v360 = vmul.f32 %v354, %v338
    %v361 = vmul.f32 %v356, %v338
    %v362 = vmul.f32 %v358, %v338
    %v363 = vadd.f32 %v359, 1e-05
    %v364 = vadd.f32 %v360, 1e-05
    %v365 = vadd.f32 %v361, 1e-05
    %v366 = vadd.f32 %v362, 1e-05
    %v367 = vrsqrt.pop %v363
    %v368 = vrsqrt.pop %v364
    %v369 = vrsqrt.pop %v365
    %v370 = vrsqrt.pop %v366
    %v371 = vmul.f32 %v343, %v367
    %v372 = vmul.f32 %v344, %v368
    %v373 = vmul.f32 %v345, %v369
    %v374 = vmul.f32 %v346, %v370
    %v375 = vld [vmem:[%s5] sm:$0x1]
    %v377 = vlaneseq
    %v378 = vshrl.u32 %v377, 7
    %v379 = vsub.s32 0, %v378
    %v380 = vrot.slane %v375, %v379
    %v382 = vmul.f32 %v371, %v380
    %v383 = vmul.f32 %v372, %v380
    %v384 = vmul.f32 %v373, %v380
    %v385 = vmul.f32 %v374, %v380
    %v386 = vld [vmem:[%s6] sm:$0x1]
    %v388 = vlaneseq
    %v389 = vshrl.u32 %v388, 7
    %v390 = vsub.s32 0, %v389
    %v391 = vrot.slane %v386, %v390
    %v393 = vadd.f32 %v382, %v391
    %v394 = vadd.f32 %v383, %v391
    %v395 = vadd.f32 %v384, %v391
    %v396 = vadd.f32 %v385, %v391
    %397 = vst [vmem:[%s7] sm:$0xff] %v393
    %398 = vst [vmem:[%s7 + $0x8] sm:$0xff] %v394
    %399 = vst [vmem:[%s7 + $0x10] sm:$0xff] %v395
    %400 = vst [vmem:[%s7 + $0x18] sm:$0xff] %v396
  $region37: #{audio_transformer_forward.10} parent=0 // pred_fallthru
    _
  // Predicated region
  $region38: #{audio_transformer_forward.10} parent=0 // pred_check
    _
  $region39: #{audio_transformer_forward.10} parent=0 // pred_check_branch
    %402 = sbr.rel (0) target = $region41
  $region40: #{audio_transformer_forward.10} parent=0 // pred_region
    _
  $region41: #{audio_transformer_forward.10} parent=0 // pred_fallthru
    _
  // Predicated region
  $region42: #{audio_transformer_forward.10} parent=0 // pred_check
    _
  $region43: #{audio_transformer_forward.10} parent=0 // pred_check_branch
    %404 = sbr.rel (0) target = $region45
  $region44: #{audio_transformer_forward.10} parent=0 // pred_region
    _
  $region45: #{audio_transformer_forward.10} parent=0 // pred_fallthru
    _

// kernel: audio_transformer_forward.13
$region0: #{audio_transformer_forward.13}
  #allocation0 [shape = 'u32[]', space=smem, size = 0x4, offset = 0x4, fixed_abs, tag = 'smem constant byte address 0x4 - core index']
  #allocation1 [shape = 'u32[144,128]{1,0:T(1,128)}', space=vmem, size = 0x12000, scoped, tag = 'internal scratch']
  #allocation2 [shape = 'f32[2,128]{1,0:T(2,128)}', space=vmem, size = 0x400, scoped, tag = 'scratch operand']
  #allocation3 [shape = 'f32[1,1]{1,0:T(1,128)S(1)}', space=vmem, size = 0x200, scoped, tag = 'scoped memory for audio_transformer_forward.13']
  %s0 = inlined_call_operand.vmem [shape: f32[2,16,128], index: 0, kind: input, shape index: {}]
  %s1 = inlined_call_operand.vmem [shape: f32[128,256], index: 1, kind: input, shape index: {}]
  %s2 = inlined_call_operand.vmem [shape: f32[1,256], index: 2, kind: input, shape index: {}]
  %s3 = inlined_call_operand.vmem [shape: f32[256,256], index: 3, kind: input, shape index: {}]
  %s4 = inlined_call_operand.vmem [shape: f32[1,256], index: 4, kind: input, shape index: {}]
  %s5 = inlined_call_operand.vmem [shape: f32[256,1], index: 5, kind: input, shape index: {}]
  %s6 = inlined_call_operand.<no memory space> [shape: f32[1,1], index: 6, kind: input, shape index: {}]
  %s7 = inlined_call_operand.vmem [shape: f32[2,1], index: 7, kind: output, shape index: {}]
  %s8 = sld [smem:[#allocation0]]
  $region46: #{audio_transformer_forward.13} parent=0
    _
  %s10 = ssub.s32 1, %s8
  %s11 = scalar_select 0, %s10, %s8
  %v12 = vstv %s6
  %13 = vst [vmem:[#allocation3] sm:$0x1] %v12
  // Predicated region
  $region2: #{audio_transformer_forward.13} parent=0 // pred_check
    _
  $region3: #{audio_transformer_forward.13} parent=0 // pred_check_branch
    %15 = sbr.rel (0) target = $region5
  $region4: #{audio_transformer_forward.13} parent=0 // pred_region
    _
  $region5: #{audio_transformer_forward.13} parent=0 // pred_fallthru
    _
  // Predicated region
  $region6: #{audio_transformer_forward.13} parent=0 // pred_check
    _
  $region7: #{audio_transformer_forward.13} parent=0 // pred_check_branch
    %17 = sbr.rel (0) target = $region9
  $region8: #{audio_transformer_forward.13} parent=0 // pred_region
    _
  $region9: #{audio_transformer_forward.13} parent=0 // pred_fallthru
    _
  // Predicated region
  $region10: #{audio_transformer_forward.13} parent=0 // pred_check
    _
  $region11: #{audio_transformer_forward.13} parent=0 // pred_check_branch
    %19 = sbr.rel (0) target = $region13
  $region12: #{audio_transformer_forward.13} parent=0 // pred_region
    _
  $region13: #{audio_transformer_forward.13} parent=0 // pred_fallthru
    _
  // Predicated region
  $region14: #{audio_transformer_forward.13} parent=0 // pred_check
    _
  $region15: #{audio_transformer_forward.13} parent=0 // pred_check_branch
    %21 = sbr.rel (0) target = $region17
  $region16: #{audio_transformer_forward.13} parent=0 // pred_region
    _
  $region17: #{audio_transformer_forward.13} parent=0 // pred_fallthru
    _
  // Predicated region
  $region18: #{audio_transformer_forward.13} parent=0 // pred_check
    _
  $region19: #{audio_transformer_forward.13} parent=0 // pred_check_branch
    %23 = sbr.rel (0) target = $region21
  $region20: #{audio_transformer_forward.13} parent=0 // pred_region
    _
  $region21: #{audio_transformer_forward.13} parent=0 // pred_fallthru
    _
  // Predicated region
  $region22: #{audio_transformer_forward.13} parent=0 // pred_check
    _
  $region23: #{audio_transformer_forward.13} parent=0 // pred_check_branch
    %25 = sbr.rel (0) target = $region25
  $region24: #{audio_transformer_forward.13} parent=0 // pred_region
    _
  $region25: #{audio_transformer_forward.13} parent=0 // pred_fallthru
    _
  // Predicated region
  $region26: #{audio_transformer_forward.13} parent=0 // pred_check
    _
  $region27: #{audio_transformer_forward.13} parent=0 // pred_check_branch
    %27 = sbr.rel (0) target = $region29
  $region28: #{audio_transformer_forward.13} parent=0 // pred_region
    _
  $region29: #{audio_transformer_forward.13} parent=0 // pred_fallthru
    _
  %p28 = scmp.eq.s32.totalorder 0, 0
  // Predicated region
  $region30: #{audio_transformer_forward.13} parent=0 // pred_check
    %p29 = pneg %p28
  $region31: #{audio_transformer_forward.13} parent=0 // pred_check_branch
    %31 = sbr.rel (%p29) target = $region33
  $region32: #{audio_transformer_forward.13} parent=0 // pred_region
    %32 = vst [vmem:[#allocation2] sm:$0x3] 0.0
  $region33: #{audio_transformer_forward.13} parent=0 // pred_fallthru
    _
  %v33 = vld [vmem:[#allocation2] sm:$0x3]
  %v34 = vld [vmem:[%s0] sm:$0xff]
  %v35 = vld [vmem:[%s0 + $0x8] sm:$0xff]
  %v36 = vld [vmem:[%s0 + $0x10] sm:$0xff]
  %v37 = vld [vmem:[%s0 + $0x18] sm:$0xff]
  %v38 = vadd.f32 %v34, %v35
  %v39 = vrot.slane %v38, 4
  %v40 = vadd.f32 %v38, %v39
  %v41 = vrot.slane %v40, 2
  %v42 = vadd.f32 %v40, %v41
  %v43 = vrot.slane %v42, 1
  %v44 = vadd.f32 %v42, %v43
  %v45 = vadd.f32 %v36, %v37
  %v46 = vrot.slane %v45, 4
  %v47 = vadd.f32 %v45, %v46
  %v48 = vrot.slane %v47, 2
  %v49 = vadd.f32 %v47, %v48
  %v50 = vrot.slane %v49, 1
  %v51 = vadd.f32 %v49, %v50
  %vm54 = vcmask 1041409
  %v55 = vsel %vm54, %v51, %v44
  %v57 = vadd.f32 %v33, %v55
  %58 = vst [vmem:[#allocation2] sm:$0x3] %v57
  // Predicated region
  $region34: #{audio_transformer_forward.13} parent=0 // pred_check
    %p59 = pneg %p28
  $region35: #{audio_transformer_forward.13} parent=0 // pred_check_branch
    %61 = sbr.rel (%p59) target = $region37
  $region36: #{audio_transformer_forward.13} parent=0 // pred_region
    %v62 = vld [vmem:[#allocation2] sm:$0x3]
    %v63 = vmul.f32 %v62, 0.0625
    %v64 = vld [vmem:[%s1] sm:$0xff]
    %v65 = vld [vmem:[%s1 + $0x8] sm:$0xff]
    %v66 = vld [vmem:[%s1 + $0x10] sm:$0xff]
    %v67 = vld [vmem:[%s1 + $0x18] sm:$0xff]
    %v68 = vld [vmem:[%s1 + $0x20] sm:$0xff]
    %v69 = vld [vmem:[%s1 + $0x28] sm:$0xff]
    %v70 = vld [vmem:[%s1 + $0x30] sm:$0xff]
    %v71 = vld [vmem:[%s1 + $0x38] sm:$0xff]
    %v72 = vld [vmem:[%s1 + $0x40] sm:$0xff]
    %v73 = vld [vmem:[%s1 + $0x48] sm:$0xff]
    %v74 = vld [vmem:[%s1 + $0x50] sm:$0xff]
    %v75 = vld [vmem:[%s1 + $0x58] sm:$0xff]
    %v76 = vld [vmem:[%s1 + $0x60] sm:$0xff]
    %v77 = vld [vmem:[%s1 + $0x68] sm:$0xff]
    %v78 = vld [vmem:[%s1 + $0x70] sm:$0xff]
    %v79 = vld [vmem:[%s1 + $0x78] sm:$0xff]
    %v80 = vld [vmem:[%s1 + $0x80] sm:$0xff]
    %v81 = vld [vmem:[%s1 + $0x88] sm:$0xff]
    %v82 = vld [vmem:[%s1 + $0x90] sm:$0xff]
    %v83 = vld [vmem:[%s1 + $0x98] sm:$0xff]
    %v84 = vld [vmem:[%s1 + $0xa0] sm:$0xff]
    %v85 = vld [vmem:[%s1 + $0xa8] sm:$0xff]
    %v86 = vld [vmem:[%s1 + $0xb0] sm:$0xff]
    %v87 = vld [vmem:[%s1 + $0xb8] sm:$0xff]
    %v88 = vld [vmem:[%s1 + $0xc0] sm:$0xff]
    %v89 = vld [vmem:[%s1 + $0xc8] sm:$0xff]
    %v90 = vld [vmem:[%s1 + $0xd0] sm:$0xff]
    %v91 = vld [vmem:[%s1 + $0xd8] sm:$0xff]
    %v92 = vld [vmem:[%s1 + $0xe0] sm:$0xff]
    %v93 = vld [vmem:[%s1 + $0xe8] sm:$0xff]
    %v94 = vld [vmem:[%s1 + $0xf0] sm:$0xff]
    %v95 = vld [vmem:[%s1 + $0xf8] sm:$0xff]
    %v96 = vld [vmem:[%s2] sm:$0x3]
    %v98 = vlaneseq
    %v99 = vshrl.u32 %v98, 7
    %v100 = vsub.s32 0, %v99
    %v101 = vrot.slane %v96, %v100
    %v102 = vlaneseq
    %v103 = vshrl.u32 %v102, 7
    %v104 = vsub.s32 1, %v103
    %v105 = vrot.slane %v96, %v104
    %108 = vmatprep.subr.mxu0 %v65
    %109 = vmatpush1.msra.mxu0 %v64
    %110 = vmatprep.subr.mxu0 %v67
    %111 = vmatpush1.msra.mxu0 %v66
    %112 = vmatprep.subr.mxu0 %v69
    %113 = vmatpush1.msra.mxu0 %v68
    %114 = vmatprep.subr.mxu0 %v71
    %115 = vmatpush1.msra.mxu0 %v70
    %116 = vmatprep.subr.mxu0 %v73
    %117 = vmatpush1.msra.mxu0 %v72
    %118 = vmatprep.subr.mxu0 %v75
    %119 = vmatpush1.msra.mxu0 %v74
    %120 = vmatprep.subr.mxu0 %v77
    %121 = vmatpush1.msra.mxu0 %v76
    %122 = vmatprep.subr.mxu0 %v79
    %123 = vmatpush1.msra.mxu0 %v78
    %124 = vmatprep.subr.mxu0 %v81
    %125 = vmatpush1.msra.mxu0 %v80
    %126 = vmatprep.subr.mxu0 %v83
    %127 = vmatpush1.msra.mxu0 %v82
    %128 = vmatprep.subr.mxu0 %v85
    %129 = vmatpush1.msra.mxu0 %v84
    %130 = vmatprep.subr.mxu0 %v87
    %131 = vmatpush1.msra.mxu0 %v86
    %132 = vmatprep.subr.mxu0 %v89
    %133 = vmatpush1.msra.mxu0 %v88
    %134 = vmatprep.subr.mxu0 %v91
    %135 = vmatpush1.msra.mxu0 %v90
    %136 = vmatprep.subr.mxu0 %v93
    %137 = vmatpush1.msra.mxu0 %v92
    %138 = vmatprep.subr.mxu0 %v95
    %139 = vmatpush1.msra.mxu0 %v94
    %140 = vmatprep.subr.mxu0 0.0
    %141 = vmatpush1.msra.mxu0 0.0
    %142 = vmatprep.subr.mxu0 0.0
    %143 = vmatpush1.msra.mxu0 0.0
    %144 = vmatprep.subr.mxu0 0.0
    %145 = vmatpush1.msra.mxu0 0.0
    %146 = vmatprep.subr.mxu0 0.0
    %147 = vmatpush1.msra.mxu0 0.0
    %148 = vmatprep.subr.mxu0 0.0
    %149 = vmatpush1.msra.mxu0 0.0
    %150 = vmatprep.subr.mxu0 0.0
    %151 = vmatpush1.msra.mxu0 0.0
    %152 = vmatprep.subr.mxu0 0.0
    %153 = vmatpush1.msra.mxu0 0.0
    %154 = vmatprep.subr.mxu0 0.0
    %155 = vmatpush1.msra.mxu0 0.0
    %156 = vmatprep.subr.mxu0 0.0
    %157 = vmatpush1.msra.mxu0 0.0
    %158 = vmatprep.subr.mxu0 0.0
    %159 = vmatpush1.msra.mxu0 0.0
    %160 = vmatprep.subr.mxu0 0.0
    %161 = vmatpush1.msra.mxu0 0.0
    %162 = vmatprep.subr.mxu0 0.0
    %163 = vmatpush1.msra.mxu0 0.0
    %164 = vmatprep.subr.mxu0 0.0
    %165 = vmatpush1.msra.mxu0 0.0
    %166 = vmatprep.subr.mxu0 0.0
    %167 = vmatpush1.msra.mxu0 0.0
    %168 = vmatprep.subr.mxu0 0.0
    %169 = vmatpush1.msra.mxu0 0.0
    %170 = vmatprep.subr.mxu0 0.0
    %171 = vmatpush1.msra.mxu0 0.0
    %172 = vmatprep.mubr.f32.mxu0 0.0
    %173 = vmatmul.mubr.f32.gmra.mrb[0].mxu0 %v63
    %v174 = vpop.f32.mrb[0].mxu0
    %v175 = vadd.f32 %v101, %v174
    %v176 = vpop.f32.mrb[0].mxu0
    %v177 = vadd.f32 %v105, %v176
    %178 = vdwg.mxu0
    %v179 = vmax.f32 %v175, 0.0
    %v180 = vmax.f32 %v177, 0.0
    %v181 = vld [vmem:[%s3] sm:$0xff]
    %v182 = vld [vmem:[%s3 + $0x8] sm:$0xff]
    %v183 = vld [vmem:[%s3 + $0x10] sm:$0xff]
    %v184 = vld [vmem:[%s3 + $0x18] sm:$0xff]
    %v185 = vld [vmem:[%s3 + $0x20] sm:$0xff]
    %v186 = vld [vmem:[%s3 + $0x28] sm:$0xff]
    %v187 = vld [vmem:[%s3 + $0x30] sm:$0xff]
    %v188 = vld [vmem:[%s3 + $0x38] sm:$0xff]
    %v189 = vld [vmem:[%s3 + $0x40] sm:$0xff]
    %v190 = vld [vmem:[%s3 + $0x48] sm:$0xff]
    %v191 = vld [vmem:[%s3 + $0x50] sm:$0xff]
    %v192 = vld [vmem:[%s3 + $0x58] sm:$0xff]
    %v193 = vld [vmem:[%s3 + $0x60] sm:$0xff]
    %v194 = vld [vmem:[%s3 + $0x68] sm:$0xff]
    %v195 = vld [vmem:[%s3 + $0x70] sm:$0xff]
    %v196 = vld [vmem:[%s3 + $0x78] sm:$0xff]
    %v197 = vld [vmem:[%s3 + $0x80] sm:$0xff]
    %v198 = vld [vmem:[%s3 + $0x88] sm:$0xff]
    %v199 = vld [vmem:[%s3 + $0x90] sm:$0xff]
    %v200 = vld [vmem:[%s3 + $0x98] sm:$0xff]
    %v201 = vld [vmem:[%s3 + $0xa0] sm:$0xff]
    %v202 = vld [vmem:[%s3 + $0xa8] sm:$0xff]
    %v203 = vld [vmem:[%s3 + $0xb0] sm:$0xff]
    %v204 = vld [vmem:[%s3 + $0xb8] sm:$0xff]
    %v205 = vld [vmem:[%s3 + $0xc0] sm:$0xff]
    %v206 = vld [vmem:[%s3 + $0xc8] sm:$0xff]
    %v207 = vld [vmem:[%s3 + $0xd0] sm:$0xff]
    %v208 = vld [vmem:[%s3 + $0xd8] sm:$0xff]
    %v209 = vld [vmem:[%s3 + $0xe0] sm:$0xff]
    %v210 = vld [vmem:[%s3 + $0xe8] sm:$0xff]
    %v211 = vld [vmem:[%s3 + $0xf0] sm:$0xff]
    %v212 = vld [vmem:[%s3 + $0xf8] sm:$0xff]
    %v213 = vld [vmem:[%s3 + $0x100] sm:$0xff]
    %v214 = vld [vmem:[%s3 + $0x108] sm:$0xff]
    %v215 = vld [vmem:[%s3 + $0x110] sm:$0xff]
    %v216 = vld [vmem:[%s3 + $0x118] sm:$0xff]
    %v217 = vld [vmem:[%s3 + $0x120] sm:$0xff]
    %v218 = vld [vmem:[%s3 + $0x128] sm:$0xff]
    %v219 = vld [vmem:[%s3 + $0x130] sm:$0xff]
    %v220 = vld [vmem:[%s3 + $0x138] sm:$0xff]
    %v221 = vld [vmem:[%s3 + $0x140] sm:$0xff]
    %v222 = vld [vmem:[%s3 + $0x148] sm:$0xff]
    %v223 = vld [vmem:[%s3 + $0x150] sm:$0xff]
    %v224 = vld [vmem:[%s3 + $0x158] sm:$0xff]
    %v225 = vld [vmem:[%s3 + $0x160] sm:$0xff]
    %v226 = vld [vmem:[%s3 + $0x168] sm:$0xff]
    %v227 = vld [vmem:[%s3 + $0x170] sm:$0xff]
    %v228 = vld [vmem:[%s3 + $0x178] sm:$0xff]
    %v229 = vld [vmem:[%s3 + $0x180] sm:$0xff]
    %v230 = vld [vmem:[%s3 + $0x188] sm:$0xff]
    %v231 = vld [vmem:[%s3 + $0x190] sm:$0xff]
    %v232 = vld [vmem:[%s3 + $0x198] sm:$0xff]
    %v233 = vld [vmem:[%s3 + $0x1a0] sm:$0xff]
    %v234 = vld [vmem:[%s3 + $0x1a8] sm:$0xff]
    %v235 = vld [vmem:[%s3 + $0x1b0] sm:$0xff]
    %v236 = vld [vmem:[%s3 + $0x1b8] sm:$0xff]
    %v237 = vld [vmem:[%s3 + $0x1c0] sm:$0xff]
    %v238 = vld [vmem:[%s3 + $0x1c8] sm:$0xff]
    %v239 = vld [vmem:[%s3 + $0x1d0] sm:$0xff]
    %v240 = vld [vmem:[%s3 + $0x1d8] sm:$0xff]
    %v241 = vld [vmem:[%s3 + $0x1e0] sm:$0xff]
    %v242 = vld [vmem:[%s3 + $0x1e8] sm:$0xff]
    %v243 = vld [vmem:[%s3 + $0x1f0] sm:$0xff]
    %v244 = vld [vmem:[%s3 + $0x1f8] sm:$0xff]
    %v245 = vld [vmem:[%s4] sm:$0x3]
    %v247 = vlaneseq
    %v248 = vshrl.u32 %v247, 7
    %v249 = vsub.s32 0, %v248
    %v250 = vrot.slane %v245, %v249
    %v251 = vlaneseq
    %v252 = vshrl.u32 %v251, 7
    %v253 = vsub.s32 1, %v252
    %v254 = vrot.slane %v245, %v253
    %257 = vmatprep.subr.mxu0 %v182
    %258 = vmatpush1.msra.mxu0 %v181
    %259 = vmatprep.subr.mxu0 %v184
    %260 = vmatpush1.msra.mxu0 %v183
    %261 = vmatprep.subr.mxu0 %v186
    %262 = vmatpush1.msra.mxu0 %v185
    %263 = vmatprep.subr.mxu0 %v188
    %264 = vmatpush1.msra.mxu0 %v187
    %265 = vmatprep.subr.mxu0 %v190
    %266 = vmatpush1.msra.mxu0 %v189
    %267 = vmatprep.subr.mxu0 %v192
    %268 = vmatpush1.msra.mxu0 %v191
    %269 = vmatprep.subr.mxu0 %v194
    %270 = vmatpush1.msra.mxu0 %v193
    %271 = vmatprep.subr.mxu0 %v196
    %272 = vmatpush1.msra.mxu0 %v195
    %273 = vmatprep.subr.mxu0 %v198
    %274 = vmatpush1.msra.mxu0 %v197
    %275 = vmatprep.subr.mxu0 %v200
    %276 = vmatpush1.msra.mxu0 %v199
    %277 = vmatprep.subr.mxu0 %v202
    %278 = vmatpush1.msra.mxu0 %v201
    %279 = vmatprep.subr.mxu0 %v204
    %280 = vmatpush1.msra.mxu0 %v203
    %281 = vmatprep.subr.mxu0 %v206
    %282 = vmatpush1.msra.mxu0 %v205
    %283 = vmatprep.subr.mxu0 %v208
    %284 = vmatpush1.msra.mxu0 %v207
    %285 = vmatprep.subr.mxu0 %v210
    %286 = vmatpush1.msra.mxu0 %v209
    %287 = vmatprep.subr.mxu0 %v212
    %288 = vmatpush1.msra.mxu0 %v211
    %289 = vmatprep.subr.mxu0 %v214
    %290 = vmatpush1.msra.mxu0 %v213
    %291 = vmatprep.subr.mxu0 %v216
    %292 = vmatpush1.msra.mxu0 %v215
    %293 = vmatprep.subr.mxu0 %v218
    %294 = vmatpush1.msra.mxu0 %v217
    %295 = vmatprep.subr.mxu0 %v220
    %296 = vmatpush1.msra.mxu0 %v219
    %297 = vmatprep.subr.mxu0 %v222
    %298 = vmatpush1.msra.mxu0 %v221
    %299 = vmatprep.subr.mxu0 %v224
    %300 = vmatpush1.msra.mxu0 %v223
    %301 = vmatprep.subr.mxu0 %v226
    %302 = vmatpush1.msra.mxu0 %v225
    %303 = vmatprep.subr.mxu0 %v228
    %304 = vmatpush1.msra.mxu0 %v227
    %305 = vmatprep.subr.mxu0 %v230
    %306 = vmatpush1.msra.mxu0 %v229
    %307 = vmatprep.subr.mxu0 %v232
    %308 = vmatpush1.msra.mxu0 %v231
    %309 = vmatprep.subr.mxu0 %v234
    %310 = vmatpush1.msra.mxu0 %v233
    %311 = vmatprep.subr.mxu0 %v236
    %312 = vmatpush1.msra.mxu0 %v235
    %313 = vmatprep.subr.mxu0 %v238
    %314 = vmatpush1.msra.mxu0 %v237
    %315 = vmatprep.subr.mxu0 %v240
    %316 = vmatpush1.msra.mxu0 %v239
    %317 = vmatprep.subr.mxu0 %v242
    %318 = vmatpush1.msra.mxu0 %v241
    %319 = vmatprep.subr.mxu0 %v244
    %320 = vmatpush1.msra.mxu0 %v243
    %321 = vmatprep.mubr.f32.mxu0 %v180
    %322 = vmatmul.mubr.f32.gmra.mrb[0].mxu0 %v179
    %v323 = vpop.f32.mrb[0].mxu0
    %v324 = vadd.f32 %v250, %v323
    %v325 = vpop.f32.mrb[0].mxu0
    %v326 = vadd.f32 %v254, %v325
    %327 = vdwg.mxu0
    %v328 = vmax.f32 %v324, 0.0
    %v329 = vmax.f32 %v326, 0.0
    %v330 = vld [vmem:[%s5] sm:$0xff]
    %v331 = vld [vmem:[%s5 + $0x8] sm:$0xff]
    %v332 = vld [vmem:[%s5 + $0x10] sm:$0xff]
    %v333 = vld [vmem:[%s5 + $0x18] sm:$0xff]
    %v334 = vld [vmem:[%s5 + $0x20] sm:$0xff]
    %v335 = vld [vmem:[%s5 + $0x28] sm:$0xff]
    %v336 = vld [vmem:[%s5 + $0x30] sm:$0xff]
    %v337 = vld [vmem:[%s5 + $0x38] sm:$0xff]
    %v338 = vld [vmem:[%s5 + $0x40] sm:$0xff]
    %v339 = vld [vmem:[%s5 + $0x48] sm:$0xff]
    %v340 = vld [vmem:[%s5 + $0x50] sm:$0xff]
    %v341 = vld [vmem:[%s5 + $0x58] sm:$0xff]
    %v342 = vld [vmem:[%s5 + $0x60] sm:$0xff]
    %v343 = vld [vmem:[%s5 + $0x68] sm:$0xff]
    %v344 = vld [vmem:[%s5 + $0x70] sm:$0xff]
    %v345 = vld [vmem:[%s5 + $0x78] sm:$0xff]
    %v346 = vld [vmem:[%s5 + $0x80] sm:$0xff]
    %v347 = vld [vmem:[%s5 + $0x88] sm:$0xff]
    %v348 = vld [vmem:[%s5 + $0x90] sm:$0xff]
    %v349 = vld [vmem:[%s5 + $0x98] sm:$0xff]
    %v350 = vld [vmem:[%s5 + $0xa0] sm:$0xff]
    %v351 = vld [vmem:[%s5 + $0xa8] sm:$0xff]
    %v352 = vld [vmem:[%s5 + $0xb0] sm:$0xff]
    %v353 = vld [vmem:[%s5 + $0xb8] sm:$0xff]
    %v354 = vld [vmem:[%s5 + $0xc0] sm:$0xff]
    %v355 = vld [vmem:[%s5 + $0xc8] sm:$0xff]
    %v356 = vld [vmem:[%s5 + $0xd0] sm:$0xff]
    %v357 = vld [vmem:[%s5 + $0xd8] sm:$0xff]
    %v358 = vld [vmem:[%s5 + $0xe0] sm:$0xff]
    %v359 = vld [vmem:[%s5 + $0xe8] sm:$0xff]
    %v360 = vld [vmem:[%s5 + $0xf0] sm:$0xff]
    %v361 = vld [vmem:[%s5 + $0xf8] sm:$0xff]
    %v362 = vld [vmem:[#allocation3] sm:$0x1]
    %v364 = vlaneseq
    %v365 = vshrl.u32 %v364, 7
    %v366 = vsub.s32 0, %v365
    %v367 = vrot.slane %v362, %v366
    %369 = vmatprep.subr.mxu0 0.0
    %370 = vmatpush1.msra.mxu0 %v330
    %371 = vmatprep.subr.mxu0 0.0
    %372 = vmatpush1.msra.mxu0 %v331
    %373 = vmatprep.subr.mxu0 0.0
    %374 = vmatpush1.msra.mxu0 %v332
    %375 = vmatprep.subr.mxu0 0.0
    %376 = vmatpush1.msra.mxu0 %v333
    %377 = vmatprep.subr.mxu0 0.0
    %378 = vmatpush1.msra.mxu0 %v334
    %379 = vmatprep.subr.mxu0 0.0
    %380 = vmatpush1.msra.mxu0 %v335
    %381 = vmatprep.subr.mxu0 0.0
    %382 = vmatpush1.msra.mxu0 %v336
    %383 = vmatprep.subr.mxu0 0.0
    %384 = vmatpush1.msra.mxu0 %v337
    %385 = vmatprep.subr.mxu0 0.0
    %386 = vmatpush1.msra.mxu0 %v338
    %387 = vmatprep.subr.mxu0 0.0
    %388 = vmatpush1.msra.mxu0 %v339
    %389 = vmatprep.subr.mxu0 0.0
    %390 = vmatpush1.msra.mxu0 %v340
    %391 = vmatprep.subr.mxu0 0.0
    %392 = vmatpush1.msra.mxu0 %v341
    %393 = vmatprep.subr.mxu0 0.0
    %394 = vmatpush1.msra.mxu0 %v342
    %395 = vmatprep.subr.mxu0 0.0
    %396 = vmatpush1.msra.mxu0 %v343
    %397 = vmatprep.subr.mxu0 0.0
    %398 = vmatpush1.msra.mxu0 %v344
    %399 = vmatprep.subr.mxu0 0.0
    %400 = vmatpush1.msra.mxu0 %v345
    %401 = vmatprep.subr.mxu0 0.0
    %402 = vmatpush1.msra.mxu0 %v346
    %403 = vmatprep.subr.mxu0 0.0
    %404 = vmatpush1.msra.mxu0 %v347
    %405 = vmatprep.subr.mxu0 0.0
    %406 = vmatpush1.msra.mxu0 %v348
    %407 = vmatprep.subr.mxu0 0.0
    %408 = vmatpush1.msra.mxu0 %v349
    %409 = vmatprep.subr.mxu0 0.0
    %410 = vmatpush1.msra.mxu0 %v350
    %411 = vmatprep.subr.mxu0 0.0
    %412 = vmatpush1.msra.mxu0 %v351
    %413 = vmatprep.subr.mxu0 0.0
    %414 = vmatpush1.msra.mxu0 %v352
    %415 = vmatprep.subr.mxu0 0.0
    %416 = vmatpush1.msra.mxu0 %v353
    %417 = vmatprep.subr.mxu0 0.0
    %418 = vmatpush1.msra.mxu0 %v354
    %419 = vmatprep.subr.mxu0 0.0
    %420 = vmatpush1.msra.mxu0 %v355
    %421 = vmatprep.subr.mxu0 0.0
    %422 = vmatpush1.msra.mxu0 %v356
    %423 = vmatprep.subr.mxu0 0.0
    %424 = vmatpush1.msra.mxu0 %v357
    %425 = vmatprep.subr.mxu0 0.0
    %426 = vmatpush1.msra.mxu0 %v358
    %427 = vmatprep.subr.mxu0 0.0
    %428 = vmatpush1.msra.mxu0 %v359
    %429 = vmatprep.subr.mxu0 0.0
    %430 = vmatpush1.msra.mxu0 %v360
    %431 = vmatprep.subr.mxu0 0.0
    %432 = vmatpush1.msra.mxu0 %v361
    %433 = vmatprep.mubr.f32.mxu0 %v329
    %434 = vmatmul.mubr.f32.gmra.mrb[0].mxu0 %v328
    %v435 = vpop.f32.mrb[0].mxu0
    %v436 = vadd.f32 %v367, %v435
    %v437 = vpop.f32.mrb[0].mxu0
    %438 = vdwg.mxu0
    %v439 = vxor.u32 %v436, 2147483648
    %v440 = vmul.f32 %v439, 1.442695
    %v441 = vpow.pop %v440
    %v442 = vadd.f32 %v441, 1.0
    %v443 = vrcp.pop %v442
    %v444 = vmul.f32 1.0, %v443
    %vm445 = vcmask 1024
    %446 = vst.msk [vmem:[%s7] sm:$0x3] %vm445, %v444
  $region37: #{audio_transformer_forward.13} parent=0 // pred_fallthru
    _
  // Predicated region
  $region38: #{audio_transformer_forward.13} parent=0 // pred_check
    _
  $region39: #{audio_transformer_forward.13} parent=0 // pred_check_branch
    %448 = sbr.rel (0) target = $region41
  $region40: #{audio_transformer_forward.13} parent=0 // pred_region
    _
  $region41: #{audio_transformer_forward.13} parent=0 // pred_fallthru
    _
  // Predicated region
  $region42: #{audio_transformer_forward.13} parent=0 // pred_check
    _
  $region43: #{audio_transformer_forward.13} parent=0 // pred_check_branch
    %450 = sbr.rel (0) target = $region45
  $region44: #{audio_transformer_forward.13} parent=0 // pred_region
    _
  $region45: #{audio_transformer_forward.13} parent=0 // pred_fallthru
    _

// kernel: audio_transformer_forward.9
$region0: #{audio_transformer_forward.9}
  #allocation0 [shape = 'u32[]', space=smem, size = 0x4, offset = 0x4, fixed_abs, tag = 'smem constant byte address 0x4 - core index']
  #allocation1 [shape = 'u32[144,128]{1,0:T(1,128)}', space=vmem, size = 0x12000, scoped, tag = 'internal scratch']
  #allocation2 [shape = 'f32[4,16,32]{2,1,0:T(8,128)}', space=vmem, size = 0x8000, scoped, tag = 'scratch operand']
  #allocation3 [shape = 'f32[4,16,32]{2,1,0:T(8,128)}', space=vmem, size = 0x8000, scoped, tag = 'scratch operand']
  %s0 = inlined_call_operand.vmem [shape: f32[2,16,128], index: 0, kind: input, shape index: {}, may-alias: {0,1}]
  %s1 = inlined_call_operand.vmem [shape: f32[2,16,128], index: 1, kind: input, shape index: {}, may-alias: {0,1}]
  %s2 = inlined_call_operand.vmem [shape: f32[4,128,32], index: 2, kind: input, shape index: {}]
  %s3 = inlined_call_operand.vmem [shape: f32[4,128,32], index: 3, kind: input, shape index: {}]
  %s4 = inlined_call_operand.vmem [shape: f32[4,128,32], index: 4, kind: input, shape index: {}]
  %s5 = inlined_call_operand.vmem [shape: f32[4,1,32], index: 5, kind: input, shape index: {}]
  %s6 = inlined_call_operand.vmem [shape: f32[4,1,32], index: 6, kind: input, shape index: {}]
  %s7 = inlined_call_operand.vmem [shape: f32[4,1,32], index: 7, kind: input, shape index: {}]
  %s8 = inlined_call_operand.vmem [shape: f32[4,32,128], index: 8, kind: input, shape index: {}]
  %s9 = inlined_call_operand.vmem [shape: f32[1,128], index: 9, kind: input, shape index: {}]
  %s10 = inlined_call_operand.vmem [shape: f32[1,128], index: 10, kind: input, shape index: {}]
  %s11 = inlined_call_operand.vmem [shape: f32[1,128], index: 11, kind: input, shape index: {}]
  %s12 = inlined_call_operand.vmem [shape: f32[2,16,128], index: 12, kind: output, shape index: {}]
  %s13 = sld [smem:[#allocation0]]
  $region85: #{audio_transformer_forward.9} parent=0
    _
  %s15 = ssub.s32 1, %s13
  %s16 = scalar_select 0, %s15, %s13
  loop: start=0, step=1, limit=4
  $region2: #{audio_transformer_forward.9} parent=0 // loop_pre_header
    _
  $region3: #{audio_transformer_forward.9} parent=0 // loop_header
    %s18 = sphi 0, %s22
    %p19 = scmp.ge.s32.totalorder %s18, 4
    %s25 = sphi 0, %s37
    %s26 = sphi 0, %s33
    %s27 = sphi 0, %s25
    %s28 = sphi 0, %s26
    %s29 = sphi 0, %s27
    %s30 = sphi 0, %s28
    %s42 = sphi 0, %s44
    %s45 = sphi 0, %s42
    %s46 = sphi 0, %s45
    %s62 = sphi 0, %s46
    %s68 = sphi 0, %s70
    %s71 = sphi 0, %s68
    %s72 = sphi 0, %s71
    %s88 = sphi 0, %s72
    %s92 = sphi 0, %s92
    %s94 = sphi 0, %s92
    %s95 = sphi 0, %s94
    %s109 = sphi 0, %s95
    %s113 = sphi 0, %s113
    %s115 = sphi 0, %s113
    %s116 = sphi 0, %s115
    %s130 = sphi 0, %s116
    %s134 = sphi 0, %s134
    %s136 = sphi 0, %s134
    %s137 = sphi 0, %s136
    %s151 = sphi 0, %s137
    %s155 = sphi 0, %s155
    %s157 = sphi 0, %s155
    %s158 = sphi 0, %s157
    %s172 = sphi 0, %s158
    %s176 = sphi 0, %s176
    %s178 = sphi 0, %s176
    %s179 = sphi 0, %s178
    %s193 = sphi 0, %s179
    %s197 = sphi 0, %s197
    %s199 = sphi 0, %s197
    %s200 = sphi 0, %s199
    %s214 = sphi 0, %s200
    %s218 = sphi 0, %s218
    %s220 = sphi 0, %s218
    %s221 = sphi 0, %s220
    %s235 = sphi 0, %s221
    %s239 = sphi 0, %s239
    %s241 = sphi 0, %s239
    %s242 = sphi 0, %s241
    %s256 = sphi 0, %s242
    %s260 = sphi 0, %s260
    %s262 = sphi 0, %s260
    %s263 = sphi 0, %s262
    %s277 = sphi 0, %s263
    %s281 = sphi 0, %s281
    %s283 = sphi 0, %s281
    %s284 = sphi 0, %s283
    %s298 = sphi 0, %s284
    %s306 = sphi 0, %s308
    %s309 = sphi 0, %s306
    %s310 = sphi 0, %s309
    %s326 = sphi 0, %s310
  $region4: #{audio_transformer_forward.9} parent=0 // loop_header_branch
    %21 = sbr.rel (%p19) target = $region8
  $region5: #{audio_transformer_forward.9} parent=0 // loop_body
    %s23 = ssub.s32 %s18, 1
    %s24 = ssub.s32 %s18, 2
    %s31 = sadd.s32 1, %s26
    %p32 = scmp.ge.s32.totalorder %s31, 1
    %s33 = scalar_select %p32, 0, %s31
    %s34 = sadd.s32 1, %s25
    %s35 = scalar_select %p32, %s34, %s25
    %p36 = scmp.ge.s32.totalorder %s35, 2
    %s37 = scalar_select %p36, 0, %s35
    %s38 = ssub.s32 %s25, %s37
    %s39 = ssub.s32 %s26, %s33
    %s40 = sor.u32 %s38, %s39
    %p41 = scmp.eq.s32.totalorder %s40, 0
    %s43 = sadd.s32 %s42, 1
    %s44 = scalar_select %p41, %s42, %s43
    %p47 = pneg %p41
    %p48 = scmp.eq.s32.totalorder %s18, 1
    %p49 = por %p47, %p48
    %p50 = scmp.ne.s32.totalorder %s42, %s45
    %p51 = scmp.eq.s32.totalorder %s18, 0
    %p52 = por %p50, %p51
    %p53 = scmp.ne.s32.totalorder %s42, %s45
    %p54 = scmp.eq.s32.totalorder %s23, 1
    %p55 = por %p53, %p54
    %p56 = scmp.ne.s32.totalorder %s45, %s46
    %p57 = scmp.eq.s32.totalorder %s23, 0
    %p58 = por %p56, %p57
    %p59 = scmp.ne.s32.totalorder %s45, %s46
    %p60 = scmp.eq.s32.totalorder %s24, 1
    %p61 = por %p59, %p60
    %p63 = scmp.ne.s32.totalorder %s46, %s62
    %p64 = scmp.eq.s32.totalorder %s24, 0
    %p65 = por %p63, %p64
    %s66 = ssub.s32 %s25, %s37
    %p67 = scmp.eq.s32.totalorder %s66, 0
    %s69 = sadd.s32 %s68, 1
    %s70 = scalar_select %p67, %s68, %s69
    %p73 = pneg %p67
    %p74 = scmp.eq.s32.totalorder %s18, 1
    %p75 = por %p73, %p74
    %p76 = scmp.ne.s32.totalorder %s68, %s71
    %p77 = scmp.eq.s32.totalorder %s18, 0
    %p78 = por %p76, %p77
    %p79 = scmp.ne.s32.totalorder %s68, %s71
    %p80 = scmp.eq.s32.totalorder %s23, 1
    %p81 = por %p79, %p80
    %p82 = scmp.ne.s32.totalorder %s71, %s72
    %p83 = scmp.eq.s32.totalorder %s23, 0
    %p84 = por %p82, %p83
    %p85 = scmp.ne.s32.totalorder %s71, %s72
    %p86 = scmp.eq.s32.totalorder %s24, 1
    %p87 = por %p85, %p86
    %p89 = scmp.ne.s32.totalorder %s72, %s88
    %p90 = scmp.eq.s32.totalorder %s24, 0
    %p91 = por %p89, %p90
    %s93 = sadd.s32 %s92, 1
    %p96 = scmp.eq.s32.totalorder %s18, 1
    %p97 = scmp.ne.s32.totalorder %s92, %s94
    %p98 = scmp.eq.s32.totalorder %s18, 0
    %p99 = por %p97, %p98
    %p100 = scmp.ne.s32.totalorder %s92, %s94
    %p101 = scmp.eq.s32.totalorder %s23, 1
    %p102 = por %p100, %p101
    %p103 = scmp.ne.s32.totalorder %s94, %s95
    %p104 = scmp.eq.s32.totalorder %s23, 0
    %p105 = por %p103, %p104
    %p106 = scmp.ne.s32.totalorder %s94, %s95
    %p107 = scmp.eq.s32.totalorder %s24, 1
    %p108 = por %p106, %p107
    %p110 = scmp.ne.s32.totalorder %s95, %s109
    %p111 = scmp.eq.s32.totalorder %s24, 0
    %p112 = por %p110, %p111
    %s114 = sadd.s32 %s113, 1
    %p117 = scmp.eq.s32.totalorder %s18, 1
    %p118 = scmp.ne.s32.totalorder %s113, %s115
    %p119 = scmp.eq.s32.totalorder %s18, 0
    %p120 = por %p118, %p119
    %p121 = scmp.ne.s32.totalorder %s113, %s115
    %p122 = scmp.eq.s32.totalorder %s23, 1
    %p123 = por %p121, %p122
    %p124 = scmp.ne.s32.totalorder %s115, %s116
    %p125 = scmp.eq.s32.totalorder %s23, 0
    %p126 = por %p124, %p125
    %p127 = scmp.ne.s32.totalorder %s115, %s116
    %p128 = scmp.eq.s32.totalorder %s24, 1
    %p129 = por %p127, %p128
    %p131 = scmp.ne.s32.totalorder %s116, %s130
    %p132 = scmp.eq.s32.totalorder %s24, 0
    %p133 = por %p131, %p132
    %s135 = sadd.s32 %s134, 1
    %p138 = scmp.eq.s32.totalorder %s18, 1
    %p139 = scmp.ne.s32.totalorder %s134, %s136
    %p140 = scmp.eq.s32.totalorder %s18, 0
    %p141 = por %p139, %p140
    %p142 = scmp.ne.s32.totalorder %s134, %s136
    %p143 = scmp.eq.s32.totalorder %s23, 1
    %p144 = por %p142, %p143
    %p145 = scmp.ne.s32.totalorder %s136, %s137
    %p146 = scmp.eq.s32.totalorder %s23, 0
    %p147 = por %p145, %p146
    %p148 = scmp.ne.s32.totalorder %s136, %s137
    %p149 = scmp.eq.s32.totalorder %s24, 1
    %p150 = por %p148, %p149
    %p152 = scmp.ne.s32.totalorder %s137, %s151
    %p153 = scmp.eq.s32.totalorder %s24, 0
    %p154 = por %p152, %p153
    %s156 = sadd.s32 %s155, 1
    %p159 = scmp.eq.s32.totalorder %s18, 1
    %p160 = scmp.ne.s32.totalorder %s155, %s157
    %p161 = scmp.eq.s32.totalorder %s18, 0
    %p162 = por %p160, %p161
    %p163 = scmp.ne.s32.totalorder %s155, %s157
    %p164 = scmp.eq.s32.totalorder %s23, 1
    %p165 = por %p163, %p164
    %p166 = scmp.ne.s32.totalorder %s157, %s158
    %p167 = scmp.eq.s32.totalorder %s23, 0
    %p168 = por %p166, %p167
    %p169 = scmp.ne.s32.totalorder %s157, %s158
    %p170 = scmp.eq.s32.totalorder %s24, 1
    %p171 = por %p169, %p170
    %p173 = scmp.ne.s32.totalorder %s158, %s172
    %p174 = scmp.eq.s32.totalorder %s24, 0
    %p175 = por %p173, %p174
    %s177 = sadd.s32 %s176, 1
    %p180 = scmp.eq.s32.totalorder %s18, 1
    %p181 = scmp.ne.s32.totalorder %s176, %s178
    %p182 = scmp.eq.s32.totalorder %s18, 0
    %p183 = por %p181, %p182
    %p184 = scmp.ne.s32.totalorder %s176, %s178
    %p185 = scmp.eq.s32.totalorder %s23, 1
    %p186 = por %p184, %p185
    %p187 = scmp.ne.s32.totalorder %s178, %s179
    %p188 = scmp.eq.s32.totalorder %s23, 0
    %p189 = por %p187, %p188
    %p190 = scmp.ne.s32.totalorder %s178, %s179
    %p191 = scmp.eq.s32.totalorder %s24, 1
    %p192 = por %p190, %p191
    %p194 = scmp.ne.s32.totalorder %s179, %s193
    %p195 = scmp.eq.s32.totalorder %s24, 0
    %p196 = por %p194, %p195
    %s198 = sadd.s32 %s197, 1
    %p201 = scmp.eq.s32.totalorder %s18, 1
    %p202 = scmp.ne.s32.totalorder %s197, %s199
    %p203 = scmp.eq.s32.totalorder %s18, 0
    %p204 = por %p202, %p203
    %p205 = scmp.ne.s32.totalorder %s197, %s199
    %p206 = scmp.eq.s32.totalorder %s23, 1
    %p207 = por %p205, %p206
    %p208 = scmp.ne.s32.totalorder %s199, %s200
    %p209 = scmp.eq.s32.totalorder %s23, 0
    %p210 = por %p208, %p209
    %p211 = scmp.ne.s32.totalorder %s199, %s200
    %p212 = scmp.eq.s32.totalorder %s24, 1
    %p213 = por %p211, %p212
    %p215 = scmp.ne.s32.totalorder %s200, %s214
    %p216 = scmp.eq.s32.totalorder %s24, 0
    %p217 = por %p215, %p216
    %s219 = sadd.s32 %s218, 1
    %p222 = scmp.eq.s32.totalorder %s18, 1
    %p223 = scmp.ne.s32.totalorder %s218, %s220
    %p224 = scmp.eq.s32.totalorder %s18, 0
    %p225 = por %p223, %p224
    %p226 = scmp.ne.s32.totalorder %s218, %s220
    %p227 = scmp.eq.s32.totalorder %s23, 1
    %p228 = por %p226, %p227
    %p229 = scmp.ne.s32.totalorder %s220, %s221
    %p230 = scmp.eq.s32.totalorder %s23, 0
    %p231 = por %p229, %p230
    %p232 = scmp.ne.s32.totalorder %s220, %s221
    %p233 = scmp.eq.s32.totalorder %s24, 1
    %p234 = por %p232, %p233
    %p236 = scmp.ne.s32.totalorder %s221, %s235
    %p237 = scmp.eq.s32.totalorder %s24, 0
    %p238 = por %p236, %p237
    %s240 = sadd.s32 %s239, 1
    %p243 = scmp.eq.s32.totalorder %s18, 1
    %p244 = scmp.ne.s32.totalorder %s239, %s241
    %p245 = scmp.eq.s32.totalorder %s18, 0
    %p246 = por %p244, %p245
    %p247 = scmp.ne.s32.totalorder %s239, %s241
    %p248 = scmp.eq.s32.totalorder %s23, 1
    %p249 = por %p247, %p248
    %p250 = scmp.ne.s32.totalorder %s241, %s242
    %p251 = scmp.eq.s32.totalorder %s23, 0
    %p252 = por %p250, %p251
    %p253 = scmp.ne.s32.totalorder %s241, %s242
    %p254 = scmp.eq.s32.totalorder %s24, 1
    %p255 = por %p253, %p254
    %p257 = scmp.ne.s32.totalorder %s242, %s256
    %p258 = scmp.eq.s32.totalorder %s24, 0
    %p259 = por %p257, %p258
    %s261 = sadd.s32 %s260, 1
    %p264 = scmp.eq.s32.totalorder %s18, 1
    %p265 = scmp.ne.s32.totalorder %s260, %s262
    %p266 = scmp.eq.s32.totalorder %s18, 0
    %p267 = por %p265, %p266
    %p268 = scmp.ne.s32.totalorder %s260, %s262
    %p269 = scmp.eq.s32.totalorder %s23, 1
    %p270 = por %p268, %p269
    %p271 = scmp.ne.s32.totalorder %s262, %s263
    %p272 = scmp.eq.s32.totalorder %s23, 0
    %p273 = por %p271, %p272
    %p274 = scmp.ne.s32.totalorder %s262, %s263
    %p275 = scmp.eq.s32.totalorder %s24, 1
    %p276 = por %p274, %p275
    %p278 = scmp.ne.s32.totalorder %s263, %s277
    %p279 = scmp.eq.s32.totalorder %s24, 0
    %p280 = por %p278, %p279
    %s282 = sadd.s32 %s281, 1
    %p285 = scmp.eq.s32.totalorder %s18, 1
    %p286 = scmp.ne.s32.totalorder %s281, %s283
    %p287 = scmp.eq.s32.totalorder %s18, 0
    %p288 = por %p286, %p287
    %p289 = scmp.ne.s32.totalorder %s281, %s283
    %p290 = scmp.eq.s32.totalorder %s23, 1
    %p291 = por %p289, %p290
    %p292 = scmp.ne.s32.totalorder %s283, %s284
    %p293 = scmp.eq.s32.totalorder %s23, 0
    %p294 = por %p292, %p293
    %p295 = scmp.ne.s32.totalorder %s283, %s284
    %p296 = scmp.eq.s32.totalorder %s24, 1
    %p297 = por %p295, %p296
    %p299 = scmp.ne.s32.totalorder %s284, %s298
    %p300 = scmp.eq.s32.totalorder %s24, 0
    %p301 = por %p299, %p300
    %s302 = ssub.s32 %s25, %s37
    %s303 = ssub.s32 %s26, %s33
    %s304 = sor.u32 %s302, %s303
    %p305 = scmp.eq.s32.totalorder %s304, 0
    %s307 = sadd.s32 %s306, 1
    %s308 = scalar_select %p305, %s306, %s307
    %p311 = pneg %p305
    %p312 = scmp.eq.s32.totalorder %s18, 1
    %p313 = por %p311, %p312
    %p314 = scmp.ne.s32.totalorder %s306, %s309
    %p315 = scmp.eq.s32.totalorder %s18, 0
    %p316 = por %p314, %p315
    %p317 = scmp.ne.s32.totalorder %s306, %s309
    %p318 = scmp.eq.s32.totalorder %s23, 1
    %p319 = por %p317, %p318
    %p320 = scmp.ne.s32.totalorder %s309, %s310
    %p321 = scmp.eq.s32.totalorder %s23, 0
    %p322 = por %p320, %p321
    %p323 = scmp.ne.s32.totalorder %s309, %s310
    %p324 = scmp.eq.s32.totalorder %s24, 1
    %p325 = por %p323, %p324
    %p327 = scmp.ne.s32.totalorder %s310, %s326
    %p328 = scmp.eq.s32.totalorder %s24, 0
    %p329 = por %p327, %p328
    %p330 = scmp.le.s32.totalorder 1, %s18
    %p331 = scmp.lt.s32.totalorder %s18, 3
    %p332 = pnand %p330, %p331
    %p333 = pneg %p332
    // Predicated region
    $region9: #{audio_transformer_forward.9} parent=5 // pred_check
      _
    $region10: #{audio_transformer_forward.9} parent=5 // pred_check_branch
      %335 = sbr.rel (%p332) target = $region12
    $region11: #{audio_transformer_forward.9} parent=5 // pred_region
      %s336 = ssub.s32 %s18, 1
      // Predicated region
      $region13: #{audio_transformer_forward.9} parent=11 // pred_check
        %p337 = pneg %p105
      $region14: #{audio_transformer_forward.9} parent=11 // pred_check_branch
        %339 = sbr.rel (%p337) target = $region16
      $region15: #{audio_transformer_forward.9} parent=11 // pred_region
        _
      $region16: #{audio_transformer_forward.9} parent=11 // pred_fallthru
        _
      // Predicated region
      $region17: #{audio_transformer_forward.9} parent=11 // pred_check
        %p340 = pneg %p126
      $region18: #{audio_transformer_forward.9} parent=11 // pred_check_branch
        %342 = sbr.rel (%p340) target = $region20
      $region19: #{audio_transformer_forward.9} parent=11 // pred_region
        _
      $region20: #{audio_transformer_forward.9} parent=11 // pred_fallthru
        _
      // Predicated region
      $region21: #{audio_transformer_forward.9} parent=11 // pred_check
        %p343 = pneg %p147
      $region22: #{audio_transformer_forward.9} parent=11 // pred_check_branch
        %345 = sbr.rel (%p343) target = $region24
      $region23: #{audio_transformer_forward.9} parent=11 // pred_region
        _
      $region24: #{audio_transformer_forward.9} parent=11 // pred_fallthru
        _
      // Predicated region
      $region25: #{audio_transformer_forward.9} parent=11 // pred_check
        %p346 = pneg %p168
      $region26: #{audio_transformer_forward.9} parent=11 // pred_check_branch
        %348 = sbr.rel (%p346) target = $region28
      $region27: #{audio_transformer_forward.9} parent=11 // pred_region
        _
      $region28: #{audio_transformer_forward.9} parent=11 // pred_fallthru
        _
      // Predicated region
      $region29: #{audio_transformer_forward.9} parent=11 // pred_check
        %p349 = pneg %p189
      $region30: #{audio_transformer_forward.9} parent=11 // pred_check_branch
        %351 = sbr.rel (%p349) target = $region32
      $region31: #{audio_transformer_forward.9} parent=11 // pred_region
        _
      $region32: #{audio_transformer_forward.9} parent=11 // pred_fallthru
        _
      // Predicated region
      $region33: #{audio_transformer_forward.9} parent=11 // pred_check
        %p352 = pneg %p210
      $region34: #{audio_transformer_forward.9} parent=11 // pred_check_branch
        %354 = sbr.rel (%p352) target = $region36
      $region35: #{audio_transformer_forward.9} parent=11 // pred_region
        _
      $region36: #{audio_transformer_forward.9} parent=11 // pred_fallthru
        _
      // Predicated region
      $region37: #{audio_transformer_forward.9} parent=11 // pred_check
        %p355 = pneg %p231
      $region38: #{audio_transformer_forward.9} parent=11 // pred_check_branch
        %357 = sbr.rel (%p355) target = $region40
      $region39: #{audio_transformer_forward.9} parent=11 // pred_region
        _
      $region40: #{audio_transformer_forward.9} parent=11 // pred_fallthru
        _
      // Predicated region
      $region41: #{audio_transformer_forward.9} parent=11 // pred_check
        %p358 = pneg %p252
      $region42: #{audio_transformer_forward.9} parent=11 // pred_check_branch
        %360 = sbr.rel (%p358) target = $region44
      $region43: #{audio_transformer_forward.9} parent=11 // pred_region
        _
      $region44: #{audio_transformer_forward.9} parent=11 // pred_fallthru
        _
      // Predicated region
      $region45: #{audio_transformer_forward.9} parent=11 // pred_check
        %p361 = pneg %p273
      $region46: #{audio_transformer_forward.9} parent=11 // pred_check_branch
        %363 = sbr.rel (%p361) target = $region48
      $region47: #{audio_transformer_forward.9} parent=11 // pred_region
        _
      $region48: #{audio_transformer_forward.9} parent=11 // pred_fallthru
        _
      // Predicated region
      $region49: #{audio_transformer_forward.9} parent=11 // pred_check
        %p364 = pneg %p294
      $region50: #{audio_transformer_forward.9} parent=11 // pred_check_branch
        %366 = sbr.rel (%p364) target = $region52
      $region51: #{audio_transformer_forward.9} parent=11 // pred_region
        _
      $region52: #{audio_transformer_forward.9} parent=11 // pred_fallthru
        _
    $region12: #{audio_transformer_forward.9} parent=5 // pred_fallthru
      _
    %p367 = scmp.lt.s32.totalorder %s18, 2
    // Predicated region
    $region53: #{audio_transformer_forward.9} parent=5 // pred_check
      %p368 = pneg %p367
    $region54: #{audio_transformer_forward.9} parent=5 // pred_check_branch
      %370 = sbr.rel (%p368) target = $region56
    $region55: #{audio_transformer_forward.9} parent=5 // pred_region
      // Predicated region
      $region57: #{audio_transformer_forward.9} parent=55 // pred_check
        %p371 = pneg %p52
      $region58: #{audio_transformer_forward.9} parent=55 // pred_check_branch
        %373 = sbr.rel (%p371) target = $region60
      $region59: #{audio_transformer_forward.9} parent=55 // pred_region
        %s374 = smul.u32 2, %s26
        %p375 = scmp.lt.s32.totalorder %s25, 1
        %s376 = scalar_select %p375, %s25, 1
        %p377 = scmp.lt.s32.totalorder %s374, 1
        %s378 = scalar_select %p377, %s374, 1
        %s379 = smul.addr %s376, 2
        %s380 = sadd.s32 %s378, %s379
        %s381 = smul.addr %s380, 8
        %s382 = scalar_lea.vmem %s0, %s381
        %s383 = smul.u32 2, %s26
      $region60: #{audio_transformer_forward.9} parent=55 // pred_fallthru
        _
      // Predicated region
      $region61: #{audio_transformer_forward.9} parent=55 // pred_check
        %p384 = pneg %p78
      $region62: #{audio_transformer_forward.9} parent=55 // pred_check_branch
        %386 = sbr.rel (%p384) target = $region64
      $region63: #{audio_transformer_forward.9} parent=55 // pred_region
        %p387 = scmp.lt.s32.totalorder %s25, 1
        %s388 = scalar_select %p387, %s25, 1
        %s389 = smul.addr %s388, 2
        %s390 = smul.addr %s389, 8
        %s391 = scalar_lea.vmem %s1, %s390
      $region64: #{audio_transformer_forward.9} parent=55 // pred_fallthru
        _
    $region56: #{audio_transformer_forward.9} parent=5 // pred_fallthru
      _
    %p392 = scmp.le.s32.totalorder 1, %s18
    %p393 = scmp.lt.s32.totalorder %s18, 3
    %p394 = pnand %p392, %p393
    %p395 = pneg %p394
    // Predicated region
    $region65: #{audio_transformer_forward.9} parent=5 // pred_check
      _
    $region66: #{audio_transformer_forward.9} parent=5 // pred_check_branch
      %397 = sbr.rel (%p394) target = $region68
    $region67: #{audio_transformer_forward.9} parent=5 // pred_region
      %s398 = ssub.s32 %s18, 1
      %s399 = smul.u32 2, %s28
      %p400 = scmp.lt.s32.totalorder %s27, 1
      %s401 = scalar_select %p400, %s27, 1
      %p402 = scmp.lt.s32.totalorder %s399, 1
      %s403 = scalar_select %p402, %s399, 1
      %s404 = smul.addr %s401, 2
      %s405 = sadd.s32 %s403, %s404
      %s406 = smul.addr %s405, 8
      %s407 = scalar_lea.vmem %s0, %s406
      %p408 = pneg %p58
      %p409 = pneg %p55
      %p410 = scmp.lt.s32.totalorder %s27, 1
      %s411 = scalar_select %p410, %s27, 1
      %s412 = smul.addr %s411, 2
      %s413 = smul.addr %s412, 8
      %s414 = scalar_lea.vmem %s1, %s413
      %p415 = pneg %p84
      %p416 = pneg %p81
      %p417 = pneg %p105
      %p418 = pneg %p102
      %p419 = pneg %p126
      %p420 = pneg %p123
      %p421 = pneg %p147
      %p422 = pneg %p144
      %p423 = pneg %p168
      %p424 = pneg %p165
      %p425 = pneg %p189
      %p426 = pneg %p186
      %p427 = pneg %p210
      %p428 = pneg %p207
      %p429 = pneg %p231
      %p430 = pneg %p228
      %p431 = pneg %p252
      %p432 = pneg %p249
      %p433 = pneg %p273
      %p434 = pneg %p270
      %p435 = pneg %p294
      %p436 = pneg %p291
      %p437 = pneg %p322
      %p438 = pneg %p319
      %s439 = smul.u32 2, %s28
      %p440 = scmp.lt.s32.totalorder %s27, 1
      %s441 = scalar_select %p440, %s27, 1
      %p442 = scmp.lt.s32.totalorder %s439, 1
      %s443 = scalar_select %p442, %s439, 1
      %s444 = smul.addr %s441, 2
      %s445 = sadd.s32 %s443, %s444
      %s446 = smul.addr %s445, 8
      %s447 = scalar_lea.vmem %s12, %s446
      %s448 = smul.u32 2, %s28
      %p449 = scmp.lt.s32.totalorder %s27, 1
      %s450 = scalar_select %p449, %s27, 1
      %p451 = scmp.lt.s32.totalorder %s448, 1
      %s452 = scalar_select %p451, %s448, 1
      %s453 = smul.addr %s450, 2
      %s454 = sadd.s32 %s452, %s453
      %s455 = smul.addr %s454, 8
      %s456 = scalar_lea.vmem %s0, %s455
      %s457 = smul.u32 2, %s28
      %p458 = scmp.lt.s32.totalorder %s27, 1
      %s459 = scalar_select %p458, %s27, 1
      %s460 = smul.addr %s459, 2
      %s461 = smul.addr %s460, 8
      %s462 = scalar_lea.vmem %s1, %s461
      %s463 = smul.u32 2, %s28
      %p464 = scmp.lt.s32.totalorder %s27, 1
      %s465 = scalar_select %p464, %s27, 1
      %p466 = scmp.lt.s32.totalorder %s463, 1
      %s467 = scalar_select %p466, %s463, 1
      %s468 = smul.addr %s465, 2
      %s469 = sadd.s32 %s467, %s468
      %s470 = smul.addr %s469, 8
      %s471 = scalar_lea.vmem %s12, %s470
      %s472 = smul.u32 2, %s28
      %p473 = scmp.eq.s32.totalorder %s28, 0
      // Predicated region
      $region69: #{audio_transformer_forward.9} parent=67 // pred_check
        %p474 = pneg %p473
      $region70: #{audio_transformer_forward.9} parent=67 // pred_check_branch
        %476 = sbr.rel (%p474) target = $region72
      $region71: #{audio_transformer_forward.9} parent=67 // pred_region
        %v477 = vld [vmem:[%s462] sm:$0xff]
        %v478 = vld [vmem:[%s462 + $0x8] sm:$0xff]
        %v479 = vld [vmem:[%s3] sm:$0xff]
        %v480 = vld [vmem:[%s3 + $0x8] sm:$0xff]
        %v481 = vld [vmem:[%s3 + $0x10] sm:$0xff]
        %v482 = vld [vmem:[%s3 + $0x18] sm:$0xff]
        %v483 = vld [vmem:[%s3 + $0x20] sm:$0xff]
        %v484 = vld [vmem:[%s3 + $0x28] sm:$0xff]
        %v485 = vld [vmem:[%s3 + $0x30] sm:$0xff]
        %v486 = vld [vmem:[%s3 + $0x38] sm:$0xff]
        %v487 = vld [vmem:[%s3 + $0x40] sm:$0xff]
        %v488 = vld [vmem:[%s3 + $0x48] sm:$0xff]
        %v489 = vld [vmem:[%s3 + $0x50] sm:$0xff]
        %v490 = vld [vmem:[%s3 + $0x58] sm:$0xff]
        %v491 = vld [vmem:[%s3 + $0x60] sm:$0xff]
        %v492 = vld [vmem:[%s3 + $0x68] sm:$0xff]
        %v493 = vld [vmem:[%s3 + $0x70] sm:$0xff]
        %v494 = vld [vmem:[%s3 + $0x78] sm:$0xff]
        %v495 = vld [vmem:[%s6] sm:$0x1]
        %v497 = vlaneseq
        %v498 = vshrl.u32 %v497, 7
        %v499 = vsub.s32 0, %v498
        %v500 = vrot.slane %v495, %v499
        %502 = vmatprep.subr.mxu0 0.0
        %503 = vmatpush1.msra.mxu0 %v479
        %504 = vmatprep.subr.mxu0 0.0
        %505 = vmatpush1.msra.mxu0 %v480
        %506 = vmatprep.subr.mxu0 0.0
        %507 = vmatpush1.msra.mxu0 %v481
        %508 = vmatprep.subr.mxu0 0.0
        %509 = vmatpush1.msra.mxu0 %v482
        %510 = vmatprep.subr.mxu0 0.0
        %511 = vmatpush1.msra.mxu0 %v483
        %512 = vmatprep.subr.mxu0 0.0
        %513 = vmatpush1.msra.mxu0 %v484
        %514 = vmatprep.subr.mxu0 0.0
        %515 = vmatpush1.msra.mxu0 %v485
        %516 = vmatprep.subr.mxu0 0.0
        %517 = vmatpush1.msra.mxu0 %v486
        %518 = vmatprep.subr.mxu0 0.0
        %519 = vmatpush1.msra.mxu0 %v487
        %520 = vmatprep.subr.mxu0 0.0
        %521 = vmatpush1.msra.mxu0 %v488
        %522 = vmatprep.subr.mxu0 0.0
        %523 = vmatpush1.msra.mxu0 %v489
        %524 = vmatprep.subr.mxu0 0.0
        %525 = vmatpush1.msra.mxu0 %v490
        %526 = vmatprep.subr.mxu0 0.0
        %527 = vmatpush1.msra.mxu0 %v491
        %528 = vmatprep.subr.mxu0 0.0
        %529 = vmatpush1.msra.mxu0 %v492
        %530 = vmatprep.subr.mxu0 0.0
        %531 = vmatpush1.msra.mxu0 %v493
        %532 = vmatprep.subr.mxu0 0.0
        %533 = vmatpush1.msra.mxu0 %v494
        %534 = vmatprep.subr.mxu0 0.0
        %535 = vmatpush1.msra.mxu0 0.0
        %536 = vmatprep.subr.mxu0 0.0
        %537 = vmatpush1.msra.mxu0 0.0
        %538 = vmatprep.subr.mxu0 0.0
        %539 = vmatpush1.msra.mxu0 0.0
        %540 = vmatprep.subr.mxu0 0.0
        %541 = vmatpush1.msra.mxu0 0.0
        %542 = vmatprep.subr.mxu0 0.0
        %543 = vmatpush1.msra.mxu0 0.0
        %544 = vmatprep.subr.mxu0 0.0
        %545 = vmatpush1.msra.mxu0 0.0
        %546 = vmatprep.subr.mxu0 0.0
        %547 = vmatpush1.msra.mxu0 0.0
        %548 = vmatprep.subr.mxu0 0.0
        %549 = vmatpush1.msra.mxu0 0.0
        %550 = vmatprep.subr.mxu0 0.0
        %551 = vmatpush1.msra.mxu0 0.0
        %552 = vmatprep.subr.mxu0 0.0
        %553 = vmatpush1.msra.mxu0 0.0
        %554 = vmatprep.subr.mxu0 0.0
        %555 = vmatpush1.msra.mxu0 0.0
        %556 = vmatprep.subr.mxu0 0.0
        %557 = vmatpush1.msra.mxu0 0.0
        %558 = vmatprep.subr.mxu0 0.0
        %559 = vmatpush1.msra.mxu0 0.0
        %560 = vmatprep.subr.mxu0 0.0
        %561 = vmatpush1.msra.mxu0 0.0
        %562 = vmatprep.subr.mxu0 0.0
        %563 = vmatpush1.msra.mxu0 0.0
        %564 = vmatprep.subr.mxu0 0.0
        %565 = vmatpush1.msra.mxu0 0.0
        %566 = vmatprep.mubr.f32.mxu0 0.0
        %567 = vmatmul.mubr.f32.gmra.mrb[0].mxu0 %v477
        %v568 = vpop.f32.mrb[0].mxu0
        %v569 = vadd.f32 %v500, %v568
        %v570 = vpop.f32.mrb[0].mxu0
        %571 = vmatprep.mubr.f32.mxu0 0.0
        %572 = vmatmul.mubr.f32.gmra.mrb[0].mxu0 %v478
        %v573 = vpop.f32.mrb[0].mxu0
        %v574 = vadd.f32 %v500, %v573
        %v575 = vpop.f32.mrb[0].mxu0
        %576 = vdwg.mxu0
        %vm577 = vcmask 261120
        %578 = vst.msk [vmem:[#allocation2] sm:$0xff] %vm577, %v569
        %579 = vst.msk [vmem:[#allocation2 + $0x8] sm:$0xff] %vm577, %v574
        %v580 = vld [vmem:[%s4] sm:$0xff]
        %v581 = vld [vmem:[%s4 + $0x8] sm:$0xff]
        %v582 = vld [vmem:[%s4 + $0x10] sm:$0xff]
        %v583 = vld [vmem:[%s4 + $0x18] sm:$0xff]
        %v584 = vld [vmem:[%s4 + $0x20] sm:$0xff]
        %v585 = vld [vmem:[%s4 + $0x28] sm:$0xff]
        %v586 = vld [vmem:[%s4 + $0x30] sm:$0xff]
        %v587 = vld [vmem:[%s4 + $0x38] sm:$0xff]
        %v588 = vld [vmem:[%s4 + $0x40] sm:$0xff]
        %v589 = vld [vmem:[%s4 + $0x48] sm:$0xff]
        %v590 = vld [vmem:[%s4 + $0x50] sm:$0xff]
        %v591 = vld [vmem:[%s4 + $0x58] sm:$0xff]
        %v592 = vld [vmem:[%s4 + $0x60] sm:$0xff]
        %v593 = vld [vmem:[%s4 + $0x68] sm:$0xff]
        %v594 = vld [vmem:[%s4 + $0x70] sm:$0xff]
        %v595 = vld [vmem:[%s4 + $0x78] sm:$0xff]
        %v596 = vld [vmem:[%s7] sm:$0x1]
        %v598 = vlaneseq
        %v599 = vshrl.u32 %v598, 7
        %v600 = vsub.s32 0, %v599
        %v601 = vrot.slane %v596, %v600
        %603 = vmatprep.subr.mxu0 0.0
        %604 = vmatpush1.msra.mxu0 %v580
        %605 = vmatprep.subr.mxu0 0.0
        %606 = vmatpush1.msra.mxu0 %v581
        %607 = vmatprep.subr.mxu0 0.0
        %608 = vmatpush1.msra.mxu0 %v582
        %609 = vmatprep.subr.mxu0 0.0
        %610 = vmatpush1.msra.mxu0 %v583
        %611 = vmatprep.subr.mxu0 0.0
        %612 = vmatpush1.msra.mxu0 %v584
        %613 = vmatprep.subr.mxu0 0.0
        %614 = vmatpush1.msra.mxu0 %v585
        %615 = vmatprep.subr.mxu0 0.0
        %616 = vmatpush1.msra.mxu0 %v586
        %617 = vmatprep.subr.mxu0 0.0
        %618 = vmatpush1.msra.mxu0 %v587
        %619 = vmatprep.subr.mxu0 0.0
        %620 = vmatpush1.msra.mxu0 %v588
        %621 = vmatprep.subr.mxu0 0.0
        %622 = vmatpush1.msra.mxu0 %v589
        %623 = vmatprep.subr.mxu0 0.0
        %624 = vmatpush1.msra.mxu0 %v590
        %625 = vmatprep.subr.mxu0 0.0
        %626 = vmatpush1.msra.mxu0 %v591
        %627 = vmatprep.subr.mxu0 0.0
        %628 = vmatpush1.msra.mxu0 %v592
        %629 = vmatprep.subr.mxu0 0.0
        %630 = vmatpush1.msra.mxu0 %v593
        %631 = vmatprep.subr.mxu0 0.0
        %632 = vmatpush1.msra.mxu0 %v594
        %633 = vmatprep.subr.mxu0 0.0
        %634 = vmatpush1.msra.mxu0 %v595
        %635 = vmatprep.subr.mxu0 0.0
        %636 = vmatpush1.msra.mxu0 0.0
        %637 = vmatprep.subr.mxu0 0.0
        %638 = vmatpush1.msra.mxu0 0.0
        %639 = vmatprep.subr.mxu0 0.0
        %640 = vmatpush1.msra.mxu0 0.0
        %641 = vmatprep.subr.mxu0 0.0
        %642 = vmatpush1.msra.mxu0 0.0
        %643 = vmatprep.subr.mxu0 0.0
        %644 = vmatpush1.msra.mxu0 0.0
        %645 = vmatprep.subr.mxu0 0.0
        %646 = vmatpush1.msra.mxu0 0.0
        %647 = vmatprep.subr.mxu0 0.0
        %648 = vmatpush1.msra.mxu0 0.0
        %649 = vmatprep.subr.mxu0 0.0
        %650 = vmatpush1.msra.mxu0 0.0
        %651 = vmatprep.subr.mxu0 0.0
        %652 = vmatpush1.msra.mxu0 0.0
        %653 = vmatprep.subr.mxu0 0.0
        %654 = vmatpush1.msra.mxu0 0.0
        %655 = vmatprep.subr.mxu0 0.0
        %656 = vmatpush1.msra.mxu0 0.0
        %657 = vmatprep.subr.mxu0 0.0
        %658 = vmatpush1.msra.mxu0 0.0
        %659 = vmatprep.subr.mxu0 0.0
        %660 = vmatpush1.msra.mxu0 0.0
        %661 = vmatprep.subr.mxu0 0.0
        %662 = vmatpush1.msra.mxu0 0.0
        %663 = vmatprep.subr.mxu0 0.0
        %664 = vmatpush1.msra.mxu0 0.0
        %665 = vmatprep.subr.mxu0 0.0
        %666 = vmatpush1.msra.mxu0 0.0
        %667 = vmatprep.mubr.f32.mxu0 0.0
        %668 = vmatmul.mubr.f32.gmra.mrb[0].mxu0 %v477
        %v669 = vpop.f32.mrb[0].mxu0
        %v670 = vadd.f32 %v601, %v669
        %v671 = vpop.f32.mrb[0].mxu0
        %672 = vmatprep.mubr.f32.mxu0 0.0
        %673 = vmatmul.mubr.f32.gmra.mrb[0].mxu0 %v478
        %v674 = vpop.f32.mrb[0].mxu0
        %v675 = vadd.f32 %v601, %v674
        %v676 = vpop.f32.mrb[0].mxu0
        %677 = vdwg.mxu0
        %678 = vst.msk [vmem:[#allocation3] sm:$0xff] %vm577, %v670
        %679 = vst.msk [vmem:[#allocation3 + $0x8] sm:$0xff] %vm577, %v675
        %s680 = scalar_lea.vmem %s3, 128
        %v681 = vld [vmem:[%s680] sm:$0xff]
        %v682 = vld [vmem:[%s680 + $0x8] sm:$0xff]
        %v683 = vld [vmem:[%s680 + $0x10] sm:$0xff]
        %v684 = vld [vmem:[%s680 + $0x18] sm:$0xff]
        %v685 = vld [vmem:[%s680 + $0x20] sm:$0xff]
        %v686 = vld [vmem:[%s680 + $0x28] sm:$0xff]
        %v687 = vld [vmem:[%s680 + $0x30] sm:$0xff]
        %v688 = vld [vmem:[%s680 + $0x38] sm:$0xff]
        %v689 = vld [vmem:[%s680 + $0x40] sm:$0xff]
        %v690 = vld [vmem:[%s680 + $0x48] sm:$0xff]
        %v691 = vld [vmem:[%s680 + $0x50] sm:$0xff]
        %v692 = vld [vmem:[%s680 + $0x58] sm:$0xff]
        %v693 = vld [vmem:[%s680 + $0x60] sm:$0xff]
        %v694 = vld [vmem:[%s680 + $0x68] sm:$0xff]
        %v695 = vld [vmem:[%s680 + $0x70] sm:$0xff]
        %v696 = vld [vmem:[%s680 + $0x78] sm:$0xff]
        %s697 = scalar_lea.vmem %s6, 1
        %v698 = vld [vmem:[%s697] sm:$0x1]
        %v700 = vlaneseq
        %v701 = vshrl.u32 %v700, 7
        %v702 = vsub.s32 0, %v701
        %v703 = vrot.slane %v698, %v702
        %705 = vmatprep.subr.mxu0 0.0
        %706 = vmatpush1.msra.mxu0 %v681
        %707 = vmatprep.subr.mxu0 0.0
        %708 = vmatpush1.msra.mxu0 %v682
        %709 = vmatprep.subr.mxu0 0.0
        %710 = vmatpush1.msra.mxu0 %v683
        %711 = vmatprep.subr.mxu0 0.0
        %712 = vmatpush1.msra.mxu0 %v684
        %713 = vmatprep.subr.mxu0 0.0
        %714 = vmatpush1.msra.mxu0 %v685
        %715 = vmatprep.subr.mxu0 0.0
        %716 = vmatpush1.msra.mxu0 %v686
        %717 = vmatprep.subr.mxu0 0.0
        %718 = vmatpush1.msra.mxu0 %v687
        %719 = vmatprep.subr.mxu0 0.0
        %720 = vmatpush1.msra.mxu0 %v688
        %721 = vmatprep.subr.mxu0 0.0
        %722 = vmatpush1.msra.mxu0 %v689
        %723 = vmatprep.subr.mxu0 0.0
        %724 = vmatpush1.msra.mxu0 %v690
        %725 = vmatprep.subr.mxu0 0.0
        %726 = vmatpush1.msra.mxu0 %v691
        %727 = vmatprep.subr.mxu0 0.0
        %728 = vmatpush1.msra.mxu0 %v692
        %729 = vmatprep.subr.mxu0 0.0
        %730 = vmatpush1.msra.mxu0 %v693
        %731 = vmatprep.subr.mxu0 0.0
        %732 = vmatpush1.msra.mxu0 %v694
        %733 = vmatprep.subr.mxu0 0.0
        %734 = vmatpush1.msra.mxu0 %v695
        %735 = vmatprep.subr.mxu0 0.0
        %736 = vmatpush1.msra.mxu0 %v696
        %737 = vmatprep.subr.mxu0 0.0
        %738 = vmatpush1.msra.mxu0 0.0
        %739 = vmatprep.subr.mxu0 0.0
        %740 = vmatpush1.msra.mxu0 0.0
        %741 = vmatprep.subr.mxu0 0.0
        %742 = vmatpush1.msra.mxu0 0.0
        %743 = vmatprep.subr.mxu0 0.0
        %744 = vmatpush1.msra.mxu0 0.0
        %745 = vmatprep.subr.mxu0 0.0
        %746 = vmatpush1.msra.mxu0 0.0
        %747 = vmatprep.subr.mxu0 0.0
        %748 = vmatpush1.msra.mxu0 0.0
        %749 = vmatprep.subr.mxu0 0.0
        %750 = vmatpush1.msra.mxu0 0.0
        %751 = vmatprep.subr.mxu0 0.0
        %752 = vmatpush1.msra.mxu0 0.0
        %753 = vmatprep.subr.mxu0 0.0
        %754 = vmatpush1.msra.mxu0 0.0
        %755 = vmatprep.subr.mxu0 0.0
        %756 = vmatpush1.msra.mxu0 0.0
        %757 = vmatprep.subr.mxu0 0.0
        %758 = vmatpush1.msra.mxu0 0.0
        %759 = vmatprep.subr.mxu0 0.0
        %760 = vmatpush1.msra.mxu0 0.0
        %761 = vmatprep.subr.mxu0 0.0
        %762 = vmatpush1.msra.mxu0 0.0
        %763 = vmatprep.subr.mxu0 0.0
        %764 = vmatpush1.msra.mxu0 0.0
        %765 = vmatprep.subr.mxu0 0.0
        %766 = vmatpush1.msra.mxu0 0.0
        %767 = vmatprep.subr.mxu0 0.0
        %768 = vmatpush1.msra.mxu0 0.0
        %769 = vmatprep.mubr.f32.mxu0 0.0
        %770 = vmatmul.mubr.f32.gmra.mrb[0].mxu0 %v477
        %v771 = vpop.f32.mrb[0].mxu0
        %v772 = vadd.f32 %v703, %v771
        %v773 = vpop.f32.mrb[0].mxu0
        %774 = vmatprep.mubr.f32.mxu0 0.0
        %775 = vmatmul.mubr.f32.gmra.mrb[0].mxu0 %v478
        %v776 = vpop.f32.mrb[0].mxu0
        %v777 = vadd.f32 %v703, %v776
        %v778 = vpop.f32.mrb[0].mxu0
        %779 = vdwg.mxu0
        %s780 = scalar_lea.vmem [#allocation2], 16
        %781 = vst.msk [vmem:[%s780] sm:$0xff] %vm577, %v772
        %782 = vst.msk [vmem:[%s780 + $0x8] sm:$0xff] %vm577, %v777
        %s783 = scalar_lea.vmem %s4, 128
        %v784 = vld [vmem:[%s783] sm:$0xff]
        %v785 = vld [vmem:[%s783 + $0x8] sm:$0xff]
        %v786 = vld [vmem:[%s783 + $0x10] sm:$0xff]
        %v787 = vld [vmem:[%s783 + $0x18] sm:$0xff]
        %v788 = vld [vmem:[%s783 + $0x20] sm:$0xff]
        %v789 = vld [vmem:[%s783 + $0x28] sm:$0xff]
        %v790 = vld [vmem:[%s783 + $0x30] sm:$0xff]
        %v791 = vld [vmem:[%s783 + $0x38] sm:$0xff]
        %v792 = vld [vmem:[%s783 + $0x40] sm:$0xff]
        %v793 = vld [vmem:[%s783 + $0x48] sm:$0xff]
        %v794 = vld [vmem:[%s783 + $0x50] sm:$0xff]
        %v795 = vld [vmem:[%s783 + $0x58] sm:$0xff]
        %v796 = vld [vmem:[%s783 + $0x60] sm:$0xff]
        %v797 = vld [vmem:[%s783 + $0x68] sm:$0xff]
        %v798 = vld [vmem:[%s783 + $0x70] sm:$0xff]
        %v799 = vld [vmem:[%s783 + $0x78] sm:$0xff]
        %s800 = scalar_lea.vmem %s7, 1
        %v801 = vld [vmem:[%s800] sm:$0x1]
        %v803 = vlaneseq
        %v804 = vshrl.u32 %v803, 7
        %v805 = vsub.s32 0, %v804
        %v806 = vrot.slane %v801, %v805
        %808 = vmatprep.subr.mxu0 0.0
        %809 = vmatpush1.msra.mxu0 %v784
        %810 = vmatprep.subr.mxu0 0.0
        %811 = vmatpush1.msra.mxu0 %v785
        %812 = vmatprep.subr.mxu0 0.0
        %813 = vmatpush1.msra.mxu0 %v786
        %814 = vmatprep.subr.mxu0 0.0
        %815 = vmatpush1.msra.mxu0 %v787
        %816 = vmatprep.subr.mxu0 0.0
        %817 = vmatpush1.msra.mxu0 %v788
        %818 = vmatprep.subr.mxu0 0.0
        %819 = vmatpush1.msra.mxu0 %v789
        %820 = vmatprep.subr.mxu0 0.0
        %821 = vmatpush1.msra.mxu0 %v790
        %822 = vmatprep.subr.mxu0 0.0
        %823 = vmatpush1.msra.mxu0 %v791
        %824 = vmatprep.subr.mxu0 0.0
        %825 = vmatpush1.msra.mxu0 %v792
        %826 = vmatprep.subr.mxu0 0.0
        %827 = vmatpush1.msra.mxu0 %v793
        %828 = vmatprep.subr.mxu0 0.0
        %829 = vmatpush1.msra.mxu0 %v794
        %830 = vmatprep.subr.mxu0 0.0
        %831 = vmatpush1.msra.mxu0 %v795
        %832 = vmatprep.subr.mxu0 0.0
        %833 = vmatpush1.msra.mxu0 %v796
        %834 = vmatprep.subr.mxu0 0.0
        %835 = vmatpush1.msra.mxu0 %v797
        %836 = vmatprep.subr.mxu0 0.0
        %837 = vmatpush1.msra.mxu0 %v798
        %838 = vmatprep.subr.mxu0 0.0
        %839 = vmatpush1.msra.mxu0 %v799
        %840 = vmatprep.subr.mxu0 0.0
        %841 = vmatpush1.msra.mxu0 0.0
        %842 = vmatprep.subr.mxu0 0.0
        %843 = vmatpush1.msra.mxu0 0.0
        %844 = vmatprep.subr.mxu0 0.0
        %845 = vmatpush1.msra.mxu0 0.0
        %846 = vmatprep.subr.mxu0 0.0
        %847 = vmatpush1.msra.mxu0 0.0
        %848 = vmatprep.subr.mxu0 0.0
        %849 = vmatpush1.msra.mxu0 0.0
        %850 = vmatprep.subr.mxu0 0.0
        %851 = vmatpush1.msra.mxu0 0.0
        %852 = vmatprep.subr.mxu0 0.0
        %853 = vmatpush1.msra.mxu0 0.0
        %854 = vmatprep.subr.mxu0 0.0
        %855 = vmatpush1.msra.mxu0 0.0
        %856 = vmatprep.subr.mxu0 0.0
        %857 = vmatpush1.msra.mxu0 0.0
        %858 = vmatprep.subr.mxu0 0.0
        %859 = vmatpush1.msra.mxu0 0.0
        %860 = vmatprep.subr.mxu0 0.0
        %861 = vmatpush1.msra.mxu0 0.0
        %862 = vmatprep.subr.mxu0 0.0
        %863 = vmatpush1.msra.mxu0 0.0
        %864 = vmatprep.subr.mxu0 0.0
        %865 = vmatpush1.msra.mxu0 0.0
        %866 = vmatprep.subr.mxu0 0.0
        %867 = vmatpush1.msra.mxu0 0.0
        %868 = vmatprep.subr.mxu0 0.0
        %869 = vmatpush1.msra.mxu0 0.0
        %870 = vmatprep.subr.mxu0 0.0
        %871 = vmatpush1.msra.mxu0 0.0
        %872 = vmatprep.mubr.f32.mxu0 0.0
        %873 = vmatmul.mubr.f32.gmra.mrb[0].mxu0 %v477
        %v874 = vpop.f32.mrb[0].mxu0
        %v875 = vadd.f32 %v806, %v874
        %v876 = vpop.f32.mrb[0].mxu0
        %877 = vmatprep.mubr.f32.mxu0 0.0
        %878 = vmatmul.mubr.f32.gmra.mrb[0].mxu0 %v478
        %v879 = vpop.f32.mrb[0].mxu0
        %v880 = vadd.f32 %v806, %v879
        %v881 = vpop.f32.mrb[0].mxu0
        %882 = vdwg.mxu0
        %s883 = scalar_lea.vmem [#allocation3], 16
        %884 = vst.msk [vmem:[%s883] sm:$0xff] %vm577, %v875
        %885 = vst.msk [vmem:[%s883 + $0x8] sm:$0xff] %vm577, %v880
        %s886 = scalar_lea.vmem %s3, 256
        %v887 = vld [vmem:[%s886] sm:$0xff]
        %v888 = vld [vmem:[%s886 + $0x8] sm:$0xff]
        %v889 = vld [vmem:[%s886 + $0x10] sm:$0xff]
        %v890 = vld [vmem:[%s886 + $0x18] sm:$0xff]
        %v891 = vld [vmem:[%s886 + $0x20] sm:$0xff]
        %v892 = vld [vmem:[%s886 + $0x28] sm:$0xff]
        %v893 = vld [vmem:[%s886 + $0x30] sm:$0xff]
        %v894 = vld [vmem:[%s886 + $0x38] sm:$0xff]
        %v895 = vld [vmem:[%s886 + $0x40] sm:$0xff]
        %v896 = vld [vmem:[%s886 + $0x48] sm:$0xff]
        %v897 = vld [vmem:[%s886 + $0x50] sm:$0xff]
        %v898 = vld [vmem:[%s886 + $0x58] sm:$0xff]
        %v899 = vld [vmem:[%s886 + $0x60] sm:$0xff]
        %v900 = vld [vmem:[%s886 + $0x68] sm:$0xff]
        %v901 = vld [vmem:[%s886 + $0x70] sm:$0xff]
        %v902 = vld [vmem:[%s886 + $0x78] sm:$0xff]
        %s903 = scalar_lea.vmem %s6, 2
        %v904 = vld [vmem:[%s903] sm:$0x1]
        %v906 = vlaneseq
        %v907 = vshrl.u32 %v906, 7
        %v908 = vsub.s32 0, %v907
        %v909 = vrot.slane %v904, %v908
        %911 = vmatprep.subr.mxu0 0.0
        %912 = vmatpush1.msra.mxu0 %v887
        %913 = vmatprep.subr.mxu0 0.0
        %914 = vmatpush1.msra.mxu0 %v888
        %915 = vmatprep.subr.mxu0 0.0
        %916 = vmatpush1.msra.mxu0 %v889
        %917 = vmatprep.subr.mxu0 0.0
        %918 = vmatpush1.msra.mxu0 %v890
        %919 = vmatprep.subr.mxu0 0.0
        %920 = vmatpush1.msra.mxu0 %v891
        %921 = vmatprep.subr.mxu0 0.0
        %922 = vmatpush1.msra.mxu0 %v892
        %923 = vmatprep.subr.mxu0 0.0
        %924 = vmatpush1.msra.mxu0 %v893
        %925 = vmatprep.subr.mxu0 0.0
        %926 = vmatpush1.msra.mxu0 %v894
        %927 = vmatprep.subr.mxu0 0.0
        %928 = vmatpush1.msra.mxu0 %v895
        %929 = vmatprep.subr.mxu0 0.0
        %930 = vmatpush1.msra.mxu0 %v896
        %931 = vmatprep.subr.mxu0 0.0
        %932 = vmatpush1.msra.mxu0 %v897
        %933 = vmatprep.subr.mxu0 0.0
        %934 = vmatpush1.msra.mxu0 %v898
        %935 = vmatprep.subr.mxu0 0.0
        %936 = vmatpush1.msra.mxu0 %v899
        %937 = vmatprep.subr.mxu0 0.0
        %938 = vmatpush1.msra.mxu0 %v900
        %939 = vmatprep.subr.mxu0 0.0
        %940 = vmatpush1.msra.mxu0 %v901
        %941 = vmatprep.subr.mxu0 0.0
        %942 = vmatpush1.msra.mxu0 %v902
        %943 = vmatprep.subr.mxu0 0.0
        %944 = vmatpush1.msra.mxu0 0.0
        %945 = vmatprep.subr.mxu0 0.0
        %946 = vmatpush1.msra.mxu0 0.0
        %947 = vmatprep.subr.mxu0 0.0
        %948 = vmatpush1.msra.mxu0 0.0
        %949 = vmatprep.subr.mxu0 0.0
        %950 = vmatpush1.msra.mxu0 0.0
        %951 = vmatprep.subr.mxu0 0.0
        %952 = vmatpush1.msra.mxu0 0.0
        %953 = vmatprep.subr.mxu0 0.0
        %954 = vmatpush1.msra.mxu0 0.0
        %955 = vmatprep.subr.mxu0 0.0
        %956 = vmatpush1.msra.mxu0 0.0
        %957 = vmatprep.subr.mxu0 0.0
        %958 = vmatpush1.msra.mxu0 0.0
        %959 = vmatprep.subr.mxu0 0.0
        %960 = vmatpush1.msra.mxu0 0.0
        %961 = vmatprep.subr.mxu0 0.0
        %962 = vmatpush1.msra.mxu0 0.0
        %963 = vmatprep.subr.mxu0 0.0
        %964 = vmatpush1.msra.mxu0 0.0
        %965 = vmatprep.subr.mxu0 0.0
        %966 = vmatpush1.msra.mxu0 0.0
        %967 = vmatprep.subr.mxu0 0.0
        %968 = vmatpush1.msra.mxu0 0.0
        %969 = vmatprep.subr.mxu0 0.0
        %970 = vmatpush1.msra.mxu0 0.0
        %971 = vmatprep.subr.mxu0 0.0
        %972 = vmatpush1.msra.mxu0 0.0
        %973 = vmatprep.subr.mxu0 0.0
        %974 = vmatpush1.msra.mxu0 0.0
        %975 = vmatprep.mubr.f32.mxu0 0.0
        %976 = vmatmul.mubr.f32.gmra.mrb[0].mxu0 %v477
        %v977 = vpop.f32.mrb[0].mxu0
        %v978 = vadd.f32 %v909, %v977
        %v979 = vpop.f32.mrb[0].mxu0
        %980 = vmatprep.mubr.f32.mxu0 0.0
        %981 = vmatmul.mubr.f32.gmra.mrb[0].mxu0 %v478
        %v982 = vpop.f32.mrb[0].mxu0
        %v983 = vadd.f32 %v909, %v982
        %v984 = vpop.f32.mrb[0].mxu0
        %985 = vdwg.mxu0
        %s986 = scalar_lea.vmem [#allocation2], 32
        %987 = vst.msk [vmem:[%s986] sm:$0xff] %vm577, %v978
        %988 = vst.msk [vmem:[%s986 + $0x8] sm:$0xff] %vm577, %v983
        %s989 = scalar_lea.vmem %s4, 256
        %v990 = vld [vmem:[%s989] sm:$0xff]
        %v991 = vld [vmem:[%s989 + $0x8] sm:$0xff]
        %v992 = vld [vmem:[%s989 + $0x10] sm:$0xff]
        %v993 = vld [vmem:[%s989 + $0x18] sm:$0xff]
        %v994 = vld [vmem:[%s989 + $0x20] sm:$0xff]
        %v995 = vld [vmem:[%s989 + $0x28] sm:$0xff]
        %v996 = vld [vmem:[%s989 + $0x30] sm:$0xff]
        %v997 = vld [vmem:[%s989 + $0x38] sm:$0xff]
        %v998 = vld [vmem:[%s989 + $0x40] sm:$0xff]
        %v999 = vld [vmem:[%s989 + $0x48] sm:$0xff]
        %v1000 = vld [vmem:[%s989 + $0x50] sm:$0xff]
        %v1001 = vld [vmem:[%s989 + $0x58] sm:$0xff]
        %v1002 = vld [vmem:[%s989 + $0x60] sm:$0xff]
        %v1003 = vld [vmem:[%s989 + $0x68] sm:$0xff]
        %v1004 = vld [vmem:[%s989 + $0x70] sm:$0xff]
        %v1005 = vld [vmem:[%s989 + $0x78] sm:$0xff]
        %s1006 = scalar_lea.vmem %s7, 2
        %v1007 = vld [vmem:[%s1006] sm:$0x1]
        %v1009 = vlaneseq
        %v1010 = vshrl.u32 %v1009, 7
        %v1011 = vsub.s32 0, %v1010
        %v1012 = vrot.slane %v1007, %v1011
        %1014 = vmatprep.subr.mxu0 0.0
        %1015 = vmatpush1.msra.mxu0 %v990
        %1016 = vmatprep.subr.mxu0 0.0
        %1017 = vmatpush1.msra.mxu0 %v991
        %1018 = vmatprep.subr.mxu0 0.0
        %1019 = vmatpush1.msra.mxu0 %v992
        %1020 = vmatprep.subr.mxu0 0.0
        %1021 = vmatpush1.msra.mxu0 %v993
        %1022 = vmatprep.subr.mxu0 0.0
        %1023 = vmatpush1.msra.mxu0 %v994
        %1024 = vmatprep.subr.mxu0 0.0
        %1025 = vmatpush1.msra.mxu0 %v995
        %1026 = vmatprep.subr.mxu0 0.0
        %1027 = vmatpush1.msra.mxu0 %v996
        %1028 = vmatprep.subr.mxu0 0.0
        %1029 = vmatpush1.msra.mxu0 %v997
        %1030 = vmatprep.subr.mxu0 0.0
        %1031 = vmatpush1.msra.mxu0 %v998
        %1032 = vmatprep.subr.mxu0 0.0
        %1033 = vmatpush1.msra.mxu0 %v999
        %1034 = vmatprep.subr.mxu0 0.0
        %1035 = vmatpush1.msra.mxu0 %v1000
        %1036 = vmatprep.subr.mxu0 0.0
        %1037 = vmatpush1.msra.mxu0 %v1001
        %1038 = vmatprep.subr.mxu0 0.0
        %1039 = vmatpush1.msra.mxu0 %v1002
        %1040 = vmatprep.subr.mxu0 0.0
        %1041 = vmatpush1.msra.mxu0 %v1003
        %1042 = vmatprep.subr.mxu0 0.0
        %1043 = vmatpush1.msra.mxu0 %v1004
        %1044 = vmatprep.subr.mxu0 0.0
        %1045 = vmatpush1.msra.mxu0 %v1005
        %1046 = vmatprep.subr.mxu0 0.0
        %1047 = vmatpush1.msra.mxu0 0.0
        %1048 = vmatprep.subr.mxu0 0.0
        %1049 = vmatpush1.msra.mxu0 0.0
        %1050 = vmatprep.subr.mxu0 0.0
        %1051 = vmatpush1.msra.mxu0 0.0
        %1052 = vmatprep.subr.mxu0 0.0
        %1053 = vmatpush1.msra.mxu0 0.0
        %1054 = vmatprep.subr.mxu0 0.0
        %1055 = vmatpush1.msra.mxu0 0.0
        %1056 = vmatprep.subr.mxu0 0.0
        %1057 = vmatpush1.msra.mxu0 0.0
        %1058 = vmatprep.subr.mxu0 0.0
        %1059 = vmatpush1.msra.mxu0 0.0
        %1060 = vmatprep.subr.mxu0 0.0
        %1061 = vmatpush1.msra.mxu0 0.0
        %1062 = vmatprep.subr.mxu0 0.0
        %1063 = vmatpush1.msra.mxu0 0.0
        %1064 = vmatprep.subr.mxu0 0.0
        %1065 = vmatpush1.msra.mxu0 0.0
        %1066 = vmatprep.subr.mxu0 0.0
        %1067 = vmatpush1.msra.mxu0 0.0
        %1068 = vmatprep.subr.mxu0 0.0
        %1069 = vmatpush1.msra.mxu0 0.0
        %1070 = vmatprep.subr.mxu0 0.0
        %1071 = vmatpush1.msra.mxu0 0.0
        %1072 = vmatprep.subr.mxu0 0.0
        %1073 = vmatpush1.msra.mxu0 0.0
        %1074 = vmatprep.subr.mxu0 0.0
        %1075 = vmatpush1.msra.mxu0 0.0
        %1076 = vmatprep.subr.mxu0 0.0
        %1077 = vmatpush1.msra.mxu0 0.0
        %1078 = vmatprep.mubr.f32.mxu0 0.0
        %1079 = vmatmul.mubr.f32.gmra.mrb[0].mxu0 %v477
        %v1080 = vpop.f32.mrb[0].mxu0
        %v1081 = vadd.f32 %v1012, %v1080
        %v1082 = vpop.f32.mrb[0].mxu0
        %1083 = vmatprep.mubr.f32.mxu0 0.0
        %1084 = vmatmul.mubr.f32.gmra.mrb[0].mxu0 %v478
        %v1085 = vpop.f32.mrb[0].mxu0
        %v1086 = vadd.f32 %v1012, %v1085
        %v1087 = vpop.f32.mrb[0].mxu0
        %1088 = vdwg.mxu0
        %s1089 = scalar_lea.vmem [#allocation3], 32
        %1090 = vst.msk [vmem:[%s1089] sm:$0xff] %vm577, %v1081
        %1091 = vst.msk [vmem:[%s1089 + $0x8] sm:$0xff] %vm577, %v1086
        %s1092 = scalar_lea.vmem %s3, 384
        %v1093 = vld [vmem:[%s1092] sm:$0xff]
        %v1094 = vld [vmem:[%s1092 + $0x8] sm:$0xff]
        %v1095 = vld [vmem:[%s1092 + $0x10] sm:$0xff]
        %v1096 = vld [vmem:[%s1092 + $0x18] sm:$0xff]
        %v1097 = vld [vmem:[%s1092 + $0x20] sm:$0xff]
        %v1098 = vld [vmem:[%s1092 + $0x28] sm:$0xff]
        %v1099 = vld [vmem:[%s1092 + $0x30] sm:$0xff]
        %v1100 = vld [vmem:[%s1092 + $0x38] sm:$0xff]
        %v1101 = vld [vmem:[%s1092 + $0x40] sm:$0xff]
        %v1102 = vld [vmem:[%s1092 + $0x48] sm:$0xff]
        %v1103 = vld [vmem:[%s1092 + $0x50] sm:$0xff]
        %v1104 = vld [vmem:[%s1092 + $0x58] sm:$0xff]
        %v1105 = vld [vmem:[%s1092 + $0x60] sm:$0xff]
        %v1106 = vld [vmem:[%s1092 + $0x68] sm:$0xff]
        %v1107 = vld [vmem:[%s1092 + $0x70] sm:$0xff]
        %v1108 = vld [vmem:[%s1092 + $0x78] sm:$0xff]
        %s1109 = scalar_lea.vmem %s6, 3
        %v1110 = vld [vmem:[%s1109] sm:$0x1]
        %v1112 = vlaneseq
        %v1113 = vshrl.u32 %v1112, 7
        %v1114 = vsub.s32 0, %v1113
        %v1115 = vrot.slane %v1110, %v1114
        %1117 = vmatprep.subr.mxu0 0.0
        %1118 = vmatpush1.msra.mxu0 %v1093
        %1119 = vmatprep.subr.mxu0 0.0
        %1120 = vmatpush1.msra.mxu0 %v1094
        %1121 = vmatprep.subr.mxu0 0.0
        %1122 = vmatpush1.msra.mxu0 %v1095
        %1123 = vmatprep.subr.mxu0 0.0
        %1124 = vmatpush1.msra.mxu0 %v1096
        %1125 = vmatprep.subr.mxu0 0.0
        %1126 = vmatpush1.msra.mxu0 %v1097
        %1127 = vmatprep.subr.mxu0 0.0
        %1128 = vmatpush1.msra.mxu0 %v1098
        %1129 = vmatprep.subr.mxu0 0.0
        %1130 = vmatpush1.msra.mxu0 %v1099
        %1131 = vmatprep.subr.mxu0 0.0
        %1132 = vmatpush1.msra.mxu0 %v1100
        %1133 = vmatprep.subr.mxu0 0.0
        %1134 = vmatpush1.msra.mxu0 %v1101
        %1135 = vmatprep.subr.mxu0 0.0
        %1136 = vmatpush1.msra.mxu0 %v1102
        %1137 = vmatprep.subr.mxu0 0.0
        %1138 = vmatpush1.msra.mxu0 %v1103
        %1139 = vmatprep.subr.mxu0 0.0
        %1140 = vmatpush1.msra.mxu0 %v1104
        %1141 = vmatprep.subr.mxu0 0.0
        %1142 = vmatpush1.msra.mxu0 %v1105
        %1143 = vmatprep.subr.mxu0 0.0
        %1144 = vmatpush1.msra.mxu0 %v1106
        %1145 = vmatprep.subr.mxu0 0.0
        %1146 = vmatpush1.msra.mxu0 %v1107
        %1147 = vmatprep.subr.mxu0 0.0
        %1148 = vmatpush1.msra.mxu0 %v1108
        %1149 = vmatprep.subr.mxu0 0.0
        %1150 = vmatpush1.msra.mxu0 0.0
        %1151 = vmatprep.subr.mxu0 0.0
        %1152 = vmatpush1.msra.mxu0 0.0
        %1153 = vmatprep.subr.mxu0 0.0
        %1154 = vmatpush1.msra.mxu0 0.0
        %1155 = vmatprep.subr.mxu0 0.0
        %1156 = vmatpush1.msra.mxu0 0.0
        %1157 = vmatprep.subr.mxu0 0.0
        %1158 = vmatpush1.msra.mxu0 0.0
        %1159 = vmatprep.subr.mxu0 0.0
        %1160 = vmatpush1.msra.mxu0 0.0
        %1161 = vmatprep.subr.mxu0 0.0
        %1162 = vmatpush1.msra.mxu0 0.0
        %1163 = vmatprep.subr.mxu0 0.0
        %1164 = vmatpush1.msra.mxu0 0.0
        %1165 = vmatprep.subr.mxu0 0.0
        %1166 = vmatpush1.msra.mxu0 0.0
        %1167 = vmatprep.subr.mxu0 0.0
        %1168 = vmatpush1.msra.mxu0 0.0
        %1169 = vmatprep.subr.mxu0 0.0
        %1170 = vmatpush1.msra.mxu0 0.0
        %1171 = vmatprep.subr.mxu0 0.0
        %1172 = vmatpush1.msra.mxu0 0.0
        %1173 = vmatprep.subr.mxu0 0.0
        %1174 = vmatpush1.msra.mxu0 0.0
        %1175 = vmatprep.subr.mxu0 0.0
        %1176 = vmatpush1.msra.mxu0 0.0
        %1177 = vmatprep.subr.mxu0 0.0
        %1178 = vmatpush1.msra.mxu0 0.0
        %1179 = vmatprep.subr.mxu0 0.0
        %1180 = vmatpush1.msra.mxu0 0.0
        %1181 = vmatprep.mubr.f32.mxu0 0.0
        %1182 = vmatmul.mubr.f32.gmra.mrb[0].mxu0 %v477
        %v1183 = vpop.f32.mrb[0].mxu0
        %v1184 = vadd.f32 %v1115, %v1183
        %v1185 = vpop.f32.mrb[0].mxu0
        %1186 = vmatprep.mubr.f32.mxu0 0.0
        %1187 = vmatmul.mubr.f32.gmra.mrb[0].mxu0 %v478
        %v1188 = vpop.f32.mrb[0].mxu0
        %v1189 = vadd.f32 %v1115, %v1188
        %v1190 = vpop.f32.mrb[0].mxu0
        %1191 = vdwg.mxu0
        %s1192 = scalar_lea.vmem [#allocation2], 48
        %1193 = vst.msk [vmem:[%s1192] sm:$0xff] %vm577, %v1184
        %1194 = vst.msk [vmem:[%s1192 + $0x8] sm:$0xff] %vm577, %v1189
        %s1195 = scalar_lea.vmem %s4, 384
        %v1196 = vld [vmem:[%s1195] sm:$0xff]
        %v1197 = vld [vmem:[%s1195 + $0x8] sm:$0xff]
        %v1198 = vld [vmem:[%s1195 + $0x10] sm:$0xff]
        %v1199 = vld [vmem:[%s1195 + $0x18] sm:$0xff]
        %v1200 = vld [vmem:[%s1195 + $0x20] sm:$0xff]
        %v1201 = vld [vmem:[%s1195 + $0x28] sm:$0xff]
        %v1202 = vld [vmem:[%s1195 + $0x30] sm:$0xff]
        %v1203 = vld [vmem:[%s1195 + $0x38] sm:$0xff]
        %v1204 = vld [vmem:[%s1195 + $0x40] sm:$0xff]
        %v1205 = vld [vmem:[%s1195 + $0x48] sm:$0xff]
        %v1206 = vld [vmem:[%s1195 + $0x50] sm:$0xff]
        %v1207 = vld [vmem:[%s1195 + $0x58] sm:$0xff]
        %v1208 = vld [vmem:[%s1195 + $0x60] sm:$0xff]
        %v1209 = vld [vmem:[%s1195 + $0x68] sm:$0xff]
        %v1210 = vld [vmem:[%s1195 + $0x70] sm:$0xff]
        %v1211 = vld [vmem:[%s1195 + $0x78] sm:$0xff]
        %s1212 = scalar_lea.vmem %s7, 3
        %v1213 = vld [vmem:[%s1212] sm:$0x1]
        %v1215 = vlaneseq
        %v1216 = vshrl.u32 %v1215, 7
        %v1217 = vsub.s32 0, %v1216
        %v1218 = vrot.slane %v1213, %v1217
        %1220 = vmatprep.subr.mxu0 0.0
        %1221 = vmatpush1.msra.mxu0 %v1196
        %1222 = vmatprep.subr.mxu0 0.0
        %1223 = vmatpush1.msra.mxu0 %v1197
        %1224 = vmatprep.subr.mxu0 0.0
        %1225 = vmatpush1.msra.mxu0 %v1198
        %1226 = vmatprep.subr.mxu0 0.0
        %1227 = vmatpush1.msra.mxu0 %v1199
        %1228 = vmatprep.subr.mxu0 0.0
        %1229 = vmatpush1.msra.mxu0 %v1200
        %1230 = vmatprep.subr.mxu0 0.0
        %1231 = vmatpush1.msra.mxu0 %v1201
        %1232 = vmatprep.subr.mxu0 0.0
        %1233 = vmatpush1.msra.mxu0 %v1202
        %1234 = vmatprep.subr.mxu0 0.0
        %1235 = vmatpush1.msra.mxu0 %v1203
        %1236 = vmatprep.subr.mxu0 0.0
        %1237 = vmatpush1.msra.mxu0 %v1204
        %1238 = vmatprep.subr.mxu0 0.0
        %1239 = vmatpush1.msra.mxu0 %v1205
        %1240 = vmatprep.subr.mxu0 0.0
        %1241 = vmatpush1.msra.mxu0 %v1206
        %1242 = vmatprep.subr.mxu0 0.0
        %1243 = vmatpush1.msra.mxu0 %v1207
        %1244 = vmatprep.subr.mxu0 0.0
        %1245 = vmatpush1.msra.mxu0 %v1208
        %1246 = vmatprep.subr.mxu0 0.0
        %1247 = vmatpush1.msra.mxu0 %v1209
        %1248 = vmatprep.subr.mxu0 0.0
        %1249 = vmatpush1.msra.mxu0 %v1210
        %1250 = vmatprep.subr.mxu0 0.0
        %1251 = vmatpush1.msra.mxu0 %v1211
        %1252 = vmatprep.subr.mxu0 0.0
        %1253 = vmatpush1.msra.mxu0 0.0
        %1254 = vmatprep.subr.mxu0 0.0
        %1255 = vmatpush1.msra.mxu0 0.0
        %1256 = vmatprep.subr.mxu0 0.0
        %1257 = vmatpush1.msra.mxu0 0.0
        %1258 = vmatprep.subr.mxu0 0.0
        %1259 = vmatpush1.msra.mxu0 0.0
        %1260 = vmatprep.subr.mxu0 0.0
        %1261 = vmatpush1.msra.mxu0 0.0
        %1262 = vmatprep.subr.mxu0 0.0
        %1263 = vmatpush1.msra.mxu0 0.0
        %1264 = vmatprep.subr.mxu0 0.0
        %1265 = vmatpush1.msra.mxu0 0.0
        %1266 = vmatprep.subr.mxu0 0.0
        %1267 = vmatpush1.msra.mxu0 0.0
        %1268 = vmatprep.subr.mxu0 0.0
        %1269 = vmatpush1.msra.mxu0 0.0
        %1270 = vmatprep.subr.mxu0 0.0
        %1271 = vmatpush1.msra.mxu0 0.0
        %1272 = vmatprep.subr.mxu0 0.0
        %1273 = vmatpush1.msra.mxu0 0.0
        %1274 = vmatprep.subr.mxu0 0.0
        %1275 = vmatpush1.msra.mxu0 0.0
        %1276 = vmatprep.subr.mxu0 0.0
        %1277 = vmatpush1.msra.mxu0 0.0
        %1278 = vmatprep.subr.mxu0 0.0
        %1279 = vmatpush1.msra.mxu0 0.0
        %1280 = vmatprep.subr.mxu0 0.0
        %1281 = vmatpush1.msra.mxu0 0.0
        %1282 = vmatprep.subr.mxu0 0.0
        %1283 = vmatpush1.msra.mxu0 0.0
        %1284 = vmatprep.mubr.f32.mxu0 0.0
        %1285 = vmatmul.mubr.f32.gmra.mrb[0].mxu0 %v477
        %v1286 = vpop.f32.mrb[0].mxu0
        %v1287 = vadd.f32 %v1218, %v1286
        %v1288 = vpop.f32.mrb[0].mxu0
        %1289 = vmatprep.mubr.f32.mxu0 0.0
        %1290 = vmatmul.mubr.f32.gmra.mrb[0].mxu0 %v478
        %v1291 = vpop.f32.mrb[0].mxu0
        %v1292 = vadd.f32 %v1218, %v1291
        %v1293 = vpop.f32.mrb[0].mxu0
        %1294 = vdwg.mxu0
        %s1295 = scalar_lea.vmem [#allocation3], 48
        %1296 = vst.msk [vmem:[%s1295] sm:$0xff] %vm577, %v1287
        %1297 = vst.msk [vmem:[%s1295 + $0x8] sm:$0xff] %vm577, %v1292
      $region72: #{audio_transformer_forward.9} parent=67 // pred_fallthru
        _
      %v1298 = vld [vmem:[%s456] sm:$0xff]
      %v1299 = vld [vmem:[%s456 + $0x8] sm:$0xff]
      %v1300 = vld [vmem:[%s2] sm:$0xff]
      %v1301 = vld [vmem:[%s2 + $0x8] sm:$0xff]
      %v1302 = vld [vmem:[%s2 + $0x10] sm:$0xff]
      %v1303 = vld [vmem:[%s2 + $0x18] sm:$0xff]
      %v1304 = vld [vmem:[%s2 + $0x20] sm:$0xff]
      %v1305 = vld [vmem:[%s2 + $0x28] sm:$0xff]
      %v1306 = vld [vmem:[%s2 + $0x30] sm:$0xff]
      %v1307 = vld [vmem:[%s2 + $0x38] sm:$0xff]
      %v1308 = vld [vmem:[%s2 + $0x40] sm:$0xff]
      %v1309 = vld [vmem:[%s2 + $0x48] sm:$0xff]
      %v1310 = vld [vmem:[%s2 + $0x50] sm:$0xff]
      %v1311 = vld [vmem:[%s2 + $0x58] sm:$0xff]
      %v1312 = vld [vmem:[%s2 + $0x60] sm:$0xff]
      %v1313 = vld [vmem:[%s2 + $0x68] sm:$0xff]
      %v1314 = vld [vmem:[%s2 + $0x70] sm:$0xff]
      %v1315 = vld [vmem:[%s2 + $0x78] sm:$0xff]
      %v1316 = vld [vmem:[%s5] sm:$0x1]
      %v1318 = vlaneseq
      %v1319 = vshrl.u32 %v1318, 7
      %v1320 = vsub.s32 0, %v1319
      %v1321 = vrot.slane %v1316, %v1320
      %1323 = vmatprep.subr.mxu0 0.0
      %1324 = vmatpush1.msra.mxu0 %v1300
      %1325 = vmatprep.subr.mxu0 0.0
      %1326 = vmatpush1.msra.mxu0 %v1301
      %1327 = vmatprep.subr.mxu0 0.0
      %1328 = vmatpush1.msra.mxu0 %v1302
      %1329 = vmatprep.subr.mxu0 0.0
      %1330 = vmatpush1.msra.mxu0 %v1303
      %1331 = vmatprep.subr.mxu0 0.0
      %1332 = vmatpush1.msra.mxu0 %v1304
      %1333 = vmatprep.subr.mxu0 0.0
      %1334 = vmatpush1.msra.mxu0 %v1305
      %1335 = vmatprep.subr.mxu0 0.0
      %1336 = vmatpush1.msra.mxu0 %v1306
      %1337 = vmatprep.subr.mxu0 0.0
      %1338 = vmatpush1.msra.mxu0 %v1307
      %1339 = vmatprep.subr.mxu0 0.0
      %1340 = vmatpush1.msra.mxu0 %v1308
      %1341 = vmatprep.subr.mxu0 0.0
      %1342 = vmatpush1.msra.mxu0 %v1309
      %1343 = vmatprep.subr.mxu0 0.0
      %1344 = vmatpush1.msra.mxu0 %v1310
      %1345 = vmatprep.subr.mxu0 0.0
      %1346 = vmatpush1.msra.mxu0 %v1311
      %1347 = vmatprep.subr.mxu0 0.0
      %1348 = vmatpush1.msra.mxu0 %v1312
      %1349 = vmatprep.subr.mxu0 0.0
      %1350 = vmatpush1.msra.mxu0 %v1313
      %1351 = vmatprep.subr.mxu0 0.0
      %1352 = vmatpush1.msra.mxu0 %v1314
      %1353 = vmatprep.subr.mxu0 0.0
      %1354 = vmatpush1.msra.mxu0 %v1315
      %1355 = vmatprep.subr.mxu0 0.0
      %1356 = vmatpush1.msra.mxu0 0.0
      %1357 = vmatprep.subr.mxu0 0.0
      %1358 = vmatpush1.msra.mxu0 0.0
      %1359 = vmatprep.subr.mxu0 0.0
      %1360 = vmatpush1.msra.mxu0 0.0
      %1361 = vmatprep.subr.mxu0 0.0
      %1362 = vmatpush1.msra.mxu0 0.0
      %1363 = vmatprep.subr.mxu0 0.0
      %1364 = vmatpush1.msra.mxu0 0.0
      %1365 = vmatprep.subr.mxu0 0.0
      %1366 = vmatpush1.msra.mxu0 0.0
      %1367 = vmatprep.subr.mxu0 0.0
      %1368 = vmatpush1.msra.mxu0 0.0
      %1369 = vmatprep.subr.mxu0 0.0
      %1370 = vmatpush1.msra.mxu0 0.0
      %1371 = vmatprep.subr.mxu0 0.0
      %1372 = vmatpush1.msra.mxu0 0.0
      %1373 = vmatprep.subr.mxu0 0.0
      %1374 = vmatpush1.msra.mxu0 0.0
      %1375 = vmatprep.subr.mxu0 0.0
      %1376 = vmatpush1.msra.mxu0 0.0
      %1377 = vmatprep.subr.mxu0 0.0
      %1378 = vmatpush1.msra.mxu0 0.0
      %1379 = vmatprep.subr.mxu0 0.0
      %1380 = vmatpush1.msra.mxu0 0.0
      %1381 = vmatprep.subr.mxu0 0.0
      %1382 = vmatpush1.msra.mxu0 0.0
      %1383 = vmatprep.subr.mxu0 0.0
      %1384 = vmatpush1.msra.mxu0 0.0
      %1385 = vmatprep.subr.mxu0 0.0
      %1386 = vmatpush1.msra.mxu0 0.0
      %1387 = vmatprep.mubr.f32.mxu0 0.0
      %1388 = vmatmul.mubr.f32.gmra.mrb[0].mxu0 %v1298
      %v1389 = vpop.f32.mrb[0].mxu0
      %v1390 = vadd.f32 %v1321, %v1389
      %v1391 = vpop.f32.mrb[0].mxu0
      %1392 = vmatprep.mubr.f32.mxu0 0.0
      %1393 = vmatmul.mubr.f32.gmra.mrb[0].mxu0 %v1299
      %v1394 = vpop.f32.mrb[0].mxu0
      %v1395 = vadd.f32 %v1321, %v1394
      %v1396 = vpop.f32.mrb[0].mxu0
      %1397 = vdwg.mxu0
      %v1398 = vld [vmem:[#allocation2] sm:$0xff]
      %v1399 = vld [vmem:[#allocation2 + $0x8] sm:$0xff]
      %v1400 = vld [vmem:[#allocation3] sm:$0xff]
      %v1401 = vld [vmem:[#allocation3 + $0x8] sm:$0xff]
      %vm1402 = vcmask 261120
      %v1404 = vsel %vm1402, %v1390, 0
      %v1407 = vsel %vm1402, %v1395, 0
      %v1410 = vsel %vm1402, %v1398, 0
      %v1413 = vsel %vm1402, %v1399, 0
      %1415 = vmatprep.subr.mxu0 0.0
      %1416 = vmatpush1.xpose.msra.mxu0 %v1410
      %1417 = vmatprep.subr.mxu0 0.0
      %1418 = vmatpush1.xpose.msra.mxu0 %v1413
      %1419 = vmatprep.subr.mxu0 0.0
      %1420 = vmatpush1.xpose.msra.mxu0 0.0
      %1421 = vmatprep.subr.mxu0 0.0
      %1422 = vmatpush1.xpose.msra.mxu0 0.0
      %1423 = vmatprep.subr.mxu0 0.0
      %1424 = vmatpush1.xpose.msra.mxu0 0.0
      %1425 = vmatprep.subr.mxu0 0.0
      %1426 = vmatpush1.xpose.msra.mxu0 0.0
      %1427 = vmatprep.subr.mxu0 0.0
      %1428 = vmatpush1.xpose.msra.mxu0 0.0
      %1429 = vmatprep.subr.mxu0 0.0
      %1430 = vmatpush1.xpose.msra.mxu0 0.0
      %1431 = vmatprep.subr.mxu0 0.0
      %1432 = vmatpush1.xpose.msra.mxu0 0.0
      %1433 = vmatprep.subr.mxu0 0.0
      %1434 = vmatpush1.xpose.msra.mxu0 0.0
      %1435 = vmatprep.subr.mxu0 0.0
      %1436 = vmatpush1.xpose.msra.mxu0 0.0
      %1437 = vmatprep.subr.mxu0 0.0
      %1438 = vmatpush1.xpose.msra.mxu0 0.0
      %1439 = vmatprep.subr.mxu0 0.0
      %1440 = vmatpush1.xpose.msra.mxu0 0.0
      %1441 = vmatprep.subr.mxu0 0.0
      %1442 = vmatpush1.xpose.msra.mxu0 0.0
      %1443 = vmatprep.subr.mxu0 0.0
      %1444 = vmatpush1.xpose.msra.mxu0 0.0
      %1445 = vmatprep.subr.mxu0 0.0
      %1446 = vmatpush1.xpose.msra.mxu0 0.0
      %1447 = vmatprep.subr.mxu0 0.0
      %1448 = vmatpush1.xpose.msra.mxu0 0.0
      %1449 = vmatprep.subr.mxu0 0.0
      %1450 = vmatpush1.xpose.msra.mxu0 0.0
      %1451 = vmatprep.subr.mxu0 0.0
      %1452 = vmatpush1.xpose.msra.mxu0 0.0
      %1453 = vmatprep.subr.mxu0 0.0
      %1454 = vmatpush1.xpose.msra.mxu0 0.0
      %1455 = vmatprep.subr.mxu0 0.0
      %1456 = vmatpush1.xpose.msra.mxu0 0.0
      %1457 = vmatprep.subr.mxu0 0.0
      %1458 = vmatpush1.xpose.msra.mxu0 0.0
      %1459 = vmatprep.subr.mxu0 0.0
      %1460 = vmatpush1.xpose.msra.mxu0 0.0
      %1461 = vmatprep.subr.mxu0 0.0
      %1462 = vmatpush1.xpose.msra.mxu0 0.0
      %1463 = vmatprep.subr.mxu0 0.0
      %1464 = vmatpush1.xpose.msra.mxu0 0.0
      %1465 = vmatprep.subr.mxu0 0.0
      %1466 = vmatpush1.xpose.msra.mxu0 0.0
      %1467 = vmatprep.subr.mxu0 0.0
      %1468 = vmatpush1.xpose.msra.mxu0 0.0
      %1469 = vmatprep.subr.mxu0 0.0
      %1470 = vmatpush1.xpose.msra.mxu0 0.0
      %1471 = vmatprep.subr.mxu0 0.0
      %1472 = vmatpush1.xpose.msra.mxu0 0.0
      %1473 = vmatprep.subr.mxu0 0.0
      %1474 = vmatpush1.xpose.msra.mxu0 0.0
      %1475 = vmatprep.subr.mxu0 0.0
      %1476 = vmatpush1.xpose.msra.mxu0 0.0
      %1477 = vmatprep.subr.mxu0 0.0
      %1478 = vmatpush1.xpose.msra.mxu0 0.0
      %1479 = vmatprep.mubr.f32.mxu0 0.0
      %1480 = vmatmul.mubr.f32.gmra.mrb[0].mxu0 %v1404
      %v1481 = vpop.f32.mrb[0].mxu0
      %v1482 = vadd.f32 0.0, %v1481
      %v1483 = vpop.f32.mrb[0].mxu0
      %1484 = vmatprep.mubr.f32.mxu0 0.0
      %1485 = vmatmul.mubr.f32.gmra.mrb[0].mxu0 %v1407
      %v1486 = vpop.f32.mrb[0].mxu0
      %v1487 = vadd.f32 0.0, %v1486
      %v1488 = vpop.f32.mrb[0].mxu0
      %1489 = vdwg.mxu0
      %vm1490 = vcmask 130048
      %v1491 = vsel %vm1490, %v1482, -inf
      %1492 = vmax.xlane.f32.xlu0 %v1491
      %v1493 = vpop.xlane.xlu0 %1492
      %v1494 = vsel %vm1490, %v1487, -inf
      %1495 = vmax.xlane.f32.xlu0 %v1494
      %v1496 = vpop.xlane.xlu0 %1495
      %v1497 = vsub.f32 %v1482, %v1493
      %v1498 = vsub.f32 %v1487, %v1496
      %v1499 = vmul.f32 %v1497, 1.442695
      %v1500 = vpow.pop %v1499
      %v1501 = vmul.f32 %v1498, 1.442695
      %v1502 = vpow.pop %v1501
      %v1503 = vsel %vm1490, %v1500, 0.0
      %1504 = vadd.xlane.f32.xlu0 %v1503
      %v1505 = vpop.xlane.xlu0 %1504
      %v1506 = vsel %vm1490, %v1502, 0.0
      %1507 = vadd.xlane.f32.xlu0 %v1506
      %v1508 = vpop.xlane.xlu0 %1507
      %v1509 = vrcp.pop %v1505
      %v1510 = vmul.f32 %v1500, %v1509
      %v1511 = vrcp.pop %v1508
      %v1512 = vmul.f32 %v1502, %v1511
      %v1514 = vsel %vm1490, %v1510, 0
      %v1517 = vsel %vm1490, %v1512, 0
      %1519 = vmatprep.subr.mxu0 0.0
      %1520 = vmatpush1.msra.mxu0 %v1400
      %1521 = vmatprep.subr.mxu0 0.0
      %1522 = vmatpush1.msra.mxu0 %v1401
      %1523 = vmatprep.subr.mxu0 0.0
      %1524 = vmatpush1.msra.mxu0 0.0
      %1525 = vmatprep.subr.mxu0 0.0
      %1526 = vmatpush1.msra.mxu0 0.0
      %1527 = vmatprep.subr.mxu0 0.0
      %1528 = vmatpush1.msra.mxu0 0.0
      %1529 = vmatprep.subr.mxu0 0.0
      %1530 = vmatpush1.msra.mxu0 0.0
      %1531 = vmatprep.subr.mxu0 0.0
      %1532 = vmatpush1.msra.mxu0 0.0
      %1533 = vmatprep.subr.mxu0 0.0
      %1534 = vmatpush1.msra.mxu0 0.0
      %1535 = vmatprep.subr.mxu0 0.0
      %1536 = vmatpush1.msra.mxu0 0.0
      %1537 = vmatprep.subr.mxu0 0.0
      %1538 = vmatpush1.msra.mxu0 0.0
      %1539 = vmatprep.subr.mxu0 0.0
      %1540 = vmatpush1.msra.mxu0 0.0
      %1541 = vmatprep.subr.mxu0 0.0
      %1542 = vmatpush1.msra.mxu0 0.0
      %1543 = vmatprep.subr.mxu0 0.0
      %1544 = vmatpush1.msra.mxu0 0.0
      %1545 = vmatprep.subr.mxu0 0.0
      %1546 = vmatpush1.msra.mxu0 0.0
      %1547 = vmatprep.subr.mxu0 0.0
      %1548 = vmatpush1.msra.mxu0 0.0
      %1549 = vmatprep.subr.mxu0 0.0
      %1550 = vmatpush1.msra.mxu0 0.0
      %1551 = vmatprep.subr.mxu0 0.0
      %1552 = vmatpush1.msra.mxu0 0.0
      %1553 = vmatprep.subr.mxu0 0.0
      %1554 = vmatpush1.msra.mxu0 0.0
      %1555 = vmatprep.subr.mxu0 0.0
      %1556 = vmatpush1.msra.mxu0 0.0
      %1557 = vmatprep.subr.mxu0 0.0
      %1558 = vmatpush1.msra.mxu0 0.0
      %1559 = vmatprep.subr.mxu0 0.0
      %1560 = vmatpush1.msra.mxu0 0.0
      %1561 = vmatprep.subr.mxu0 0.0
      %1562 = vmatpush1.msra.mxu0 0.0
      %1563 = vmatprep.subr.mxu0 0.0
      %1564 = vmatpush1.msra.mxu0 0.0
      %1565 = vmatprep.subr.mxu0 0.0
      %1566 = vmatpush1.msra.mxu0 0.0
      %1567 = vmatprep.subr.mxu0 0.0
      %1568 = vmatpush1.msra.mxu0 0.0
      %1569 = vmatprep.subr.mxu0 0.0
      %1570 = vmatpush1.msra.mxu0 0.0
      %1571 = vmatprep.subr.mxu0 0.0
      %1572 = vmatpush1.msra.mxu0 0.0
      %1573 = vmatprep.subr.mxu0 0.0
      %1574 = vmatpush1.msra.mxu0 0.0
      %1575 = vmatprep.subr.mxu0 0.0
      %1576 = vmatpush1.msra.mxu0 0.0
      %1577 = vmatprep.subr.mxu0 0.0
      %1578 = vmatpush1.msra.mxu0 0.0
      %1579 = vmatprep.subr.mxu0 0.0
      %1580 = vmatpush1.msra.mxu0 0.0
      %1581 = vmatprep.subr.mxu0 0.0
      %1582 = vmatpush1.msra.mxu0 0.0
      %1583 = vmatprep.mubr.f32.mxu0 0.0
      %1584 = vmatmul.mubr.f32.gmra.mrb[0].mxu0 %v1514
      %v1585 = vpop.f32.mrb[0].mxu0
      %v1586 = vadd.f32 0.0, %v1585
      %v1587 = vpop.f32.mrb[0].mxu0
      %1588 = vmatprep.mubr.f32.mxu0 0.0
      %1589 = vmatmul.mubr.f32.gmra.mrb[0].mxu0 %v1517
      %v1590 = vpop.f32.mrb[0].mxu0
      %v1591 = vadd.f32 0.0, %v1590
      %v1592 = vpop.f32.mrb[0].mxu0
      %1593 = vdwg.mxu0
      %v1594 = vld [vmem:[%s8] sm:$0xff]
      %v1595 = vld [vmem:[%s8 + $0x8] sm:$0xff]
      %v1596 = vld [vmem:[%s8 + $0x10] sm:$0xff]
      %v1597 = vld [vmem:[%s8 + $0x18] sm:$0xff]
      %s1598 = scalar_lea.vmem %s2, 128
      %v1599 = vld [vmem:[%s1598] sm:$0xff]
      %v1600 = vld [vmem:[%s1598 + $0x8] sm:$0xff]
      %v1601 = vld [vmem:[%s1598 + $0x10] sm:$0xff]
      %v1602 = vld [vmem:[%s1598 + $0x18] sm:$0xff]
      %v1603 = vld [vmem:[%s1598 + $0x20] sm:$0xff]
      %v1604 = vld [vmem:[%s1598 + $0x28] sm:$0xff]
      %v1605 = vld [vmem:[%s1598 + $0x30] sm:$0xff]
      %v1606 = vld [vmem:[%s1598 + $0x38] sm:$0xff]
      %v1607 = vld [vmem:[%s1598 + $0x40] sm:$0xff]
      %v1608 = vld [vmem:[%s1598 + $0x48] sm:$0xff]
      %v1609 = vld [vmem:[%s1598 + $0x50] sm:$0xff]
      %v1610 = vld [vmem:[%s1598 + $0x58] sm:$0xff]
      %v1611 = vld [vmem:[%s1598 + $0x60] sm:$0xff]
      %v1612 = vld [vmem:[%s1598 + $0x68] sm:$0xff]
      %v1613 = vld [vmem:[%s1598 + $0x70] sm:$0xff]
      %v1614 = vld [vmem:[%s1598 + $0x78] sm:$0xff]
      %s1615 = scalar_lea.vmem %s5, 1
      %v1616 = vld [vmem:[%s1615] sm:$0x1]
      %v1618 = vlaneseq
      %v1619 = vshrl.u32 %v1618, 7
      %v1620 = vsub.s32 0, %v1619
      %v1621 = vrot.slane %v1616, %v1620
      %1623 = vmatprep.subr.mxu0 0.0
      %1624 = vmatpush1.msra.mxu0 %v1599
      %1625 = vmatprep.subr.mxu0 0.0
      %1626 = vmatpush1.msra.mxu0 %v1600
      %1627 = vmatprep.subr.mxu0 0.0
      %1628 = vmatpush1.msra.mxu0 %v1601
      %1629 = vmatprep.subr.mxu0 0.0
      %1630 = vmatpush1.msra.mxu0 %v1602
      %1631 = vmatprep.subr.mxu0 0.0
      %1632 = vmatpush1.msra.mxu0 %v1603
      %1633 = vmatprep.subr.mxu0 0.0
      %1634 = vmatpush1.msra.mxu0 %v1604
      %1635 = vmatprep.subr.mxu0 0.0
      %1636 = vmatpush1.msra.mxu0 %v1605
      %1637 = vmatprep.subr.mxu0 0.0
      %1638 = vmatpush1.msra.mxu0 %v1606
      %1639 = vmatprep.subr.mxu0 0.0
      %1640 = vmatpush1.msra.mxu0 %v1607
      %1641 = vmatprep.subr.mxu0 0.0
      %1642 = vmatpush1.msra.mxu0 %v1608
      %1643 = vmatprep.subr.mxu0 0.0
      %1644 = vmatpush1.msra.mxu0 %v1609
      %1645 = vmatprep.subr.mxu0 0.0
      %1646 = vmatpush1.msra.mxu0 %v1610
      %1647 = vmatprep.subr.mxu0 0.0
      %1648 = vmatpush1.msra.mxu0 %v1611
      %1649 = vmatprep.subr.mxu0 0.0
      %1650 = vmatpush1.msra.mxu0 %v1612
      %1651 = vmatprep.subr.mxu0 0.0
      %1652 = vmatpush1.msra.mxu0 %v1613
      %1653 = vmatprep.subr.mxu0 0.0
      %1654 = vmatpush1.msra.mxu0 %v1614
      %1655 = vmatprep.subr.mxu0 0.0
      %1656 = vmatpush1.msra.mxu0 0.0
      %1657 = vmatprep.subr.mxu0 0.0
      %1658 = vmatpush1.msra.mxu0 0.0
      %1659 = vmatprep.subr.mxu0 0.0
      %1660 = vmatpush1.msra.mxu0 0.0
      %1661 = vmatprep.subr.mxu0 0.0
      %1662 = vmatpush1.msra.mxu0 0.0
      %1663 = vmatprep.subr.mxu0 0.0
      %1664 = vmatpush1.msra.mxu0 0.0
      %1665 = vmatprep.subr.mxu0 0.0
      %1666 = vmatpush1.msra.mxu0 0.0
      %1667 = vmatprep.subr.mxu0 0.0
      %1668 = vmatpush1.msra.mxu0 0.0
      %1669 = vmatprep.subr.mxu0 0.0
      %1670 = vmatpush1.msra.mxu0 0.0
      %1671 = vmatprep.subr.mxu0 0.0
      %1672 = vmatpush1.msra.mxu0 0.0
      %1673 = vmatprep.subr.mxu0 0.0
      %1674 = vmatpush1.msra.mxu0 0.0
      %1675 = vmatprep.subr.mxu0 0.0
      %1676 = vmatpush1.msra.mxu0 0.0
      %1677 = vmatprep.subr.mxu0 0.0
      %1678 = vmatpush1.msra.mxu0 0.0
      %1679 = vmatprep.subr.mxu0 0.0
      %1680 = vmatpush1.msra.mxu0 0.0
      %1681 = vmatprep.subr.mxu0 0.0
      %1682 = vmatpush1.msra.mxu0 0.0
      %1683 = vmatprep.subr.mxu0 0.0
      %1684 = vmatpush1.msra.mxu0 0.0
      %1685 = vmatprep.subr.mxu0 0.0
      %1686 = vmatpush1.msra.mxu0 0.0
      %1687 = vmatprep.mubr.f32.mxu0 0.0
      %1688 = vmatmul.mubr.f32.gmra.mrb[0].mxu0 %v1298
      %v1689 = vpop.f32.mrb[0].mxu0
      %v1690 = vadd.f32 %v1621, %v1689
      %v1691 = vpop.f32.mrb[0].mxu0
      %1692 = vmatprep.mubr.f32.mxu0 0.0
      %1693 = vmatmul.mubr.f32.gmra.mrb[0].mxu0 %v1299
      %v1694 = vpop.f32.mrb[0].mxu0
      %v1695 = vadd.f32 %v1621, %v1694
      %v1696 = vpop.f32.mrb[0].mxu0
      %1697 = vdwg.mxu0
      %s1698 = scalar_lea.vmem [#allocation2], 16
      %v1699 = vld [vmem:[%s1698] sm:$0xff]
      %v1700 = vld [vmem:[%s1698 + $0x8] sm:$0xff]
      %s1701 = scalar_lea.vmem [#allocation3], 16
      %v1702 = vld [vmem:[%s1701] sm:$0xff]
      %v1703 = vld [vmem:[%s1701 + $0x8] sm:$0xff]
      %v1705 = vsel %vm1402, %v1690, 0
      %v1708 = vsel %vm1402, %v1695, 0
      %v1711 = vsel %vm1402, %v1699, 0
      %v1714 = vsel %vm1402, %v1700, 0
      %1716 = vmatprep.subr.mxu0 0.0
      %1717 = vmatpush1.xpose.msra.mxu0 %v1711
      %1718 = vmatprep.subr.mxu0 0.0
      %1719 = vmatpush1.xpose.msra.mxu0 %v1714
      %1720 = vmatprep.subr.mxu0 0.0
      %1721 = vmatpush1.xpose.msra.mxu0 0.0
      %1722 = vmatprep.subr.mxu0 0.0
      %1723 = vmatpush1.xpose.msra.mxu0 0.0
      %1724 = vmatprep.subr.mxu0 0.0
      %1725 = vmatpush1.xpose.msra.mxu0 0.0
      %1726 = vmatprep.subr.mxu0 0.0
      %1727 = vmatpush1.xpose.msra.mxu0 0.0
      %1728 = vmatprep.subr.mxu0 0.0
      %1729 = vmatpush1.xpose.msra.mxu0 0.0
      %1730 = vmatprep.subr.mxu0 0.0
      %1731 = vmatpush1.xpose.msra.mxu0 0.0
      %1732 = vmatprep.subr.mxu0 0.0
      %1733 = vmatpush1.xpose.msra.mxu0 0.0
      %1734 = vmatprep.subr.mxu0 0.0
      %1735 = vmatpush1.xpose.msra.mxu0 0.0
      %1736 = vmatprep.subr.mxu0 0.0
      %1737 = vmatpush1.xpose.msra.mxu0 0.0
      %1738 = vmatprep.subr.mxu0 0.0
      %1739 = vmatpush1.xpose.msra.mxu0 0.0
      %1740 = vmatprep.subr.mxu0 0.0
      %1741 = vmatpush1.xpose.msra.mxu0 0.0
      %1742 = vmatprep.subr.mxu0 0.0
      %1743 = vmatpush1.xpose.msra.mxu0 0.0
      %1744 = vmatprep.subr.mxu0 0.0
      %1745 = vmatpush1.xpose.msra.mxu0 0.0
      %1746 = vmatprep.subr.mxu0 0.0
      %1747 = vmatpush1.xpose.msra.mxu0 0.0
      %1748 = vmatprep.subr.mxu0 0.0
      %1749 = vmatpush1.xpose.msra.mxu0 0.0
      %1750 = vmatprep.subr.mxu0 0.0
      %1751 = vmatpush1.xpose.msra.mxu0 0.0
      %1752 = vmatprep.subr.mxu0 0.0
      %1753 = vmatpush1.xpose.msra.mxu0 0.0
      %1754 = vmatprep.subr.mxu0 0.0
      %1755 = vmatpush1.xpose.msra.mxu0 0.0
      %1756 = vmatprep.subr.mxu0 0.0
      %1757 = vmatpush1.xpose.msra.mxu0 0.0
      %1758 = vmatprep.subr.mxu0 0.0
      %1759 = vmatpush1.xpose.msra.mxu0 0.0
      %1760 = vmatprep.subr.mxu0 0.0
      %1761 = vmatpush1.xpose.msra.mxu0 0.0
      %1762 = vmatprep.subr.mxu0 0.0
      %1763 = vmatpush1.xpose.msra.mxu0 0.0
      %1764 = vmatprep.subr.mxu0 0.0
      %1765 = vmatpush1.xpose.msra.mxu0 0.0
      %1766 = vmatprep.subr.mxu0 0.0
      %1767 = vmatpush1.xpose.msra.mxu0 0.0
      %1768 = vmatprep.subr.mxu0 0.0
      %1769 = vmatpush1.xpose.msra.mxu0 0.0
      %1770 = vmatprep.subr.mxu0 0.0
      %1771 = vmatpush1.xpose.msra.mxu0 0.0
      %1772 = vmatprep.subr.mxu0 0.0
      %1773 = vmatpush1.xpose.msra.mxu0 0.0
      %1774 = vmatprep.subr.mxu0 0.0
      %1775 = vmatpush1.xpose.msra.mxu0 0.0
      %1776 = vmatprep.subr.mxu0 0.0
      %1777 = vmatpush1.xpose.msra.mxu0 0.0
      %1778 = vmatprep.subr.mxu0 0.0
      %1779 = vmatpush1.xpose.msra.mxu0 0.0
      %1780 = vmatprep.mubr.f32.mxu0 0.0
      %1781 = vmatmul.mubr.f32.gmra.mrb[0].mxu0 %v1705
      %v1782 = vpop.f32.mrb[0].mxu0
      %v1783 = vadd.f32 0.0, %v1782
      %v1784 = vpop.f32.mrb[0].mxu0
      %1785 = vmatprep.mubr.f32.mxu0 0.0
      %1786 = vmatmul.mubr.f32.gmra.mrb[0].mxu0 %v1708
      %v1787 = vpop.f32.mrb[0].mxu0
      %v1788 = vadd.f32 0.0, %v1787
      %v1789 = vpop.f32.mrb[0].mxu0
      %1790 = vdwg.mxu0
      %v1791 = vsel %vm1490, %v1783, -inf
      %1792 = vmax.xlane.f32.xlu0 %v1791
      %v1793 = vpop.xlane.xlu0 %1792
      %v1794 = vsel %vm1490, %v1788, -inf
      %1795 = vmax.xlane.f32.xlu0 %v1794
      %v1796 = vpop.xlane.xlu0 %1795
      %v1797 = vsub.f32 %v1783, %v1793
      %v1798 = vsub.f32 %v1788, %v1796
      %v1799 = vmul.f32 %v1797, 1.442695
      %v1800 = vpow.pop %v1799
      %v1801 = vmul.f32 %v1798, 1.442695
      %v1802 = vpow.pop %v1801
      %v1803 = vsel %vm1490, %v1800, 0.0
      %1804 = vadd.xlane.f32.xlu0 %v1803
      %v1805 = vpop.xlane.xlu0 %1804
      %v1806 = vsel %vm1490, %v1802, 0.0
      %1807 = vadd.xlane.f32.xlu0 %v1806
      %v1808 = vpop.xlane.xlu0 %1807
      %v1809 = vrcp.pop %v1805
      %v1810 = vmul.f32 %v1800, %v1809
      %v1811 = vrcp.pop %v1808
      %v1812 = vmul.f32 %v1802, %v1811
      %v1814 = vsel %vm1490, %v1810, 0
      %v1817 = vsel %vm1490, %v1812, 0
      %1819 = vmatprep.subr.mxu0 0.0
      %1820 = vmatpush1.msra.mxu0 %v1702
      %1821 = vmatprep.subr.mxu0 0.0
      %1822 = vmatpush1.msra.mxu0 %v1703
      %1823 = vmatprep.subr.mxu0 0.0
      %1824 = vmatpush1.msra.mxu0 0.0
      %1825 = vmatprep.subr.mxu0 0.0
      %1826 = vmatpush1.msra.mxu0 0.0
      %1827 = vmatprep.subr.mxu0 0.0
      %1828 = vmatpush1.msra.mxu0 0.0
      %1829 = vmatprep.subr.mxu0 0.0
      %1830 = vmatpush1.msra.mxu0 0.0
      %1831 = vmatprep.subr.mxu0 0.0
      %1832 = vmatpush1.msra.mxu0 0.0
      %1833 = vmatprep.subr.mxu0 0.0
      %1834 = vmatpush1.msra.mxu0 0.0
      %1835 = vmatprep.subr.mxu0 0.0
      %1836 = vmatpush1.msra.mxu0 0.0
      %1837 = vmatprep.subr.mxu0 0.0
      %1838 = vmatpush1.msra.mxu0 0.0
      %1839 = vmatprep.subr.mxu0 0.0
      %1840 = vmatpush1.msra.mxu0 0.0
      %1841 = vmatprep.subr.mxu0 0.0
      %1842 = vmatpush1.msra.mxu0 0.0
      %1843 = vmatprep.subr.mxu0 0.0
      %1844 = vmatpush1.msra.mxu0 0.0
      %1845 = vmatprep.subr.mxu0 0.0
      %1846 = vmatpush1.msra.mxu0 0.0
      %1847 = vmatprep.subr.mxu0 0.0
      %1848 = vmatpush1.msra.mxu0 0.0
      %1849 = vmatprep.subr.mxu0 0.0
      %1850 = vmatpush1.msra.mxu0 0.0
      %1851 = vmatprep.subr.mxu0 0.0
      %1852 = vmatpush1.msra.mxu0 0.0
      %1853 = vmatprep.subr.mxu0 0.0
      %1854 = vmatpush1.msra.mxu0 0.0
      %1855 = vmatprep.subr.mxu0 0.0
      %1856 = vmatpush1.msra.mxu0 0.0
      %1857 = vmatprep.subr.mxu0 0.0
      %1858 = vmatpush1.msra.mxu0 0.0
      %1859 = vmatprep.subr.mxu0 0.0
      %1860 = vmatpush1.msra.mxu0 0.0
      %1861 = vmatprep.subr.mxu0 0.0
      %1862 = vmatpush1.msra.mxu0 0.0
      %1863 = vmatprep.subr.mxu0 0.0
      %1864 = vmatpush1.msra.mxu0 0.0
      %1865 = vmatprep.subr.mxu0 0.0
      %1866 = vmatpush1.msra.mxu0 0.0
      %1867 = vmatprep.subr.mxu0 0.0
      %1868 = vmatpush1.msra.mxu0 0.0
      %1869 = vmatprep.subr.mxu0 0.0
      %1870 = vmatpush1.msra.mxu0 0.0
      %1871 = vmatprep.subr.mxu0 0.0
      %1872 = vmatpush1.msra.mxu0 0.0
      %1873 = vmatprep.subr.mxu0 0.0
      %1874 = vmatpush1.msra.mxu0 0.0
      %1875 = vmatprep.subr.mxu0 0.0
      %1876 = vmatpush1.msra.mxu0 0.0
      %1877 = vmatprep.subr.mxu0 0.0
      %1878 = vmatpush1.msra.mxu0 0.0
      %1879 = vmatprep.subr.mxu0 0.0
      %1880 = vmatpush1.msra.mxu0 0.0
      %1881 = vmatprep.subr.mxu0 0.0
      %1882 = vmatpush1.msra.mxu0 0.0
      %1883 = vmatprep.mubr.f32.mxu0 0.0
      %1884 = vmatmul.mubr.f32.gmra.mrb[0].mxu0 %v1814
      %v1885 = vpop.f32.mrb[0].mxu0
      %v1886 = vadd.f32 0.0, %v1885
      %v1887 = vpop.f32.mrb[0].mxu0
      %1888 = vmatprep.mubr.f32.mxu0 0.0
      %1889 = vmatmul.mubr.f32.gmra.mrb[0].mxu0 %v1817
      %v1890 = vpop.f32.mrb[0].mxu0
      %v1891 = vadd.f32 0.0, %v1890
      %v1892 = vpop.f32.mrb[0].mxu0
      %1893 = vdwg.mxu0
      %s1894 = scalar_lea.vmem %s8, 32
      %v1895 = vld [vmem:[%s1894] sm:$0xff]
      %v1896 = vld [vmem:[%s1894 + $0x8] sm:$0xff]
      %v1897 = vld [vmem:[%s1894 + $0x10] sm:$0xff]
      %v1898 = vld [vmem:[%s1894 + $0x18] sm:$0xff]
      %v1900 = vsel %vm1402, %v1886, 0
      %v1903 = vsel %vm1402, %v1891, 0
      %1905 = vmatprep.subr.mxu0 0.0
      %1906 = vmatpush1.msra.mxu0 %v1895
      %1907 = vmatprep.subr.mxu0 0.0
      %1908 = vmatpush1.msra.mxu0 %v1896
      %1909 = vmatprep.subr.mxu0 0.0
      %1910 = vmatpush1.msra.mxu0 %v1897
      %1911 = vmatprep.subr.mxu0 0.0
      %1912 = vmatpush1.msra.mxu0 %v1898
      %1913 = vmatprep.subr.mxu0 0.0
      %1914 = vmatpush1.msra.mxu0 0.0
      %1915 = vmatprep.subr.mxu0 0.0
      %1916 = vmatpush1.msra.mxu0 0.0
      %1917 = vmatprep.subr.mxu0 0.0
      %1918 = vmatpush1.msra.mxu0 0.0
      %1919 = vmatprep.subr.mxu0 0.0
      %1920 = vmatpush1.msra.mxu0 0.0
      %1921 = vmatprep.subr.mxu0 0.0
      %1922 = vmatpush1.msra.mxu0 0.0
      %1923 = vmatprep.subr.mxu0 0.0
      %1924 = vmatpush1.msra.mxu0 0.0
      %1925 = vmatprep.subr.mxu0 0.0
      %1926 = vmatpush1.msra.mxu0 0.0
      %1927 = vmatprep.subr.mxu0 0.0
      %1928 = vmatpush1.msra.mxu0 0.0
      %1929 = vmatprep.subr.mxu0 0.0
      %1930 = vmatpush1.msra.mxu0 0.0
      %1931 = vmatprep.subr.mxu0 0.0
      %1932 = vmatpush1.msra.mxu0 0.0
      %1933 = vmatprep.subr.mxu0 0.0
      %1934 = vmatpush1.msra.mxu0 0.0
      %1935 = vmatprep.subr.mxu0 0.0
      %1936 = vmatpush1.msra.mxu0 0.0
      %1937 = vmatprep.subr.mxu0 0.0
      %1938 = vmatpush1.msra.mxu0 0.0
      %1939 = vmatprep.subr.mxu0 0.0
      %1940 = vmatpush1.msra.mxu0 0.0
      %1941 = vmatprep.subr.mxu0 0.0
      %1942 = vmatpush1.msra.mxu0 0.0
      %1943 = vmatprep.subr.mxu0 0.0
      %1944 = vmatpush1.msra.mxu0 0.0
      %1945 = vmatprep.subr.mxu0 0.0
      %1946 = vmatpush1.msra.mxu0 0.0
      %1947 = vmatprep.subr.mxu0 0.0
      %1948 = vmatpush1.msra.mxu0 0.0
      %1949 = vmatprep.subr.mxu0 0.0
      %1950 = vmatpush1.msra.mxu0 0.0
      %1951 = vmatprep.subr.mxu0 0.0
      %1952 = vmatpush1.msra.mxu0 0.0
      %1953 = vmatprep.subr.mxu0 0.0
      %1954 = vmatpush1.msra.mxu0 0.0
      %1955 = vmatprep.subr.mxu0 0.0
      %1956 = vmatpush1.msra.mxu0 0.0
      %1957 = vmatprep.subr.mxu0 0.0
      %1958 = vmatpush1.msra.mxu0 0.0
      %1959 = vmatprep.subr.mxu0 0.0
      %1960 = vmatpush1.msra.mxu0 0.0
      %1961 = vmatprep.subr.mxu0 0.0
      %1962 = vmatpush1.msra.mxu0 0.0
      %1963 = vmatprep.subr.mxu0 0.0
      %1964 = vmatpush1.msra.mxu0 0.0
      %1965 = vmatprep.subr.mxu0 0.0
      %1966 = vmatpush1.msra.mxu0 0.0
      %1967 = vmatprep.subr.mxu0 0.0
      %1968 = vmatpush1.msra.mxu0 0.0
      %1969 = vmatprep.mubr.f32.mxu0 0.0
      %1970 = vmatmul.mubr.f32.gmra.mrb[0].mxu0 %v1900
      %v1971 = vpop.f32.mrb[0].mxu0
      %v1972 = vadd.f32 0.0, %v1971
      %v1973 = vpop.f32.mrb[0].mxu0
      %1974 = vmatprep.mubr.f32.mxu0 0.0
      %1975 = vmatmul.mubr.f32.gmra.mrb[0].mxu0 %v1903
      %v1976 = vpop.f32.mrb[0].mxu0
      %v1977 = vadd.f32 0.0, %v1976
      %v1978 = vpop.f32.mrb[0].mxu0
      %1979 = vdwg.mxu0
      %v1981 = vsel %vm1402, %v1586, 0
      %v1984 = vsel %vm1402, %v1591, 0
      %1986 = vmatprep.subr.mxu0 0.0
      %1987 = vmatpush1.msra.mxu0 %v1594
      %1988 = vmatprep.subr.mxu0 0.0
      %1989 = vmatpush1.msra.mxu0 %v1595
      %1990 = vmatprep.subr.mxu0 0.0
      %1991 = vmatpush1.msra.mxu0 %v1596
      %1992 = vmatprep.subr.mxu0 0.0
      %1993 = vmatpush1.msra.mxu0 %v1597
      %1994 = vmatprep.subr.mxu0 0.0
      %1995 = vmatpush1.msra.mxu0 0.0
      %1996 = vmatprep.subr.mxu0 0.0
      %1997 = vmatpush1.msra.mxu0 0.0
      %1998 = vmatprep.subr.mxu0 0.0
      %1999 = vmatpush1.msra.mxu0 0.0
      %2000 = vmatprep.subr.mxu0 0.0
      %2001 = vmatpush1.msra.mxu0 0.0
      %2002 = vmatprep.subr.mxu0 0.0
      %2003 = vmatpush1.msra.mxu0 0.0
      %2004 = vmatprep.subr.mxu0 0.0
      %2005 = vmatpush1.msra.mxu0 0.0
      %2006 = vmatprep.subr.mxu0 0.0
      %2007 = vmatpush1.msra.mxu0 0.0
      %2008 = vmatprep.subr.mxu0 0.0
      %2009 = vmatpush1.msra.mxu0 0.0
      %2010 = vmatprep.subr.mxu0 0.0
      %2011 = vmatpush1.msra.mxu0 0.0
      %2012 = vmatprep.subr.mxu0 0.0
      %2013 = vmatpush1.msra.mxu0 0.0
      %2014 = vmatprep.subr.mxu0 0.0
      %2015 = vmatpush1.msra.mxu0 0.0
      %2016 = vmatprep.subr.mxu0 0.0
      %2017 = vmatpush1.msra.mxu0 0.0
      %2018 = vmatprep.subr.mxu0 0.0
      %2019 = vmatpush1.msra.mxu0 0.0
      %2020 = vmatprep.subr.mxu0 0.0
      %2021 = vmatpush1.msra.mxu0 0.0
      %2022 = vmatprep.subr.mxu0 0.0
      %2023 = vmatpush1.msra.mxu0 0.0
      %2024 = vmatprep.subr.mxu0 0.0
      %2025 = vmatpush1.msra.mxu0 0.0
      %2026 = vmatprep.subr.mxu0 0.0
      %2027 = vmatpush1.msra.mxu0 0.0
      %2028 = vmatprep.subr.mxu0 0.0
      %2029 = vmatpush1.msra.mxu0 0.0
      %2030 = vmatprep.subr.mxu0 0.0
      %2031 = vmatpush1.msra.mxu0 0.0
      %2032 = vmatprep.subr.mxu0 0.0
      %2033 = vmatpush1.msra.mxu0 0.0
      %2034 = vmatprep.subr.mxu0 0.0
      %2035 = vmatpush1.msra.mxu0 0.0
      %2036 = vmatprep.subr.mxu0 0.0
      %2037 = vmatpush1.msra.mxu0 0.0
      %2038 = vmatprep.subr.mxu0 0.0
      %2039 = vmatpush1.msra.mxu0 0.0
      %2040 = vmatprep.subr.mxu0 0.0
      %2041 = vmatpush1.msra.mxu0 0.0
      %2042 = vmatprep.subr.mxu0 0.0
      %2043 = vmatpush1.msra.mxu0 0.0
      %2044 = vmatprep.subr.mxu0 0.0
      %2045 = vmatpush1.msra.mxu0 0.0
      %2046 = vmatprep.subr.mxu0 0.0
      %2047 = vmatpush1.msra.mxu0 0.0
      %2048 = vmatprep.subr.mxu0 0.0
      %2049 = vmatpush1.msra.mxu0 0.0
      %2050 = vmatprep.mubr.f32.mxu0 0.0
      %2051 = vmatmul.mubr.f32.gmra.mrb[0].mxu0 %v1981
      %v2052 = vpop.f32.mrb[0].mxu0
      %v2053 = vadd.f32 %v1972, %v2052
      %v2054 = vpop.f32.mrb[0].mxu0
      %2055 = vmatprep.mubr.f32.mxu0 0.0
      %2056 = vmatmul.mubr.f32.gmra.mrb[0].mxu0 %v1984
      %v2057 = vpop.f32.mrb[0].mxu0
      %v2058 = vadd.f32 %v1977, %v2057
      %v2059 = vpop.f32.mrb[0].mxu0
      %2060 = vdwg.mxu0
      %s2061 = scalar_lea.vmem %s2, 256
      %v2062 = vld [vmem:[%s2061] sm:$0xff]
      %v2063 = vld [vmem:[%s2061 + $0x8] sm:$0xff]
      %v2064 = vld [vmem:[%s2061 + $0x10] sm:$0xff]
      %v2065 = vld [vmem:[%s2061 + $0x18] sm:$0xff]
      %v2066 = vld [vmem:[%s2061 + $0x20] sm:$0xff]
      %v2067 = vld [vmem:[%s2061 + $0x28] sm:$0xff]
      %v2068 = vld [vmem:[%s2061 + $0x30] sm:$0xff]
      %v2069 = vld [vmem:[%s2061 + $0x38] sm:$0xff]
      %v2070 = vld [vmem:[%s2061 + $0x40] sm:$0xff]
      %v2071 = vld [vmem:[%s2061 + $0x48] sm:$0xff]
      %v2072 = vld [vmem:[%s2061 + $0x50] sm:$0xff]
      %v2073 = vld [vmem:[%s2061 + $0x58] sm:$0xff]
      %v2074 = vld [vmem:[%s2061 + $0x60] sm:$0xff]
      %v2075 = vld [vmem:[%s2061 + $0x68] sm:$0xff]
      %v2076 = vld [vmem:[%s2061 + $0x70] sm:$0xff]
      %v2077 = vld [vmem:[%s2061 + $0x78] sm:$0xff]
      %s2078 = scalar_lea.vmem %s5, 2
      %v2079 = vld [vmem:[%s2078] sm:$0x1]
      %v2081 = vlaneseq
      %v2082 = vshrl.u32 %v2081, 7
      %v2083 = vsub.s32 0, %v2082
      %v2084 = vrot.slane %v2079, %v2083
      %2086 = vmatprep.subr.mxu0 0.0
      %2087 = vmatpush1.msra.mxu0 %v2062
      %2088 = vmatprep.subr.mxu0 0.0
      %2089 = vmatpush1.msra.mxu0 %v2063
      %2090 = vmatprep.subr.mxu0 0.0
      %2091 = vmatpush1.msra.mxu0 %v2064
      %2092 = vmatprep.subr.mxu0 0.0
      %2093 = vmatpush1.msra.mxu0 %v2065
      %2094 = vmatprep.subr.mxu0 0.0
      %2095 = vmatpush1.msra.mxu0 %v2066
      %2096 = vmatprep.subr.mxu0 0.0
      %2097 = vmatpush1.msra.mxu0 %v2067
      %2098 = vmatprep.subr.mxu0 0.0
      %2099 = vmatpush1.msra.mxu0 %v2068
      %2100 = vmatprep.subr.mxu0 0.0
      %2101 = vmatpush1.msra.mxu0 %v2069
      %2102 = vmatprep.subr.mxu0 0.0
      %2103 = vmatpush1.msra.mxu0 %v2070
      %2104 = vmatprep.subr.mxu0 0.0
      %2105 = vmatpush1.msra.mxu0 %v2071
      %2106 = vmatprep.subr.mxu0 0.0
      %2107 = vmatpush1.msra.mxu0 %v2072
      %2108 = vmatprep.subr.mxu0 0.0
      %2109 = vmatpush1.msra.mxu0 %v2073
      %2110 = vmatprep.subr.mxu0 0.0
      %2111 = vmatpush1.msra.mxu0 %v2074
      %2112 = vmatprep.subr.mxu0 0.0
      %2113 = vmatpush1.msra.mxu0 %v2075
      %2114 = vmatprep.subr.mxu0 0.0
      %2115 = vmatpush1.msra.mxu0 %v2076
      %2116 = vmatprep.subr.mxu0 0.0
      %2117 = vmatpush1.msra.mxu0 %v2077
      %2118 = vmatprep.subr.mxu0 0.0
      %2119 = vmatpush1.msra.mxu0 0.0
      %2120 = vmatprep.subr.mxu0 0.0
      %2121 = vmatpush1.msra.mxu0 0.0
      %2122 = vmatprep.subr.mxu0 0.0
      %2123 = vmatpush1.msra.mxu0 0.0
      %2124 = vmatprep.subr.mxu0 0.0
      %2125 = vmatpush1.msra.mxu0 0.0
      %2126 = vmatprep.subr.mxu0 0.0
      %2127 = vmatpush1.msra.mxu0 0.0
      %2128 = vmatprep.subr.mxu0 0.0
      %2129 = vmatpush1.msra.mxu0 0.0
      %2130 = vmatprep.subr.mxu0 0.0
      %2131 = vmatpush1.msra.mxu0 0.0
      %2132 = vmatprep.subr.mxu0 0.0
      %2133 = vmatpush1.msra.mxu0 0.0
      %2134 = vmatprep.subr.mxu0 0.0
      %2135 = vmatpush1.msra.mxu0 0.0
      %2136 = vmatprep.subr.mxu0 0.0
      %2137 = vmatpush1.msra.mxu0 0.0
      %2138 = vmatprep.subr.mxu0 0.0
      %2139 = vmatpush1.msra.mxu0 0.0
      %2140 = vmatprep.subr.mxu0 0.0
      %2141 = vmatpush1.msra.mxu0 0.0
      %2142 = vmatprep.subr.mxu0 0.0
      %2143 = vmatpush1.msra.mxu0 0.0
      %2144 = vmatprep.subr.mxu0 0.0
      %2145 = vmatpush1.msra.mxu0 0.0
      %2146 = vmatprep.subr.mxu0 0.0
      %2147 = vmatpush1.msra.mxu0 0.0
      %2148 = vmatprep.subr.mxu0 0.0
      %2149 = vmatpush1.msra.mxu0 0.0
      %2150 = vmatprep.mubr.f32.mxu0 0.0
      %2151 = vmatmul.mubr.f32.gmra.mrb[0].mxu0 %v1298
      %v2152 = vpop.f32.mrb[0].mxu0
      %v2153 = vadd.f32 %v2084, %v2152
      %v2154 = vpop.f32.mrb[0].mxu0
      %2155 = vmatprep.mubr.f32.mxu0 0.0
      %2156 = vmatmul.mubr.f32.gmra.mrb[0].mxu0 %v1299
      %v2157 = vpop.f32.mrb[0].mxu0
      %v2158 = vadd.f32 %v2084, %v2157
      %v2159 = vpop.f32.mrb[0].mxu0
      %2160 = vdwg.mxu0
      %s2161 = scalar_lea.vmem [#allocation2], 32
      %v2162 = vld [vmem:[%s2161] sm:$0xff]
      %v2163 = vld [vmem:[%s2161 + $0x8] sm:$0xff]
      %s2164 = scalar_lea.vmem [#allocation3], 32
      %v2165 = vld [vmem:[%s2164] sm:$0xff]
      %v2166 = vld [vmem:[%s2164 + $0x8] sm:$0xff]
      %v2168 = vsel %vm1402, %v2153, 0
      %v2171 = vsel %vm1402, %v2158, 0
      %v2174 = vsel %vm1402, %v2162, 0
      %v2177 = vsel %vm1402, %v2163, 0
      %2179 = vmatprep.subr.mxu0 0.0
      %2180 = vmatpush1.xpose.msra.mxu0 %v2174
      %2181 = vmatprep.subr.mxu0 0.0
      %2182 = vmatpush1.xpose.msra.mxu0 %v2177
      %2183 = vmatprep.subr.mxu0 0.0
      %2184 = vmatpush1.xpose.msra.mxu0 0.0
      %2185 = vmatprep.subr.mxu0 0.0
      %2186 = vmatpush1.xpose.msra.mxu0 0.0
      %2187 = vmatprep.subr.mxu0 0.0
      %2188 = vmatpush1.xpose.msra.mxu0 0.0
      %2189 = vmatprep.subr.mxu0 0.0
      %2190 = vmatpush1.xpose.msra.mxu0 0.0
      %2191 = vmatprep.subr.mxu0 0.0
      %2192 = vmatpush1.xpose.msra.mxu0 0.0
      %2193 = vmatprep.subr.mxu0 0.0
      %2194 = vmatpush1.xpose.msra.mxu0 0.0
      %2195 = vmatprep.subr.mxu0 0.0
      %2196 = vmatpush1.xpose.msra.mxu0 0.0
      %2197 = vmatprep.subr.mxu0 0.0
      %2198 = vmatpush1.xpose.msra.mxu0 0.0
      %2199 = vmatprep.subr.mxu0 0.0
      %2200 = vmatpush1.xpose.msra.mxu0 0.0
      %2201 = vmatprep.subr.mxu0 0.0
      %2202 = vmatpush1.xpose.msra.mxu0 0.0
      %2203 = vmatprep.subr.mxu0 0.0
      %2204 = vmatpush1.xpose.msra.mxu0 0.0
      %2205 = vmatprep.subr.mxu0 0.0
      %2206 = vmatpush1.xpose.msra.mxu0 0.0
      %2207 = vmatprep.subr.mxu0 0.0
      %2208 = vmatpush1.xpose.msra.mxu0 0.0
      %2209 = vmatprep.subr.mxu0 0.0
      %2210 = vmatpush1.xpose.msra.mxu0 0.0
      %2211 = vmatprep.subr.mxu0 0.0
      %2212 = vmatpush1.xpose.msra.mxu0 0.0
      %2213 = vmatprep.subr.mxu0 0.0
      %2214 = vmatpush1.xpose.msra.mxu0 0.0
      %2215 = vmatprep.subr.mxu0 0.0
      %2216 = vmatpush1.xpose.msra.mxu0 0.0
      %2217 = vmatprep.subr.mxu0 0.0
      %2218 = vmatpush1.xpose.msra.mxu0 0.0
      %2219 = vmatprep.subr.mxu0 0.0
      %2220 = vmatpush1.xpose.msra.mxu0 0.0
      %2221 = vmatprep.subr.mxu0 0.0
      %2222 = vmatpush1.xpose.msra.mxu0 0.0
      %2223 = vmatprep.subr.mxu0 0.0
      %2224 = vmatpush1.xpose.msra.mxu0 0.0
      %2225 = vmatprep.subr.mxu0 0.0
      %2226 = vmatpush1.xpose.msra.mxu0 0.0
      %2227 = vmatprep.subr.mxu0 0.0
      %2228 = vmatpush1.xpose.msra.mxu0 0.0
      %2229 = vmatprep.subr.mxu0 0.0
      %2230 = vmatpush1.xpose.msra.mxu0 0.0
      %2231 = vmatprep.subr.mxu0 0.0
      %2232 = vmatpush1.xpose.msra.mxu0 0.0
      %2233 = vmatprep.subr.mxu0 0.0
      %2234 = vmatpush1.xpose.msra.mxu0 0.0
      %2235 = vmatprep.subr.mxu0 0.0
      %2236 = vmatpush1.xpose.msra.mxu0 0.0
      %2237 = vmatprep.subr.mxu0 0.0
      %2238 = vmatpush1.xpose.msra.mxu0 0.0
      %2239 = vmatprep.subr.mxu0 0.0
      %2240 = vmatpush1.xpose.msra.mxu0 0.0
      %2241 = vmatprep.subr.mxu0 0.0
      %2242 = vmatpush1.xpose.msra.mxu0 0.0
      %2243 = vmatprep.mubr.f32.mxu0 0.0
      %2244 = vmatmul.mubr.f32.gmra.mrb[0].mxu0 %v2168
      %v2245 = vpop.f32.mrb[0].mxu0
      %v2246 = vadd.f32 0.0, %v2245
      %v2247 = vpop.f32.mrb[0].mxu0
      %2248 = vmatprep.mubr.f32.mxu0 0.0
      %2249 = vmatmul.mubr.f32.gmra.mrb[0].mxu0 %v2171
      %v2250 = vpop.f32.mrb[0].mxu0
      %v2251 = vadd.f32 0.0, %v2250
      %v2252 = vpop.f32.mrb[0].mxu0
      %2253 = vdwg.mxu0
      %v2254 = vsel %vm1490, %v2246, -inf
      %2255 = vmax.xlane.f32.xlu0 %v2254
      %v2256 = vpop.xlane.xlu0 %2255
      %v2257 = vsel %vm1490, %v2251, -inf
      %2258 = vmax.xlane.f32.xlu0 %v2257
      %v2259 = vpop.xlane.xlu0 %2258
      %v2260 = vsub.f32 %v2246, %v2256
      %v2261 = vsub.f32 %v2251, %v2259
      %v2262 = vmul.f32 %v2260, 1.442695
      %v2263 = vpow.pop %v2262
      %v2264 = vmul.f32 %v2261, 1.442695
      %v2265 = vpow.pop %v2264
      %v2266 = vsel %vm1490, %v2263, 0.0
      %2267 = vadd.xlane.f32.xlu0 %v2266
      %v2268 = vpop.xlane.xlu0 %2267
      %v2269 = vsel %vm1490, %v2265, 0.0
      %2270 = vadd.xlane.f32.xlu0 %v2269
      %v2271 = vpop.xlane.xlu0 %2270
      %v2272 = vrcp.pop %v2268
      %v2273 = vmul.f32 %v2263, %v2272
      %v2274 = vrcp.pop %v2271
      %v2275 = vmul.f32 %v2265, %v2274
      %v2277 = vsel %vm1490, %v2273, 0
      %v2280 = vsel %vm1490, %v2275, 0
      %2282 = vmatprep.subr.mxu0 0.0
      %2283 = vmatpush1.msra.mxu0 %v2165
      %2284 = vmatprep.subr.mxu0 0.0
      %2285 = vmatpush1.msra.mxu0 %v2166
      %2286 = vmatprep.subr.mxu0 0.0
      %2287 = vmatpush1.msra.mxu0 0.0
      %2288 = vmatprep.subr.mxu0 0.0
      %2289 = vmatpush1.msra.mxu0 0.0
      %2290 = vmatprep.subr.mxu0 0.0
      %2291 = vmatpush1.msra.mxu0 0.0
      %2292 = vmatprep.subr.mxu0 0.0
      %2293 = vmatpush1.msra.mxu0 0.0
      %2294 = vmatprep.subr.mxu0 0.0
      %2295 = vmatpush1.msra.mxu0 0.0
      %2296 = vmatprep.subr.mxu0 0.0
      %2297 = vmatpush1.msra.mxu0 0.0
      %2298 = vmatprep.subr.mxu0 0.0
      %2299 = vmatpush1.msra.mxu0 0.0
      %2300 = vmatprep.subr.mxu0 0.0
      %2301 = vmatpush1.msra.mxu0 0.0
      %2302 = vmatprep.subr.mxu0 0.0
      %2303 = vmatpush1.msra.mxu0 0.0
      %2304 = vmatprep.subr.mxu0 0.0
      %2305 = vmatpush1.msra.mxu0 0.0
      %2306 = vmatprep.subr.mxu0 0.0
      %2307 = vmatpush1.msra.mxu0 0.0
      %2308 = vmatprep.subr.mxu0 0.0
      %2309 = vmatpush1.msra.mxu0 0.0
      %2310 = vmatprep.subr.mxu0 0.0
      %2311 = vmatpush1.msra.mxu0 0.0
      %2312 = vmatprep.subr.mxu0 0.0
      %2313 = vmatpush1.msra.mxu0 0.0
      %2314 = vmatprep.subr.mxu0 0.0
      %2315 = vmatpush1.msra.mxu0 0.0
      %2316 = vmatprep.subr.mxu0 0.0
      %2317 = vmatpush1.msra.mxu0 0.0
      %2318 = vmatprep.subr.mxu0 0.0
      %2319 = vmatpush1.msra.mxu0 0.0
      %2320 = vmatprep.subr.mxu0 0.0
      %2321 = vmatpush1.msra.mxu0 0.0
      %2322 = vmatprep.subr.mxu0 0.0
      %2323 = vmatpush1.msra.mxu0 0.0
      %2324 = vmatprep.subr.mxu0 0.0
      %2325 = vmatpush1.msra.mxu0 0.0
      %2326 = vmatprep.subr.mxu0 0.0
      %2327 = vmatpush1.msra.mxu0 0.0
      %2328 = vmatprep.subr.mxu0 0.0
      %2329 = vmatpush1.msra.mxu0 0.0
      %2330 = vmatprep.subr.mxu0 0.0
      %2331 = vmatpush1.msra.mxu0 0.0
      %2332 = vmatprep.subr.mxu0 0.0
      %2333 = vmatpush1.msra.mxu0 0.0
      %2334 = vmatprep.subr.mxu0 0.0
      %2335 = vmatpush1.msra.mxu0 0.0
      %2336 = vmatprep.subr.mxu0 0.0
      %2337 = vmatpush1.msra.mxu0 0.0
      %2338 = vmatprep.subr.mxu0 0.0
      %2339 = vmatpush1.msra.mxu0 0.0
      %2340 = vmatprep.subr.mxu0 0.0
      %2341 = vmatpush1.msra.mxu0 0.0
      %2342 = vmatprep.subr.mxu0 0.0
      %2343 = vmatpush1.msra.mxu0 0.0
      %2344 = vmatprep.subr.mxu0 0.0
      %2345 = vmatpush1.msra.mxu0 0.0
      %2346 = vmatprep.mubr.f32.mxu0 0.0
      %2347 = vmatmul.mubr.f32.gmra.mrb[0].mxu0 %v2277
      %v2348 = vpop.f32.mrb[0].mxu0
      %v2349 = vadd.f32 0.0, %v2348
      %v2350 = vpop.f32.mrb[0].mxu0
      %2351 = vmatprep.mubr.f32.mxu0 0.0
      %2352 = vmatmul.mubr.f32.gmra.mrb[0].mxu0 %v2280
      %v2353 = vpop.f32.mrb[0].mxu0
      %v2354 = vadd.f32 0.0, %v2353
      %v2355 = vpop.f32.mrb[0].mxu0
      %2356 = vdwg.mxu0
      %s2357 = scalar_lea.vmem %s8, 64
      %v2358 = vld [vmem:[%s2357] sm:$0xff]
      %v2359 = vld [vmem:[%s2357 + $0x8] sm:$0xff]
      %v2360 = vld [vmem:[%s2357 + $0x10] sm:$0xff]
      %v2361 = vld [vmem:[%s2357 + $0x18] sm:$0xff]
      %v2363 = vsel %vm1402, %v2349, 0
      %v2366 = vsel %vm1402, %v2354, 0
      %2368 = vmatprep.subr.mxu0 0.0
      %2369 = vmatpush1.msra.mxu0 %v2358
      %2370 = vmatprep.subr.mxu0 0.0
      %2371 = vmatpush1.msra.mxu0 %v2359
      %2372 = vmatprep.subr.mxu0 0.0
      %2373 = vmatpush1.msra.mxu0 %v2360
      %2374 = vmatprep.subr.mxu0 0.0
      %2375 = vmatpush1.msra.mxu0 %v2361
      %2376 = vmatprep.subr.mxu0 0.0
      %2377 = vmatpush1.msra.mxu0 0.0
      %2378 = vmatprep.subr.mxu0 0.0
      %2379 = vmatpush1.msra.mxu0 0.0
      %2380 = vmatprep.subr.mxu0 0.0
      %2381 = vmatpush1.msra.mxu0 0.0
      %2382 = vmatprep.subr.mxu0 0.0
      %2383 = vmatpush1.msra.mxu0 0.0
      %2384 = vmatprep.subr.mxu0 0.0
      %2385 = vmatpush1.msra.mxu0 0.0
      %2386 = vmatprep.subr.mxu0 0.0
      %2387 = vmatpush1.msra.mxu0 0.0
      %2388 = vmatprep.subr.mxu0 0.0
      %2389 = vmatpush1.msra.mxu0 0.0
      %2390 = vmatprep.subr.mxu0 0.0
      %2391 = vmatpush1.msra.mxu0 0.0
      %2392 = vmatprep.subr.mxu0 0.0
      %2393 = vmatpush1.msra.mxu0 0.0
      %2394 = vmatprep.subr.mxu0 0.0
      %2395 = vmatpush1.msra.mxu0 0.0
      %2396 = vmatprep.subr.mxu0 0.0
      %2397 = vmatpush1.msra.mxu0 0.0
      %2398 = vmatprep.subr.mxu0 0.0
      %2399 = vmatpush1.msra.mxu0 0.0
      %2400 = vmatprep.subr.mxu0 0.0
      %2401 = vmatpush1.msra.mxu0 0.0
      %2402 = vmatprep.subr.mxu0 0.0
      %2403 = vmatpush1.msra.mxu0 0.0
      %2404 = vmatprep.subr.mxu0 0.0
      %2405 = vmatpush1.msra.mxu0 0.0
      %2406 = vmatprep.subr.mxu0 0.0
      %2407 = vmatpush1.msra.mxu0 0.0
      %2408 = vmatprep.subr.mxu0 0.0
      %2409 = vmatpush1.msra.mxu0 0.0
      %2410 = vmatprep.subr.mxu0 0.0
      %2411 = vmatpush1.msra.mxu0 0.0
      %2412 = vmatprep.subr.mxu0 0.0
      %2413 = vmatpush1.msra.mxu0 0.0
      %2414 = vmatprep.subr.mxu0 0.0
      %2415 = vmatpush1.msra.mxu0 0.0
      %2416 = vmatprep.subr.mxu0 0.0
      %2417 = vmatpush1.msra.mxu0 0.0
      %2418 = vmatprep.subr.mxu0 0.0
      %2419 = vmatpush1.msra.mxu0 0.0
      %2420 = vmatprep.subr.mxu0 0.0
      %2421 = vmatpush1.msra.mxu0 0.0
      %2422 = vmatprep.subr.mxu0 0.0
      %2423 = vmatpush1.msra.mxu0 0.0
      %2424 = vmatprep.subr.mxu0 0.0
      %2425 = vmatpush1.msra.mxu0 0.0
      %2426 = vmatprep.subr.mxu0 0.0
      %2427 = vmatpush1.msra.mxu0 0.0
      %2428 = vmatprep.subr.mxu0 0.0
      %2429 = vmatpush1.msra.mxu0 0.0
      %2430 = vmatprep.subr.mxu0 0.0
      %2431 = vmatpush1.msra.mxu0 0.0
      %2432 = vmatprep.mubr.f32.mxu0 0.0
      %2433 = vmatmul.mubr.f32.gmra.mrb[0].mxu0 %v2363
      %v2434 = vpop.f32.mrb[0].mxu0
      %v2435 = vadd.f32 0.0, %v2434
      %v2436 = vpop.f32.mrb[0].mxu0
      %2437 = vmatprep.mubr.f32.mxu0 0.0
      %2438 = vmatmul.mubr.f32.gmra.mrb[0].mxu0 %v2366
      %v2439 = vpop.f32.mrb[0].mxu0
      %v2440 = vadd.f32 0.0, %v2439
      %v2441 = vpop.f32.mrb[0].mxu0
      %2442 = vdwg.mxu0
      %v2443 = vadd.f32 %v2053, %v2435
      %v2444 = vadd.f32 %v2058, %v2440
      %s2445 = scalar_lea.vmem %s2, 384
      %v2446 = vld [vmem:[%s2445] sm:$0xff]
      %v2447 = vld [vmem:[%s2445 + $0x8] sm:$0xff]
      %v2448 = vld [vmem:[%s2445 + $0x10] sm:$0xff]
      %v2449 = vld [vmem:[%s2445 + $0x18] sm:$0xff]
      %v2450 = vld [vmem:[%s2445 + $0x20] sm:$0xff]
      %v2451 = vld [vmem:[%s2445 + $0x28] sm:$0xff]
      %v2452 = vld [vmem:[%s2445 + $0x30] sm:$0xff]
      %v2453 = vld [vmem:[%s2445 + $0x38] sm:$0xff]
      %v2454 = vld [vmem:[%s2445 + $0x40] sm:$0xff]
      %v2455 = vld [vmem:[%s2445 + $0x48] sm:$0xff]
      %v2456 = vld [vmem:[%s2445 + $0x50] sm:$0xff]
      %v2457 = vld [vmem:[%s2445 + $0x58] sm:$0xff]
      %v2458 = vld [vmem:[%s2445 + $0x60] sm:$0xff]
      %v2459 = vld [vmem:[%s2445 + $0x68] sm:$0xff]
      %v2460 = vld [vmem:[%s2445 + $0x70] sm:$0xff]
      %v2461 = vld [vmem:[%s2445 + $0x78] sm:$0xff]
      %s2462 = scalar_lea.vmem %s5, 3
      %v2463 = vld [vmem:[%s2462] sm:$0x1]
      %v2465 = vlaneseq
      %v2466 = vshrl.u32 %v2465, 7
      %v2467 = vsub.s32 0, %v2466
      %v2468 = vrot.slane %v2463, %v2467
      %2470 = vmatprep.subr.mxu0 0.0
      %2471 = vmatpush1.msra.mxu0 %v2446
      %2472 = vmatprep.subr.mxu0 0.0
      %2473 = vmatpush1.msra.mxu0 %v2447
      %2474 = vmatprep.subr.mxu0 0.0
      %2475 = vmatpush1.msra.mxu0 %v2448
      %2476 = vmatprep.subr.mxu0 0.0
      %2477 = vmatpush1.msra.mxu0 %v2449
      %2478 = vmatprep.subr.mxu0 0.0
      %2479 = vmatpush1.msra.mxu0 %v2450
      %2480 = vmatprep.subr.mxu0 0.0
      %2481 = vmatpush1.msra.mxu0 %v2451
      %2482 = vmatprep.subr.mxu0 0.0
      %2483 = vmatpush1.msra.mxu0 %v2452
      %2484 = vmatprep.subr.mxu0 0.0
      %2485 = vmatpush1.msra.mxu0 %v2453
      %2486 = vmatprep.subr.mxu0 0.0
      %2487 = vmatpush1.msra.mxu0 %v2454
      %2488 = vmatprep.subr.mxu0 0.0
      %2489 = vmatpush1.msra.mxu0 %v2455
      %2490 = vmatprep.subr.mxu0 0.0
      %2491 = vmatpush1.msra.mxu0 %v2456
      %2492 = vmatprep.subr.mxu0 0.0
      %2493 = vmatpush1.msra.mxu0 %v2457
      %2494 = vmatprep.subr.mxu0 0.0
      %2495 = vmatpush1.msra.mxu0 %v2458
      %2496 = vmatprep.subr.mxu0 0.0
      %2497 = vmatpush1.msra.mxu0 %v2459
      %2498 = vmatprep.subr.mxu0 0.0
      %2499 = vmatpush1.msra.mxu0 %v2460
      %2500 = vmatprep.subr.mxu0 0.0
      %2501 = vmatpush1.msra.mxu0 %v2461
      %2502 = vmatprep.subr.mxu0 0.0
      %2503 = vmatpush1.msra.mxu0 0.0
      %2504 = vmatprep.subr.mxu0 0.0
      %2505 = vmatpush1.msra.mxu0 0.0
      %2506 = vmatprep.subr.mxu0 0.0
      %2507 = vmatpush1.msra.mxu0 0.0
      %2508 = vmatprep.subr.mxu0 0.0
      %2509 = vmatpush1.msra.mxu0 0.0
      %2510 = vmatprep.subr.mxu0 0.0
      %2511 = vmatpush1.msra.mxu0 0.0
      %2512 = vmatprep.subr.mxu0 0.0
      %2513 = vmatpush1.msra.mxu0 0.0
      %2514 = vmatprep.subr.mxu0 0.0
      %2515 = vmatpush1.msra.mxu0 0.0
      %2516 = vmatprep.subr.mxu0 0.0
      %2517 = vmatpush1.msra.mxu0 0.0
      %2518 = vmatprep.subr.mxu0 0.0
      %2519 = vmatpush1.msra.mxu0 0.0
      %2520 = vmatprep.subr.mxu0 0.0
      %2521 = vmatpush1.msra.mxu0 0.0
      %2522 = vmatprep.subr.mxu0 0.0
      %2523 = vmatpush1.msra.mxu0 0.0
      %2524 = vmatprep.subr.mxu0 0.0
      %2525 = vmatpush1.msra.mxu0 0.0
      %2526 = vmatprep.subr.mxu0 0.0
      %2527 = vmatpush1.msra.mxu0 0.0
      %2528 = vmatprep.subr.mxu0 0.0
      %2529 = vmatpush1.msra.mxu0 0.0
      %2530 = vmatprep.subr.mxu0 0.0
      %2531 = vmatpush1.msra.mxu0 0.0
      %2532 = vmatprep.subr.mxu0 0.0
      %2533 = vmatpush1.msra.mxu0 0.0
      %2534 = vmatprep.mubr.f32.mxu0 0.0
      %2535 = vmatmul.mubr.f32.gmra.mrb[0].mxu0 %v1298
      %v2536 = vpop.f32.mrb[0].mxu0
      %v2537 = vadd.f32 %v2468, %v2536
      %v2538 = vpop.f32.mrb[0].mxu0
      %2539 = vmatprep.mubr.f32.mxu0 0.0
      %2540 = vmatmul.mubr.f32.gmra.mrb[0].mxu0 %v1299
      %v2541 = vpop.f32.mrb[0].mxu0
      %v2542 = vadd.f32 %v2468, %v2541
      %v2543 = vpop.f32.mrb[0].mxu0
      %2544 = vdwg.mxu0
      %s2545 = scalar_lea.vmem [#allocation2], 48
      %v2546 = vld [vmem:[%s2545] sm:$0xff]
      %v2547 = vld [vmem:[%s2545 + $0x8] sm:$0xff]
      %s2548 = scalar_lea.vmem [#allocation3], 48
      %v2549 = vld [vmem:[%s2548] sm:$0xff]
      %v2550 = vld [vmem:[%s2548 + $0x8] sm:$0xff]
      %v2552 = vsel %vm1402, %v2537, 0
      %v2555 = vsel %vm1402, %v2542, 0
      %v2558 = vsel %vm1402, %v2546, 0
      %v2561 = vsel %vm1402, %v2547, 0
      %2563 = vmatprep.subr.mxu0 0.0
      %2564 = vmatpush1.xpose.msra.mxu0 %v2558
      %2565 = vmatprep.subr.mxu0 0.0
      %2566 = vmatpush1.xpose.msra.mxu0 %v2561
      %2567 = vmatprep.subr.mxu0 0.0
      %2568 = vmatpush1.xpose.msra.mxu0 0.0
      %2569 = vmatprep.subr.mxu0 0.0
      %2570 = vmatpush1.xpose.msra.mxu0 0.0
      %2571 = vmatprep.subr.mxu0 0.0
      %2572 = vmatpush1.xpose.msra.mxu0 0.0
      %2573 = vmatprep.subr.mxu0 0.0
      %2574 = vmatpush1.xpose.msra.mxu0 0.0
      %2575 = vmatprep.subr.mxu0 0.0
      %2576 = vmatpush1.xpose.msra.mxu0 0.0
      %2577 = vmatprep.subr.mxu0 0.0
      %2578 = vmatpush1.xpose.msra.mxu0 0.0
      %2579 = vmatprep.subr.mxu0 0.0
      %2580 = vmatpush1.xpose.msra.mxu0 0.0
      %2581 = vmatprep.subr.mxu0 0.0
      %2582 = vmatpush1.xpose.msra.mxu0 0.0
      %2583 = vmatprep.subr.mxu0 0.0
      %2584 = vmatpush1.xpose.msra.mxu0 0.0
      %2585 = vmatprep.subr.mxu0 0.0
      %2586 = vmatpush1.xpose.msra.mxu0 0.0
      %2587 = vmatprep.subr.mxu0 0.0
      %2588 = vmatpush1.xpose.msra.mxu0 0.0
      %2589 = vmatprep.subr.mxu0 0.0
      %2590 = vmatpush1.xpose.msra.mxu0 0.0
      %2591 = vmatprep.subr.mxu0 0.0
      %2592 = vmatpush1.xpose.msra.mxu0 0.0
      %2593 = vmatprep.subr.mxu0 0.0
      %2594 = vmatpush1.xpose.msra.mxu0 0.0
      %2595 = vmatprep.subr.mxu0 0.0
      %2596 = vmatpush1.xpose.msra.mxu0 0.0
      %2597 = vmatprep.subr.mxu0 0.0
      %2598 = vmatpush1.xpose.msra.mxu0 0.0
      %2599 = vmatprep.subr.mxu0 0.0
      %2600 = vmatpush1.xpose.msra.mxu0 0.0
      %2601 = vmatprep.subr.mxu0 0.0
      %2602 = vmatpush1.xpose.msra.mxu0 0.0
      %2603 = vmatprep.subr.mxu0 0.0
      %2604 = vmatpush1.xpose.msra.mxu0 0.0
      %2605 = vmatprep.subr.mxu0 0.0
      %2606 = vmatpush1.xpose.msra.mxu0 0.0
      %2607 = vmatprep.subr.mxu0 0.0
      %2608 = vmatpush1.xpose.msra.mxu0 0.0
      %2609 = vmatprep.subr.mxu0 0.0
      %2610 = vmatpush1.xpose.msra.mxu0 0.0
      %2611 = vmatprep.subr.mxu0 0.0
      %2612 = vmatpush1.xpose.msra.mxu0 0.0
      %2613 = vmatprep.subr.mxu0 0.0
      %2614 = vmatpush1.xpose.msra.mxu0 0.0
      %2615 = vmatprep.subr.mxu0 0.0
      %2616 = vmatpush1.xpose.msra.mxu0 0.0
      %2617 = vmatprep.subr.mxu0 0.0
      %2618 = vmatpush1.xpose.msra.mxu0 0.0
      %2619 = vmatprep.subr.mxu0 0.0
      %2620 = vmatpush1.xpose.msra.mxu0 0.0
      %2621 = vmatprep.subr.mxu0 0.0
      %2622 = vmatpush1.xpose.msra.mxu0 0.0
      %2623 = vmatprep.subr.mxu0 0.0
      %2624 = vmatpush1.xpose.msra.mxu0 0.0
      %2625 = vmatprep.subr.mxu0 0.0
      %2626 = vmatpush1.xpose.msra.mxu0 0.0
      %2627 = vmatprep.mubr.f32.mxu0 0.0
      %2628 = vmatmul.mubr.f32.gmra.mrb[0].mxu0 %v2552
      %v2629 = vpop.f32.mrb[0].mxu0
      %v2630 = vadd.f32 0.0, %v2629
      %v2631 = vpop.f32.mrb[0].mxu0
      %2632 = vmatprep.mubr.f32.mxu0 0.0
      %2633 = vmatmul.mubr.f32.gmra.mrb[0].mxu0 %v2555
      %v2634 = vpop.f32.mrb[0].mxu0
      %v2635 = vadd.f32 0.0, %v2634
      %v2636 = vpop.f32.mrb[0].mxu0
      %2637 = vdwg.mxu0
      %v2638 = vsel %vm1490, %v2630, -inf
      %2639 = vmax.xlane.f32.xlu0 %v2638
      %v2640 = vpop.xlane.xlu0 %2639
      %v2641 = vsel %vm1490, %v2635, -inf
      %2642 = vmax.xlane.f32.xlu0 %v2641
      %v2643 = vpop.xlane.xlu0 %2642
      %v2644 = vsub.f32 %v2630, %v2640
      %v2645 = vsub.f32 %v2635, %v2643
      %v2646 = vmul.f32 %v2644, 1.442695
      %v2647 = vpow.pop %v2646
      %v2648 = vmul.f32 %v2645, 1.442695
      %v2649 = vpow.pop %v2648
      %v2650 = vsel %vm1490, %v2647, 0.0
      %2651 = vadd.xlane.f32.xlu0 %v2650
      %v2652 = vpop.xlane.xlu0 %2651
      %v2653 = vsel %vm1490, %v2649, 0.0
      %2654 = vadd.xlane.f32.xlu0 %v2653
      %v2655 = vpop.xlane.xlu0 %2654
      %v2656 = vrcp.pop %v2652
      %v2657 = vmul.f32 %v2647, %v2656
      %v2658 = vrcp.pop %v2655
      %v2659 = vmul.f32 %v2649, %v2658
      %v2661 = vsel %vm1490, %v2657, 0
      %v2664 = vsel %vm1490, %v2659, 0
      %2666 = vmatprep.subr.mxu0 0.0
      %2667 = vmatpush1.msra.mxu0 %v2549
      %2668 = vmatprep.subr.mxu0 0.0
      %2669 = vmatpush1.msra.mxu0 %v2550
      %2670 = vmatprep.subr.mxu0 0.0
      %2671 = vmatpush1.msra.mxu0 0.0
      %2672 = vmatprep.subr.mxu0 0.0
      %2673 = vmatpush1.msra.mxu0 0.0
      %2674 = vmatprep.subr.mxu0 0.0
      %2675 = vmatpush1.msra.mxu0 0.0
      %2676 = vmatprep.subr.mxu0 0.0
      %2677 = vmatpush1.msra.mxu0 0.0
      %2678 = vmatprep.subr.mxu0 0.0
      %2679 = vmatpush1.msra.mxu0 0.0
      %2680 = vmatprep.subr.mxu0 0.0
      %2681 = vmatpush1.msra.mxu0 0.0
      %2682 = vmatprep.subr.mxu0 0.0
      %2683 = vmatpush1.msra.mxu0 0.0
      %2684 = vmatprep.subr.mxu0 0.0
      %2685 = vmatpush1.msra.mxu0 0.0
      %2686 = vmatprep.subr.mxu0 0.0
      %2687 = vmatpush1.msra.mxu0 0.0
      %2688 = vmatprep.subr.mxu0 0.0
      %2689 = vmatpush1.msra.mxu0 0.0
      %2690 = vmatprep.subr.mxu0 0.0
      %2691 = vmatpush1.msra.mxu0 0.0
      %2692 = vmatprep.subr.mxu0 0.0
      %2693 = vmatpush1.msra.mxu0 0.0
      %2694 = vmatprep.subr.mxu0 0.0
      %2695 = vmatpush1.msra.mxu0 0.0
      %2696 = vmatprep.subr.mxu0 0.0
      %2697 = vmatpush1.msra.mxu0 0.0
      %2698 = vmatprep.subr.mxu0 0.0
      %2699 = vmatpush1.msra.mxu0 0.0
      %2700 = vmatprep.subr.mxu0 0.0
      %2701 = vmatpush1.msra.mxu0 0.0
      %2702 = vmatprep.subr.mxu0 0.0
      %2703 = vmatpush1.msra.mxu0 0.0
      %2704 = vmatprep.subr.mxu0 0.0
      %2705 = vmatpush1.msra.mxu0 0.0
      %2706 = vmatprep.subr.mxu0 0.0
      %2707 = vmatpush1.msra.mxu0 0.0
      %2708 = vmatprep.subr.mxu0 0.0
      %2709 = vmatpush1.msra.mxu0 0.0
      %2710 = vmatprep.subr.mxu0 0.0
      %2711 = vmatpush1.msra.mxu0 0.0
      %2712 = vmatprep.subr.mxu0 0.0
      %2713 = vmatpush1.msra.mxu0 0.0
      %2714 = vmatprep.subr.mxu0 0.0
      %2715 = vmatpush1.msra.mxu0 0.0
      %2716 = vmatprep.subr.mxu0 0.0
      %2717 = vmatpush1.msra.mxu0 0.0
      %2718 = vmatprep.subr.mxu0 0.0
      %2719 = vmatpush1.msra.mxu0 0.0
      %2720 = vmatprep.subr.mxu0 0.0
      %2721 = vmatpush1.msra.mxu0 0.0
      %2722 = vmatprep.subr.mxu0 0.0
      %2723 = vmatpush1.msra.mxu0 0.0
      %2724 = vmatprep.subr.mxu0 0.0
      %2725 = vmatpush1.msra.mxu0 0.0
      %2726 = vmatprep.subr.mxu0 0.0
      %2727 = vmatpush1.msra.mxu0 0.0
      %2728 = vmatprep.subr.mxu0 0.0
      %2729 = vmatpush1.msra.mxu0 0.0
      %2730 = vmatprep.mubr.f32.mxu0 0.0
      %2731 = vmatmul.mubr.f32.gmra.mrb[0].mxu0 %v2661
      %v2732 = vpop.f32.mrb[0].mxu0
      %v2733 = vadd.f32 0.0, %v2732
      %v2734 = vpop.f32.mrb[0].mxu0
      %2735 = vmatprep.mubr.f32.mxu0 0.0
      %2736 = vmatmul.mubr.f32.gmra.mrb[0].mxu0 %v2664
      %v2737 = vpop.f32.mrb[0].mxu0
      %v2738 = vadd.f32 0.0, %v2737
      %v2739 = vpop.f32.mrb[0].mxu0
      %2740 = vdwg.mxu0
      %s2741 = scalar_lea.vmem %s8, 96
      %v2742 = vld [vmem:[%s2741] sm:$0xff]
      %v2743 = vld [vmem:[%s2741 + $0x8] sm:$0xff]
      %v2744 = vld [vmem:[%s2741 + $0x10] sm:$0xff]
      %v2745 = vld [vmem:[%s2741 + $0x18] sm:$0xff]
      %v2747 = vsel %vm1402, %v2733, 0
      %v2750 = vsel %vm1402, %v2738, 0
      %2752 = vmatprep.subr.mxu0 0.0
      %2753 = vmatpush1.msra.mxu0 %v2742
      %2754 = vmatprep.subr.mxu0 0.0
      %2755 = vmatpush1.msra.mxu0 %v2743
      %2756 = vmatprep.subr.mxu0 0.0
      %2757 = vmatpush1.msra.mxu0 %v2744
      %2758 = vmatprep.subr.mxu0 0.0
      %2759 = vmatpush1.msra.mxu0 %v2745
      %2760 = vmatprep.subr.mxu0 0.0
      %2761 = vmatpush1.msra.mxu0 0.0
      %2762 = vmatprep.subr.mxu0 0.0
      %2763 = vmatpush1.msra.mxu0 0.0
      %2764 = vmatprep.subr.mxu0 0.0
      %2765 = vmatpush1.msra.mxu0 0.0
      %2766 = vmatprep.subr.mxu0 0.0
      %2767 = vmatpush1.msra.mxu0 0.0
      %2768 = vmatprep.subr.mxu0 0.0
      %2769 = vmatpush1.msra.mxu0 0.0
      %2770 = vmatprep.subr.mxu0 0.0
      %2771 = vmatpush1.msra.mxu0 0.0
      %2772 = vmatprep.subr.mxu0 0.0
      %2773 = vmatpush1.msra.mxu0 0.0
      %2774 = vmatprep.subr.mxu0 0.0
      %2775 = vmatpush1.msra.mxu0 0.0
      %2776 = vmatprep.subr.mxu0 0.0
      %2777 = vmatpush1.msra.mxu0 0.0
      %2778 = vmatprep.subr.mxu0 0.0
      %2779 = vmatpush1.msra.mxu0 0.0
      %2780 = vmatprep.subr.mxu0 0.0
      %2781 = vmatpush1.msra.mxu0 0.0
      %2782 = vmatprep.subr.mxu0 0.0
      %2783 = vmatpush1.msra.mxu0 0.0
      %2784 = vmatprep.subr.mxu0 0.0
      %2785 = vmatpush1.msra.mxu0 0.0
      %2786 = vmatprep.subr.mxu0 0.0
      %2787 = vmatpush1.msra.mxu0 0.0
      %2788 = vmatprep.subr.mxu0 0.0
      %2789 = vmatpush1.msra.mxu0 0.0
      %2790 = vmatprep.subr.mxu0 0.0
      %2791 = vmatpush1.msra.mxu0 0.0
      %2792 = vmatprep.subr.mxu0 0.0
      %2793 = vmatpush1.msra.mxu0 0.0
      %2794 = vmatprep.subr.mxu0 0.0
      %2795 = vmatpush1.msra.mxu0 0.0
      %2796 = vmatprep.subr.mxu0 0.0
      %2797 = vmatpush1.msra.mxu0 0.0
      %2798 = vmatprep.subr.mxu0 0.0
      %2799 = vmatpush1.msra.mxu0 0.0
      %2800 = vmatprep.subr.mxu0 0.0
      %2801 = vmatpush1.msra.mxu0 0.0
      %2802 = vmatprep.subr.mxu0 0.0
      %2803 = vmatpush1.msra.mxu0 0.0
      %2804 = vmatprep.subr.mxu0 0.0
      %2805 = vmatpush1.msra.mxu0 0.0
      %2806 = vmatprep.subr.mxu0 0.0
      %2807 = vmatpush1.msra.mxu0 0.0
      %2808 = vmatprep.subr.mxu0 0.0
      %2809 = vmatpush1.msra.mxu0 0.0
      %2810 = vmatprep.subr.mxu0 0.0
      %2811 = vmatpush1.msra.mxu0 0.0
      %2812 = vmatprep.subr.mxu0 0.0
      %2813 = vmatpush1.msra.mxu0 0.0
      %2814 = vmatprep.subr.mxu0 0.0
      %2815 = vmatpush1.msra.mxu0 0.0
      %2816 = vmatprep.mubr.f32.mxu0 0.0
      %2817 = vmatmul.mubr.f32.gmra.mrb[0].mxu0 %v2747
      %v2818 = vpop.f32.mrb[0].mxu0
      %v2819 = vadd.f32 0.0, %v2818
      %v2820 = vpop.f32.mrb[0].mxu0
      %2821 = vmatprep.mubr.f32.mxu0 0.0
      %2822 = vmatmul.mubr.f32.gmra.mrb[0].mxu0 %v2750
      %v2823 = vpop.f32.mrb[0].mxu0
      %v2824 = vadd.f32 0.0, %v2823
      %v2825 = vpop.f32.mrb[0].mxu0
      %2826 = vdwg.mxu0
      %v2827 = vadd.f32 %v2443, %v2819
      %v2828 = vadd.f32 %v2444, %v2824
      %v2829 = vadd.f32 %v1298, %v2827
      %v2830 = vadd.f32 %v1299, %v2828
      %v2831 = vld [vmem:[%s9] sm:$0x1]
      %v2833 = vlaneseq
      %v2834 = vshrl.u32 %v2833, 7
      %v2835 = vsub.s32 0, %v2834
      %v2836 = vrot.slane %v2831, %v2835
      %v2838 = vadd.f32 %v2829, %v2836
      %v2839 = vadd.f32 %v2830, %v2836
      %2840 = vadd.xlane.f32.xlu0 %v2838
      %v2841 = vpop.xlane.xlu0 %2840
      %2842 = vadd.xlane.f32.xlu0 %v2839
      %v2843 = vpop.xlane.xlu0 %2842
      %v2844 = vrcp.pop 128.0
      %v2845 = vmul.f32 %v2841, %v2844
      %v2846 = vmul.f32 %v2843, %v2844
      %v2847 = vsub.f32 %v2838, %v2845
      %v2848 = vsub.f32 %v2839, %v2846
      %v2849 = vmul.f32 %v2847, %v2847
      %v2850 = vmul.f32 %v2848, %v2848
      %2851 = vadd.xlane.f32.xlu0 %v2849
      %v2852 = vpop.xlane.xlu0 %2851
      %2853 = vadd.xlane.f32.xlu0 %v2850
      %v2854 = vpop.xlane.xlu0 %2853
      %v2855 = vmul.f32 %v2852, %v2844
      %v2856 = vmul.f32 %v2854, %v2844
      %v2857 = vadd.f32 %v2855, 1e-05
      %v2858 = vadd.f32 %v2856, 1e-05
      %v2859 = vrsqrt.pop %v2857
      %v2860 = vrsqrt.pop %v2858
      %v2861 = vmul.f32 %v2847, %v2859
      %v2862 = vmul.f32 %v2848, %v2860
      %v2863 = vld [vmem:[%s10] sm:$0x1]
      %v2865 = vlaneseq
      %v2866 = vshrl.u32 %v2865, 7
      %v2867 = vsub.s32 0, %v2866
      %v2868 = vrot.slane %v2863, %v2867
      %v2870 = vmul.f32 %v2861, %v2868
      %v2871 = vmul.f32 %v2862, %v2868
      %v2872 = vld [vmem:[%s11] sm:$0x1]
      %v2874 = vlaneseq
      %v2875 = vshrl.u32 %v2874, 7
      %v2876 = vsub.s32 0, %v2875
      %v2877 = vrot.slane %v2872, %v2876
      %v2879 = vadd.f32 %v2870, %v2877
      %v2880 = vadd.f32 %v2871, %v2877
      %2881 = vst [vmem:[%s471] sm:$0xff] %v2879
      %2882 = vst [vmem:[%s471 + $0x8] sm:$0xff] %v2880
      %s2883 = smul.u32 2, %s28
      %p2884 = scmp.lt.s32.totalorder %s27, 1
      %s2885 = scalar_select %p2884, %s27, 1
      %p2886 = scmp.lt.s32.totalorder %s2883, 1
      %s2887 = scalar_select %p2886, %s2883, 1
      %s2888 = smul.addr %s2885, 2
      %s2889 = sadd.s32 %s2887, %s2888
      %s2890 = smul.addr %s2889, 8
      %s2891 = scalar_lea.vmem %s12, %s2890
      // Predicated region
      $region73: #{audio_transformer_forward.9} parent=67 // pred_check
        %p2892 = pneg %p319
      $region74: #{audio_transformer_forward.9} parent=67 // pred_check_branch
        %2894 = sbr.rel (%p2892) target = $region76
      $region75: #{audio_transformer_forward.9} parent=67 // pred_region
        %s2895 = smul.u32 2, %s28
      $region76: #{audio_transformer_forward.9} parent=67 // pred_fallthru
        _
    $region68: #{audio_transformer_forward.9} parent=5 // pred_fallthru
      _
    %p2896 = scmp.le.s32.totalorder 2, %s18
    // Predicated region
    $region77: #{audio_transformer_forward.9} parent=5 // pred_check
      %p2897 = pneg %p2896
    $region78: #{audio_transformer_forward.9} parent=5 // pred_check_branch
      %2899 = sbr.rel (%p2897) target = $region80
    $region79: #{audio_transformer_forward.9} parent=5 // pred_region
      %s2900 = ssub.s32 %s18, 2
      // Predicated region
      $region81: #{audio_transformer_forward.9} parent=79 // pred_check
        %p2901 = pneg %p325
      $region82: #{audio_transformer_forward.9} parent=79 // pred_check_branch
        %2903 = sbr.rel (%p2901) target = $region84
      $region83: #{audio_transformer_forward.9} parent=79 // pred_region
        %s2904 = smul.u32 2, %s30
        %p2905 = scmp.lt.s32.totalorder %s29, 1
        %s2906 = scalar_select %p2905, %s29, 1
        %p2907 = scmp.lt.s32.totalorder %s2904, 1
        %s2908 = scalar_select %p2907, %s2904, 1
        %s2909 = smul.addr %s2906, 2
        %s2910 = sadd.s32 %s2908, %s2909
        %s2911 = smul.addr %s2910, 8
        %s2912 = scalar_lea.vmem %s12, %s2911
      $region84: #{audio_transformer_forward.9} parent=79 // pred_fallthru
        _
    $region80: #{audio_transformer_forward.9} parent=5 // pred_fallthru
      _
  $region6: #{audio_transformer_forward.9} parent=0 // loop_footer
    %s22 = sadd.s32 1, %s18
  $region7: #{audio_transformer_forward.9} parent=0 // loop_footer_branch
    %17 = sbr.rel target = $region3
  $region8: #{audio_transformer_forward.9} parent=0 // loop_exit
    _

</llo_original>
